<compile_context>
chip_gen: v5e
topology: v5e:2x2
jax: 0.10.0
libtpu: 0.0.40
codegen_flags: <defaults>
</compile_context>

<pallas_src>
import functools

import numpy as np
import jax
import jax.numpy as jnp
from jax import lax
from jax.experimental import pallas as pl
from jax.experimental.pallas import tpu as pltpu

PAD = 0            # Constants.PAD
NEG_INF = -1e9     # finite "masked" additive bias (avoids NaN for fully-padded rows)


# ----------------------------- sinusoid table (host-side, numpy, exact port) --------------------
def get_sinusoid_encoding_table(n_position, d_hid, padding_idx=None):
    def cal_angle(position, hid_idx):
        return position / np.power(10000, 2 * (hid_idx // 2) / d_hid)

    def get_posi_angle_vec(position):
        return [cal_angle(position, hid_j) for hid_j in range(d_hid)]

    table = np.array([get_posi_angle_vec(p) for p in range(n_position)])
    table[:, 0::2] = np.sin(table[:, 0::2])
    table[:, 1::2] = np.cos(table[:, 1::2])
    if padding_idx is not None:
        table[padding_idx] = 0.0
    return table.astype(np.float32)


# ----------------------------------- fused per-layer kernel -------------------------------------
_WEIGHT_NAMES = (
    "s_wq", "s_bq", "s_wk", "s_bk", "s_wv", "s_bv", "s_fcw", "s_fcb", "s_lng", "s_lnb",
    "e_wq", "e_bq", "e_wk", "e_bk", "e_wv", "e_bv", "e_fcw", "e_fcb", "e_lng", "e_lnb",
    "f_w1", "f_b1", "f_w2", "f_b2", "f_lng", "f_lnb",
)


def _decoder_layer_kernel(*refs, n_head, q_tile):
    (x_ref, enc_ref, causal_ref, tkpad_ref, skpad_ref, npm_ref,
     s_wq_ref, s_bq_ref, s_wk_ref, s_bk_ref, s_wv_ref, s_bv_ref,
     s_fcw_ref, s_fcb_ref, s_lng_ref, s_lnb_ref,
     e_wq_ref, e_bq_ref, e_wk_ref, e_bk_ref, e_wv_ref, e_bv_ref,
     e_fcw_ref, e_fcb_ref, e_lng_ref, e_lnb_ref,
     f_w1_ref, f_b1_ref, f_w2_ref, f_b2_ref, f_lng_ref, f_lnb_ref,
     o_ref, sk_ref, sv_ref, ek_ref, ev_ref) = refs

    i = pl.program_id(1)                 # query-row tile index (innermost grid axis)
    D = x_ref.shape[2]
    bf16, f32 = jnp.bfloat16, jnp.float32

    def project_heads(inp16, w_ref, b_ref):
        # inp16: (L, D) bf16;  w_ref: (H, D, d) bf16;  b_ref: (H, 1, d) f32  ->  (H, L, d) f32.
        # Heads on the batch dim of a single MXU-batched matmul (no per-head unroll / slices).
        L = inp16.shape[0]
        inp_b = jnp.broadcast_to(inp16, (n_head, L, D))
        return jnp.einsum('hld,hdk->hlk', inp_b, w_ref[...],
                          preferred_element_type=f32) + b_ref[...]

    # ----- per-batch-element K/V caches: computed once (first query tile), reused afterwards ----
    @pl.when(i == 0)
    def _():
        x_all = x_ref[0]                                        # (Lt, D) bf16, full sequence
        sk_ref[...] = project_heads(x_all, s_wk_ref, s_bk_ref).astype(bf16)
        sv_ref[...] = project_heads(x_all, s_wv_ref, s_bv_ref).astype(bf16)
        enc_all = enc_ref[0]                                    # (Ls, D) bf16
        ek_ref[...] = project_heads(enc_all, e_wk_ref, e_bk_ref).astype(bf16)
        ev_ref[...] = project_heads(enc_all, e_wv_ref, e_bv_ref).astype(bf16)

    def add_layernorm(y, res, g_ref, b_ref):
        # LayerNorm(y + residual): eps=1e-5, biased variance (PyTorch semantics), f32 math.
        z = y + res
        mean = jnp.mean(z, axis=-1, keepdims=True)
        zc = z - mean
        var = jnp.mean(zc * zc, axis=-1, keepdims=True)
        return zc * lax.rsqrt(var + 1e-5) * g_ref[...] + b_ref[...]

    def attention(x16, wq_ref, bq_ref, k_cache_ref, v_cache_ref, bias, fcw_ref, fcb_ref):
        # x16: (TQ, D) bf16 query rows.  Caches: (H, Lk, d) bf16.  bias broadcastable to (TQ, Lk).
        # 1/sqrt(d_k) is already folded into wq, so scores come out pre-scaled.
        q3 = project_heads(x16, wq_ref, bq_ref).astype(bf16)             # (H, TQ, d_k)
        s = jnp.einsum('hqd,hkd->hqk', q3, k_cache_ref[...],
                       preferred_element_type=f32)                        # (H, TQ, Lk)
        s = s + bias[None, :, :]                                          # additive -1e9 mask
        s = s - jnp.max(s, axis=-1, keepdims=True)
        p = jnp.exp(s)
        p = p * pl.reciprocal(jnp.sum(p, axis=-1, keepdims=True), approx=True)
        ctx = jnp.einsum('hqk,hkd->hqd', p.astype(bf16), v_cache_ref[...],
                         preferred_element_type=f32)                      # (H, TQ, d_v)
        # Per-head output projection (fc pre-split host-side), summed over heads
        # == concat(heads) @ fc_w, with no concatenate / misaligned weight slices.
        part = jnp.einsum('hqv,hvd->hqd', ctx.astype(bf16), fcw_ref[...],
                          preferred_element_type=f32)                     # (H, TQ, D)
        return jnp.sum(part, axis=0) + fcb_ref[...]                       # (TQ, D)

    # ----------------------------- current query-row tile ---------------------------------------
    q_start = pl.multiple_of(i * q_tile, q_tile)
    x_tile16 = x_ref[0, pl.ds(q_start, q_tile), :]          # (TQ, D) bf16
    npm = npm_ref[0]                                        # (TQ, 1) f32 non-pad mask
    slf_bias = causal_ref[...] + tkpad_ref[0]               # (TQ, Lt) causal + key-pad bias
    enc_bias = jnp.broadcast_to(skpad_ref[0], (q_tile, enc_ref.shape[1]))   # (TQ, Ls)

    # ---------------------------------- self-attention ------------------------------------------
    residual = x_tile16.astype(f32)
    out = attention(x_tile16, s_wq_ref, s_bq_ref, sk_ref, sv_ref, slf_bias, s_fcw_ref, s_fcb_ref)
    x = add_layernorm(out, residual, s_lng_ref, s_lnb_ref) * npm

    # --------------------------------- enc-dec attention ----------------------------------------
    residual = x
    out = attention(x.astype(bf16), e_wq_ref, e_bq_ref, ek_ref, ev_ref, enc_bias,
                    e_fcw_ref, e_fcb_ref)
    x = add_layernorm(out, residual, e_lng_ref, e_lnb_ref) * npm

    # -------------------------------- position-wise FFN -----------------------------------------
    residual = x
    h1 = jnp.dot(x.astype(bf16), f_w1_ref[...], preferred_element_type=f32) + f_b1_ref[...]
    h1 = jnp.maximum(h1, 0.0)
    h2 = jnp.dot(h1.astype(bf16), f_w2_ref[...], preferred_element_type=f32) + f_b2_ref[...]
    x = add_layernorm(h2, residual, f_lng_ref, f_lnb_ref) * npm

    o_ref[0] = x.astype(o_ref.dtype)


def _pick_q_tile(seq_len):
    # Bound the per-step working set (scores (TQ, L) and FFN (TQ, d_inner)) for realistic
    # sequence lengths; one tile for short sequences.
    if seq_len <= 256:
        return seq_len
    for t in (256, 128, 64, 32, 16, 8):
        if seq_len % t == 0:
            return t
    return seq_len  # TODO(synk): pad ragged sequence lengths up to a tile multiple


def decoder_layer_forward(lp, x, enc_output, causal_bias, tkpad_bias, skpad_bias, npm,
                          *, n_head, d_k, d_v, q_tile):
    B, Lt, D = x.shape
    Ls = enc_output.shape[1]
    nq = Lt // q_tile

    data_specs = [
        pl.BlockSpec((1, Lt, D), lambda b, i: (b, 0, 0)),      # full decoder activation (bf16)
        pl.BlockSpec((1, Ls, D), lambda b, i: (b, 0, 0)),      # full encoder output (bf16)
        pl.BlockSpec((q_tile, Lt), lambda b, i: (i, 0)),       # causal additive bias (tile rows)
        pl.BlockSpec((1, 1, Lt), lambda b, i: (b, 0, 0)),      # target key-pad additive bias
        pl.BlockSpec((1, 1, Ls), lambda b, i: (b, 0, 0)),      # source key-pad additive bias
        pl.BlockSpec((1, q_tile, 1), lambda b, i: (b, i, 0)),  # non-pad mask (query rows)
    ]
    weights = [lp[name] for name in _WEIGHT_NAMES]
    # Constant block index across the whole grid -> each weight DMA'd once, stays VMEM-resident.
    # TODO(synk): pipeline_mode=pl.Buffered(1) here would drop the unused second buffer.
    weight_specs = [pl.BlockSpec(w.shape, lambda b, i, _n=w.ndim: (0,) * _n) for w in weights]

    kernel = functools.partial(_decoder_layer_kernel, n_head=n_head, q_tile=q_tile)
    return pl.pallas_call(
        kernel,
        out_shape=jax.ShapeDtypeStruct((B, Lt, D), jnp.bfloat16),
        grid=(B, nq),
        in_specs=data_specs + weight_specs,
        out_specs=pl.BlockSpec((1, q_tile, D), lambda b, i: (b, i, 0)),
        scratch_shapes=[
            pltpu.VMEM((n_head, Lt, d_k), jnp.bfloat16),   # self-attn K cache
            pltpu.VMEM((n_head, Lt, d_v), jnp.bfloat16),   # self-attn V cache
            pltpu.VMEM((n_head, Ls, d_k), jnp.bfloat16),   # enc-dec K cache
            pltpu.VMEM((n_head, Ls, d_v), jnp.bfloat16),   # enc-dec V cache
        ],
        compiler_params=pltpu.CompilerParams(
            dimension_semantics=("parallel", "arbitrary"),
            vmem_limit_bytes=64 * 1024 * 1024,
        ),
    )(x, enc_output, causal_bias, tkpad_bias, skpad_bias, npm, *weights)


# ------------------------------------ module-level forward --------------------------------------
def decoder_forward(params, tgt_seq, tgt_pos, src_seq, enc_output, *, n_head, d_k, d_v):
    # Mask / embedding glue stays in plain JAX (cheap gathers); all heavy math runs in the fused
    # per-layer Pallas kernel.  Masks are precomputed additive biases (no per-step iotas).
    B, Lt = tgt_seq.shape
    causal_bias = jnp.asarray(np.triu(np.ones((Lt, Lt), np.float32), k=1) * NEG_INF)   # (Lt, Lt)
    tkpad_bias = jnp.where(tgt_seq == PAD, NEG_INF, 0.0).astype(jnp.float32)[:, None, :]
    skpad_bias = jnp.where(src_seq == PAD, NEG_INF, 0.0).astype(jnp.float32)[:, None, :]
    npm = (tgt_seq != PAD).astype(jnp.float32)[:, :, None]

    q_tile = _pick_q_tile(Lt)

    dec_output = params['tgt_word_emb'][tgt_seq] + params['position_enc'][tgt_pos]
    dec_output = dec_output.astype(jnp.bfloat16)          # bf16 activations between layers
    enc_bf16 = enc_output.astype(jnp.bfloat16)

    for lp in params['layers']:
        dec_output = decoder_layer_forward(lp, dec_output, enc_bf16, causal_bias,
                                           tkpad_bias, skpad_bias, npm,
                                           n_head=n_head, d_k=d_k, d_v=d_v, q_tile=q_tile)
    return dec_output.astype(jnp.float32)


# ---------------------------------------- parameter init ----------------------------------------
def init_layer(key, d_model, d_inner, n_head, d_k, d_v):
    # Per-head 3D weight layout (kernel-native).  Mapping from PyTorch parameters:
    #   s_wq[h] == w_qs.weight.T[:, h*d_k:(h+1)*d_k] * (1/sqrt(d_k))   (attention scale folded in)
    #   s_wk[h] == w_ks.weight.T[:, h*d_k:(h+1)*d_k]
    #   s_fcw[h] == fc.weight.T[h*d_v:(h+1)*d_v, :]
    ks = jax.random.split(key, 10)
    f32, bf16 = jnp.float32, jnp.bfloat16
    std = 1.0 / np.sqrt(d_model)
    qk_scale = 1.0 / np.sqrt(d_k)

    def head_w(k, d_out, scale=1.0):
        return (scale * std * jax.random.normal(k, (n_head, d_model, d_out), f32)).astype(bf16)

    return {
        # self-attention
        's_wq': head_w(ks[0], d_k, qk_scale), 's_bq': jnp.zeros((n_head, 1, d_k), f32),
        's_wk': head_w(ks[1], d_k),           's_bk': jnp.zeros((n_head, 1, d_k), f32),
        's_wv': head_w(ks[2], d_v),           's_bv': jnp.zeros((n_head, 1, d_v), f32),
        's_fcw': (std * jax.random.normal(ks[3], (n_head, d_v, d_model), f32)).astype(bf16),
        's_fcb': jnp.zeros((1, d_model), f32),
        's_lng': jnp.ones((1, d_model), f32), 's_lnb': jnp.zeros((1, d_model), f32),
        # enc-dec attention
        'e_wq': head_w(ks[4], d_k, qk_scale), 'e_bq': jnp.zeros((n_head, 1, d_k), f32),
        'e_wk': head_w(ks[5], d_k),           'e_bk': jnp.zeros((n_head, 1, d_k), f32),
        'e_wv': head_w(ks[6], d_v),           'e_bv': jnp.zeros((n_head, 1, d_v), f32),
        'e_fcw': (std * jax.random.normal(ks[7], (n_head, d_v, d_model), f32)).astype(bf16),
        'e_fcb': jnp.zeros((1, d_model), f32),
        'e_lng': jnp.ones((1, d_model), f32), 'e_lnb': jnp.zeros((1, d_model), f32),
        # position-wise FFN (Conv1d k=1 == pointwise linear)
        'f_w1': (std * jax.random.normal(ks[8], (d_model, d_inner), f32)).astype(bf16),
        'f_b1': jnp.zeros((1, d_inner), f32),
        'f_w2': (std * jax.random.normal(ks[9], (d_inner, d_model), f32)).astype(bf16),
        'f_b2': jnp.zeros((1, d_model), f32),
        'f_lng': jnp.ones((1, d_model), f32), 'f_lnb': jnp.zeros((1, d_model), f32),
    }


def init_params(key, n_tgt_vocab, tgt_len_max_seq, d_word_vec, n_layers,
                n_head, d_k, d_v, d_model, d_inner):
    n_position = tgt_len_max_seq + 1
    keys = jax.random.split(key, 1 + n_layers)
    emb = 0.02 * jax.random.normal(keys[0], (n_tgt_vocab, d_word_vec), jnp.float32)
    emb = emb.at[PAD].set(0.0)  # padding_idx=PAD
    pos_table = jnp.asarray(get_sinusoid_encoding_table(n_position, d_word_vec, padding_idx=0))
    layers = [init_layer(keys[1 + i], d_model, d_inner, n_head, d_k, d_v)
              for i in range(n_layers)]
    return {'tgt_word_emb': emb, 'position_enc': pos_table, 'layers': layers}


# ------------------------------------------------ main ------------------------------------------
if __name__ == "__main__":
    B, Lt, Ls = 2, 8, 8
    n_tgt_vocab = 50
    tgt_len_max_seq = 16
    d_model = d_word_vec = 32
    n_layers = 2
    n_head = 4
    d_k = d_v = 8
    d_inner = 64

    key = jax.random.PRNGKey(0)
    kp, k1, k2, k3 = jax.random.split(key, 4)

    params = init_params(kp, n_tgt_vocab, tgt_len_max_seq, d_word_vec,
                         n_layers, n_head, d_k, d_v, d_model, d_inner)

    tgt_seq = jax.random.randint(k1, (B, Lt), 1, n_tgt_vocab).astype(jnp.int32)
    tgt_seq = tgt_seq.at[1, 6:].set(PAD)  # tail padding in batch element 1
    tgt_pos = jnp.where(tgt_seq != PAD, jnp.arange(1, Lt + 1, dtype=jnp.int32)[None, :], 0)
    src_seq = jax.random.randint(k2, (B, Ls), 1, n_tgt_vocab).astype(jnp.int32)
    src_seq = src_seq.at[1, 7:].set(PAD)
    enc_output = jax.random.normal(k3, (B, Ls, d_model), jnp.float32)

    fwd = jax.jit(functools.partial(decoder_forward, n_head=n_head, d_k=d_k, d_v=d_v))
    out = jax.block_until_ready(fwd(params, tgt_seq, tgt_pos, src_seq, enc_output))

    assert out.shape == (B, Lt, d_model), out.shape
    assert bool(jnp.all(jnp.isfinite(out)))
    print("KERNEL_OK")
</pallas_src>

<mosaic_0001>
module attributes {stable_mosaic.version = 11 : i64} {
  func.func @_decoder_layer_kernel(%arg0: i32, %arg1: i32, %arg2: memref<1x8x32xbf16, #tpu.memory_space<vmem>>, %arg3: memref<1x8x32xbf16, #tpu.memory_space<vmem>>, %arg4: memref<8x8xf32, #tpu.memory_space<vmem>>, %arg5: memref<1x1x8xf32, #tpu.memory_space<vmem>>, %arg6: memref<1x1x8xf32, #tpu.memory_space<vmem>>, %arg7: memref<1x8x1xf32, #tpu.memory_space<vmem>>, %arg8: memref<4x32x8xbf16, #tpu.memory_space<vmem>>, %arg9: memref<4x1x8xf32, #tpu.memory_space<vmem>>, %arg10: memref<4x32x8xbf16, #tpu.memory_space<vmem>>, %arg11: memref<4x1x8xf32, #tpu.memory_space<vmem>>, %arg12: memref<4x32x8xbf16, #tpu.memory_space<vmem>>, %arg13: memref<4x1x8xf32, #tpu.memory_space<vmem>>, %arg14: memref<4x8x32xbf16, #tpu.memory_space<vmem>>, %arg15: memref<1x32xf32, #tpu.memory_space<vmem>>, %arg16: memref<1x32xf32, #tpu.memory_space<vmem>>, %arg17: memref<1x32xf32, #tpu.memory_space<vmem>>, %arg18: memref<4x32x8xbf16, #tpu.memory_space<vmem>>, %arg19: memref<4x1x8xf32, #tpu.memory_space<vmem>>, %arg20: memref<4x32x8xbf16, #tpu.memory_space<vmem>>, %arg21: memref<4x1x8xf32, #tpu.memory_space<vmem>>, %arg22: memref<4x32x8xbf16, #tpu.memory_space<vmem>>, %arg23: memref<4x1x8xf32, #tpu.memory_space<vmem>>, %arg24: memref<4x8x32xbf16, #tpu.memory_space<vmem>>, %arg25: memref<1x32xf32, #tpu.memory_space<vmem>>, %arg26: memref<1x32xf32, #tpu.memory_space<vmem>>, %arg27: memref<1x32xf32, #tpu.memory_space<vmem>>, %arg28: memref<32x64xbf16, #tpu.memory_space<vmem>>, %arg29: memref<1x64xf32, #tpu.memory_space<vmem>>, %arg30: memref<64x32xbf16, #tpu.memory_space<vmem>>, %arg31: memref<1x32xf32, #tpu.memory_space<vmem>>, %arg32: memref<1x32xf32, #tpu.memory_space<vmem>>, %arg33: memref<1x32xf32, #tpu.memory_space<vmem>>, %arg34: memref<1x8x32xbf16, #tpu.memory_space<vmem>>, %arg35: memref<4x8x8xbf16, #tpu.memory_space<vmem>>, %arg36: memref<4x8x8xbf16, #tpu.memory_space<vmem>>, %arg37: memref<4x8x8xbf16, #tpu.memory_space<vmem>>, %arg38: memref<4x8x8xbf16, #tpu.memory_space<vmem>>) attributes {dimension_semantics = [#tpu.dimension_semantics<parallel>, #tpu.dimension_semantics<arbitrary>], iteration_bounds = array<i64: 2, 1>, scalar_prefetch = 0 : i64, scratch_operands = 4 : i64, tpu.core_type = #tpu.core_type<tc>, window_params = [{transform_indices = @transform_0, window_bounds = array<i64: 1, 8, 32>}, {transform_indices = @transform_1, window_bounds = array<i64: 1, 8, 32>}, {transform_indices = @transform_2, window_bounds = array<i64: 8, 8>}, {transform_indices = @transform_3, window_bounds = array<i64: 1, 1, 8>}, {transform_indices = @transform_4, window_bounds = array<i64: 1, 1, 8>}, {transform_indices = @transform_5, window_bounds = array<i64: 1, 8, 1>}, {pipeline_mode = #tpu.pipeline_mode<synchronous>, transform_indices = @transform_6, window_bounds = array<i64: 4, 32, 8>}, {pipeline_mode = #tpu.pipeline_mode<synchronous>, transform_indices = @transform_7, window_bounds = array<i64: 4, 1, 8>}, {pipeline_mode = #tpu.pipeline_mode<synchronous>, transform_indices = @transform_8, window_bounds = array<i64: 4, 32, 8>}, {pipeline_mode = #tpu.pipeline_mode<synchronous>, transform_indices = @transform_9, window_bounds = array<i64: 4, 1, 8>}, {pipeline_mode = #tpu.pipeline_mode<synchronous>, transform_indices = @transform_10, window_bounds = array<i64: 4, 32, 8>}, {pipeline_mode = #tpu.pipeline_mode<synchronous>, transform_indices = @transform_11, window_bounds = array<i64: 4, 1, 8>}, {pipeline_mode = #tpu.pipeline_mode<synchronous>, transform_indices = @transform_12, window_bounds = array<i64: 4, 8, 32>}, {pipeline_mode = #tpu.pipeline_mode<synchronous>, transform_indices = @transform_13, window_bounds = array<i64: 1, 32>}, {pipeline_mode = #tpu.pipeline_mode<synchronous>, transform_indices = @transform_14, window_bounds = array<i64: 1, 32>}, {pipeline_mode = #tpu.pipeline_mode<synchronous>, transform_indices = @transform_15, window_bounds = array<i64: 1, 32>}, {pipeline_mode = #tpu.pipeline_mode<synchronous>, transform_indices = @transform_16, window_bounds = array<i64: 4, 32, 8>}, {pipeline_mode = #tpu.pipeline_mode<synchronous>, transform_indices = @transform_17, window_bounds = array<i64: 4, 1, 8>}, {pipeline_mode = #tpu.pipeline_mode<synchronous>, transform_indices = @transform_18, window_bounds = array<i64: 4, 32, 8>}, {pipeline_mode = #tpu.pipeline_mode<synchronous>, transform_indices = @transform_19, window_bounds = array<i64: 4, 1, 8>}, {pipeline_mode = #tpu.pipeline_mode<synchronous>, transform_indices = @transform_20, window_bounds = array<i64: 4, 32, 8>}, {pipeline_mode = #tpu.pipeline_mode<synchronous>, transform_indices = @transform_21, window_bounds = array<i64: 4, 1, 8>}, {pipeline_mode = #tpu.pipeline_mode<synchronous>, transform_indices = @transform_22, window_bounds = array<i64: 4, 8, 32>}, {pipeline_mode = #tpu.pipeline_mode<synchronous>, transform_indices = @transform_23, window_bounds = array<i64: 1, 32>}, {pipeline_mode = #tpu.pipeline_mode<synchronous>, transform_indices = @transform_24, window_bounds = array<i64: 1, 32>}, {pipeline_mode = #tpu.pipeline_mode<synchronous>, transform_indices = @transform_25, window_bounds = array<i64: 1, 32>}, {pipeline_mode = #tpu.pipeline_mode<synchronous>, transform_indices = @transform_26, window_bounds = array<i64: 32, 64>}, {pipeline_mode = #tpu.pipeline_mode<synchronous>, transform_indices = @transform_27, window_bounds = array<i64: 1, 64>}, {pipeline_mode = #tpu.pipeline_mode<synchronous>, transform_indices = @transform_28, window_bounds = array<i64: 64, 32>}, {pipeline_mode = #tpu.pipeline_mode<synchronous>, transform_indices = @transform_29, window_bounds = array<i64: 1, 32>}, {pipeline_mode = #tpu.pipeline_mode<synchronous>, transform_indices = @transform_30, window_bounds = array<i64: 1, 32>}, {pipeline_mode = #tpu.pipeline_mode<synchronous>, transform_indices = @transform_31, window_bounds = array<i64: 1, 32>}, {transform_indices = @transform_32, window_bounds = array<i64: 1, 8, 32>}]} {
    %c0_i32 = arith.constant 0 : i32
    %0 = arith.cmpi eq, %arg1, %c0_i32 : i32
    %1 = arith.extui %0 : i1 to i32
    %c0_i32_0 = arith.constant 0 : i32
    %2 = arith.cmpi ne, %1, %c0_i32_0 : i32
    scf.if %2 {
      %c0_101 = arith.constant 0 : index
      %c0_102 = arith.constant 0 : index
      %c0_103 = arith.constant 0 : index
      %180 = vector.load %arg2[%c0_101, %c0_102, %c0_103] : memref<1x8x32xbf16, #tpu.memory_space<vmem>>, vector<1x8x32xbf16>
      %181 = vector.shape_cast %180 : vector<1x8x32xbf16> to vector<8x32xbf16>
      %182 = vector.shape_cast %181 : vector<8x32xbf16> to vector<1x8x32xbf16>
      %183 = vector.broadcast %182 : vector<1x8x32xbf16> to vector<4x8x32xbf16>
      %c0_104 = arith.constant 0 : index
      %c0_105 = arith.constant 0 : index
      %c0_106 = arith.constant 0 : index
      %184 = vector.load %arg10[%c0_104, %c0_105, %c0_106] : memref<4x32x8xbf16, #tpu.memory_space<vmem>>, vector<4x32x8xbf16>
      "tpu.trace_start"() <{level = 10 : i32, message = "hld,hdk->hlk"}> : () -> ()
      %cst_107 = arith.constant dense<0.000000e+00> : vector<4x8x8xf32>
      %185 = tpu.matmul %183, %184, %cst_107 {dimension_numbers = #tpu.dot_dimension_numbers<[2], [1], [1], [2], [0, 0, 0, 1, 1, 2], [0], [0]>} : vector<4x8x32xbf16>, vector<4x32x8xbf16>, vector<4x8x8xf32> -> vector<4x8x8xf32>
      "tpu.trace_stop"() : () -> ()
      %c0_108 = arith.constant 0 : index
      %c0_109 = arith.constant 0 : index
      %c0_110 = arith.constant 0 : index
      %186 = vector.load %arg11[%c0_108, %c0_109, %c0_110] : memref<4x1x8xf32, #tpu.memory_space<vmem>>, vector<4x1x8xf32>
      %187 = vector.broadcast %186 : vector<4x1x8xf32> to vector<4x8x8xf32>
      %188 = arith.addf %185, %187 : vector<4x8x8xf32>
      %189 = arith.truncf %188 : vector<4x8x8xf32> to vector<4x8x8xbf16>
      %c0_111 = arith.constant 0 : index
      %c0_112 = arith.constant 0 : index
      %c0_113 = arith.constant 0 : index
      %190 = vector.load %arg35[%c0_111, %c0_112, %c0_113] : memref<4x8x8xbf16, #tpu.memory_space<vmem>>, vector<4x8x8xbf16>
      tpu.vector_store %arg35[%c0_111, %c0_112, %c0_113], %189 {strides = array<i32>} : memref<4x8x8xbf16, #tpu.memory_space<vmem>>, vector<4x8x8xbf16>,
      %191 = vector.shape_cast %181 : vector<8x32xbf16> to vector<1x8x32xbf16>
      %192 = vector.broadcast %191 : vector<1x8x32xbf16> to vector<4x8x32xbf16>
      %c0_114 = arith.constant 0 : index
      %c0_115 = arith.constant 0 : index
      %c0_116 = arith.constant 0 : index
      %193 = vector.load %arg12[%c0_114, %c0_115, %c0_116] : memref<4x32x8xbf16, #tpu.memory_space<vmem>>, vector<4x32x8xbf16>
      "tpu.trace_start"() <{level = 10 : i32, message = "hld,hdk->hlk"}> : () -> ()
      %cst_117 = arith.constant dense<0.000000e+00> : vector<4x8x8xf32>
      %194 = tpu.matmul %192, %193, %cst_117 {dimension_numbers = #tpu.dot_dimension_numbers<[2], [1], [1], [2], [0, 0, 0, 1, 1, 2], [0], [0]>} : vector<4x8x32xbf16>, vector<4x32x8xbf16>, vector<4x8x8xf32> -> vector<4x8x8xf32>
      "tpu.trace_stop"() : () -> ()
      %c0_118 = arith.constant 0 : index
      %c0_119 = arith.constant 0 : index
      %c0_120 = arith.constant 0 : index
      %195 = vector.load %arg13[%c0_118, %c0_119, %c0_120] : memref<4x1x8xf32, #tpu.memory_space<vmem>>, vector<4x1x8xf32>
      %196 = vector.broadcast %195 : vector<4x1x8xf32> to vector<4x8x8xf32>
      %197 = arith.addf %194, %196 : vector<4x8x8xf32>
      %198 = arith.truncf %197 : vector<4x8x8xf32> to vector<4x8x8xbf16>
      %c0_121 = arith.constant 0 : index
      %c0_122 = arith.constant 0 : index
      %c0_123 = arith.constant 0 : index
      %199 = vector.load %arg36[%c0_121, %c0_122, %c0_123] : memref<4x8x8xbf16, #tpu.memory_space<vmem>>, vector<4x8x8xbf16>
      tpu.vector_store %arg36[%c0_121, %c0_122, %c0_123], %198 {strides = array<i32>} : memref<4x8x8xbf16, #tpu.memory_space<vmem>>, vector<4x8x8xbf16>,
      %c0_124 = arith.constant 0 : index
      %c0_125 = arith.constant 0 : index
      %c0_126 = arith.constant 0 : index
      %200 = vector.load %arg3[%c0_124, %c0_125, %c0_126] : memref<1x8x32xbf16, #tpu.memory_space<vmem>>, vector<1x8x32xbf16>
      %201 = vector.shape_cast %200 : vector<1x8x32xbf16> to vector<8x32xbf16>
      %202 = vector.shape_cast %201 : vector<8x32xbf16> to vector<1x8x32xbf16>
      %203 = vector.broadcast %202 : vector<1x8x32xbf16> to vector<4x8x32xbf16>
      %c0_127 = arith.constant 0 : index
      %c0_128 = arith.constant 0 : index
      %c0_129 = arith.constant 0 : index
      %204 = vector.load %arg20[%c0_127, %c0_128, %c0_129] : memref<4x32x8xbf16, #tpu.memory_space<vmem>>, vector<4x32x8xbf16>
      "tpu.trace_start"() <{level = 10 : i32, message = "hld,hdk->hlk"}> : () -> ()
      %cst_130 = arith.constant dense<0.000000e+00> : vector<4x8x8xf32>
      %205 = tpu.matmul %203, %204, %cst_130 {dimension_numbers = #tpu.dot_dimension_numbers<[2], [1], [1], [2], [0, 0, 0, 1, 1, 2], [0], [0]>} : vector<4x8x32xbf16>, vector<4x32x8xbf16>, vector<4x8x8xf32> -> vector<4x8x8xf32>
      "tpu.trace_stop"() : () -> ()
      %c0_131 = arith.constant 0 : index
      %c0_132 = arith.constant 0 : index
      %c0_133 = arith.constant 0 : index
      %206 = vector.load %arg21[%c0_131, %c0_132, %c0_133] : memref<4x1x8xf32, #tpu.memory_space<vmem>>, vector<4x1x8xf32>
      %207 = vector.broadcast %206 : vector<4x1x8xf32> to vector<4x8x8xf32>
      %208 = arith.addf %205, %207 : vector<4x8x8xf32>
      %209 = arith.truncf %208 : vector<4x8x8xf32> to vector<4x8x8xbf16>
      %c0_134 = arith.constant 0 : index
      %c0_135 = arith.constant 0 : index
      %c0_136 = arith.constant 0 : index
      %210 = vector.load %arg37[%c0_134, %c0_135, %c0_136] : memref<4x8x8xbf16, #tpu.memory_space<vmem>>, vector<4x8x8xbf16>
      tpu.vector_store %arg37[%c0_134, %c0_135, %c0_136], %209 {strides = array<i32>} : memref<4x8x8xbf16, #tpu.memory_space<vmem>>, vector<4x8x8xbf16>,
      %211 = vector.shape_cast %201 : vector<8x32xbf16> to vector<1x8x32xbf16>
      %212 = vector.broadcast %211 : vector<1x8x32xbf16> to vector<4x8x32xbf16>
      %c0_137 = arith.constant 0 : index
      %c0_138 = arith.constant 0 : index
      %c0_139 = arith.constant 0 : index
      %213 = vector.load %arg22[%c0_137, %c0_138, %c0_139] : memref<4x32x8xbf16, #tpu.memory_space<vmem>>, vector<4x32x8xbf16>
      "tpu.trace_start"() <{level = 10 : i32, message = "hld,hdk->hlk"}> : () -> ()
      %cst_140 = arith.constant dense<0.000000e+00> : vector<4x8x8xf32>
      %214 = tpu.matmul %212, %213, %cst_140 {dimension_numbers = #tpu.dot_dimension_numbers<[2], [1], [1], [2], [0, 0, 0, 1, 1, 2], [0], [0]>} : vector<4x8x32xbf16>, vector<4x32x8xbf16>, vector<4x8x8xf32> -> vector<4x8x8xf32>
      "tpu.trace_stop"() : () -> ()
      %c0_141 = arith.constant 0 : index
      %c0_142 = arith.constant 0 : index
      %c0_143 = arith.constant 0 : index
      %215 = vector.load %arg23[%c0_141, %c0_142, %c0_143] : memref<4x1x8xf32, #tpu.memory_space<vmem>>, vector<4x1x8xf32>
      %216 = vector.broadcast %215 : vector<4x1x8xf32> to vector<4x8x8xf32>
      %217 = arith.addf %214, %216 : vector<4x8x8xf32>
      %218 = arith.truncf %217 : vector<4x8x8xf32> to vector<4x8x8xbf16>
      %c0_144 = arith.constant 0 : index
      %c0_145 = arith.constant 0 : index
      %c0_146 = arith.constant 0 : index
      %219 = vector.load %arg38[%c0_144, %c0_145, %c0_146] : memref<4x8x8xbf16, #tpu.memory_space<vmem>>, vector<4x8x8xbf16>
      tpu.vector_store %arg38[%c0_144, %c0_145, %c0_146], %218 {strides = array<i32>} : memref<4x8x8xbf16, #tpu.memory_space<vmem>>, vector<4x8x8xbf16>,
    } else {
    }
    %c8_i32 = arith.constant 8 : i32
    %3 = arith.muli %arg1, %c8_i32 : i32
    %4 = tpu.assume_multiple %3, 8 : i32
    %c0 = arith.constant 0 : index
    %5 = arith.index_cast %4 : i32 to index
    %c0_1 = arith.constant 0 : index
    %6 = vector.load %arg2[%c0, %5, %c0_1] : memref<1x8x32xbf16, #tpu.memory_space<vmem>>, vector<1x8x32xbf16>
    %7 = vector.shape_cast %6 : vector<1x8x32xbf16> to vector<8x32xbf16>
    %c0_2 = arith.constant 0 : index
    %c0_3 = arith.constant 0 : index
    %c0_4 = arith.constant 0 : index
    %8 = vector.load %arg7[%c0_2, %c0_3, %c0_4] : memref<1x8x1xf32, #tpu.memory_space<vmem>>, vector<1x8x1xf32>
    %9 = vector.shape_cast %8 : vector<1x8x1xf32> to vector<8x1xf32>
    %c0_5 = arith.constant 0 : index
    %c0_6 = arith.constant 0 : index
    %10 = vector.load %arg4[%c0_5, %c0_6] : memref<8x8xf32, #tpu.memory_space<vmem>>, vector<8x8xf32>
    %c0_7 = arith.constant 0 : index
    %c0_8 = arith.constant 0 : index
    %c0_9 = arith.constant 0 : index
    %11 = vector.load %arg5[%c0_7, %c0_8, %c0_9] : memref<1x1x8xf32, #tpu.memory_space<vmem>>, vector<1x1x8xf32>
    %12 = vector.shape_cast %11 : vector<1x1x8xf32> to vector<1x8xf32>
    %13 = vector.broadcast %12 : vector<1x8xf32> to vector<8x8xf32>
    %14 = arith.addf %10, %13 : vector<8x8xf32>
    %c0_10 = arith.constant 0 : index
    %c0_11 = arith.constant 0 : index
    %c0_12 = arith.constant 0 : index
    %15 = vector.load %arg6[%c0_10, %c0_11, %c0_12] : memref<1x1x8xf32, #tpu.memory_space<vmem>>, vector<1x1x8xf32>
    %16 = vector.shape_cast %15 : vector<1x1x8xf32> to vector<1x8xf32>
    %17 = vector.shape_cast %16 : vector<1x8xf32> to vector<1x8xf32>
    %18 = vector.broadcast %17 : vector<1x8xf32> to vector<8x8xf32>
    %19 = arith.extf %7 : vector<8x32xbf16> to vector<8x32xf32>
    %20 = vector.shape_cast %7 : vector<8x32xbf16> to vector<1x8x32xbf16>
    %21 = vector.broadcast %20 : vector<1x8x32xbf16> to vector<4x8x32xbf16>
    %c0_13 = arith.constant 0 : index
    %c0_14 = arith.constant 0 : index
    %c0_15 = arith.constant 0 : index
    %22 = vector.load %arg8[%c0_13, %c0_14, %c0_15] : memref<4x32x8xbf16, #tpu.memory_space<vmem>>, vector<4x32x8xbf16>
    "tpu.trace_start"() <{level = 10 : i32, message = "hld,hdk->hlk"}> : () -> ()
    %cst = arith.constant dense<0.000000e+00> : vector<4x8x8xf32>
    %23 = tpu.matmul %21, %22, %cst {dimension_numbers = #tpu.dot_dimension_numbers<[2], [1], [1], [2], [0, 0, 0, 1, 1, 2], [0], [0]>} : vector<4x8x32xbf16>, vector<4x32x8xbf16>, vector<4x8x8xf32> -> vector<4x8x8xf32>
    "tpu.trace_stop"() : () -> ()
    %c0_16 = arith.constant 0 : index
    %c0_17 = arith.constant 0 : index
    %c0_18 = arith.constant 0 : index
    %24 = vector.load %arg9[%c0_16, %c0_17, %c0_18] : memref<4x1x8xf32, #tpu.memory_space<vmem>>, vector<4x1x8xf32>
    %25 = vector.broadcast %24 : vector<4x1x8xf32> to vector<4x8x8xf32>
    %26 = arith.addf %23, %25 : vector<4x8x8xf32>
    %27 = arith.truncf %26 : vector<4x8x8xf32> to vector<4x8x8xbf16>
    %c0_19 = arith.constant 0 : index
    %c0_20 = arith.constant 0 : index
    %c0_21 = arith.constant 0 : index
    %28 = vector.load %arg35[%c0_19, %c0_20, %c0_21] : memref<4x8x8xbf16, #tpu.memory_space<vmem>>, vector<4x8x8xbf16>
    "tpu.trace_start"() <{level = 10 : i32, message = "hqd,hkd->hqk"}> : () -> ()
    %cst_22 = arith.constant dense<0.000000e+00> : vector<4x8x8xf32>
    %29 = tpu.matmul %27, %28, %cst_22 {dimension_numbers = #tpu.dot_dimension_numbers<[2], [2], [1], [1], [0, 0, 0, 1, 1, 1], [0], [0]>} : vector<4x8x8xbf16>, vector<4x8x8xbf16>, vector<4x8x8xf32> -> vector<4x8x8xf32>
    "tpu.trace_stop"() : () -> ()
    %30 = vector.shape_cast %14 : vector<8x8xf32> to vector<1x8x8xf32>
    %31 = vector.broadcast %30 : vector<1x8x8xf32> to vector<4x8x8xf32>
    %32 = arith.addf %29, %31 : vector<4x8x8xf32>
    %cst_23 = arith.constant dense<0xFF800000> : vector<4x8xf32>
    %33 = vector.multi_reduction <maximumf>, %32, %cst_23 [2] : vector<4x8x8xf32> to vector<4x8xf32>
    %34 = vector.shape_cast %33 : vector<4x8xf32> to vector<4x8x1xf32>
    %35 = vector.broadcast %34 : vector<4x8x1xf32> to vector<4x8x8xf32>
    %36 = arith.subf %32, %35 : vector<4x8x8xf32>
    %37 = math.exp %36 : vector<4x8x8xf32>
    %cst_24 = arith.constant dense<0.000000e+00> : vector<4x8xf32>
    %38 = vector.multi_reduction <add>, %37, %cst_24 [2] : vector<4x8x8xf32> to vector<4x8xf32>
    %39 = vector.shape_cast %38 : vector<4x8xf32> to vector<4x8x1xf32>
    %40 = tpu.reciprocal %39 {approx = true} : vector<4x8x1xf32> -> vector<4x8x1xf32>
    %41 = vector.broadcast %40 : vector<4x8x1xf32> to vector<4x8x8xf32>
    %42 = arith.mulf %37, %41 : vector<4x8x8xf32>
    %43 = arith.truncf %42 : vector<4x8x8xf32> to vector<4x8x8xbf16>
    %c0_25 = arith.constant 0 : index
    %c0_26 = arith.constant 0 : index
    %c0_27 = arith.constant 0 : index
    %44 = vector.load %arg36[%c0_25, %c0_26, %c0_27] : memref<4x8x8xbf16, #tpu.memory_space<vmem>>, vector<4x8x8xbf16>
    "tpu.trace_start"() <{level = 10 : i32, message = "hqk,hkd->hqd"}> : () -> ()
    %cst_28 = arith.constant dense<0.000000e+00> : vector<4x8x8xf32>
    %45 = tpu.matmul %43, %44, %cst_28 {dimension_numbers = #tpu.dot_dimension_numbers<[2], [1], [1], [2], [0, 0, 0, 1, 1, 2], [0], [0]>} : vector<4x8x8xbf16>, vector<4x8x8xbf16>, vector<4x8x8xf32> -> vector<4x8x8xf32>
    "tpu.trace_stop"() : () -> ()
    %46 = arith.truncf %45 : vector<4x8x8xf32> to vector<4x8x8xbf16>
    %c0_29 = arith.constant 0 : index
    %c0_30 = arith.constant 0 : index
    %c0_31 = arith.constant 0 : index
    %47 = vector.load %arg14[%c0_29, %c0_30, %c0_31] : memref<4x8x32xbf16, #tpu.memory_space<vmem>>, vector<4x8x32xbf16>
    "tpu.trace_start"() <{level = 10 : i32, message = "hqv,hvd->hqd"}> : () -> ()
    %cst_32 = arith.constant dense<0.000000e+00> : vector<4x8x32xf32>
    %48 = tpu.matmul %46, %47, %cst_32 {dimension_numbers = #tpu.dot_dimension_numbers<[2], [1], [1], [2], [0, 0, 0, 1, 1, 2], [0], [0]>} : vector<4x8x8xbf16>, vector<4x8x32xbf16>, vector<4x8x32xf32> -> vector<4x8x32xf32>
    "tpu.trace_stop"() : () -> ()
    %cst_33 = arith.constant dense<0.000000e+00> : vector<8x32xf32>
    %49 = vector.multi_reduction <add>, %48, %cst_33 [0] : vector<4x8x32xf32> to vector<8x32xf32>
    %c0_34 = arith.constant 0 : index
    %c0_35 = arith.constant 0 : index
    %50 = vector.load %arg15[%c0_34, %c0_35] : memref<1x32xf32, #tpu.memory_space<vmem>>, vector<1x32xf32>
    %51 = vector.broadcast %50 : vector<1x32xf32> to vector<8x32xf32>
    %52 = arith.addf %49, %51 : vector<8x32xf32>
    %53 = arith.addf %52, %19 : vector<8x32xf32>
    %cst_36 = arith.constant dense<0.000000e+00> : vector<8xf32>
    %54 = vector.multi_reduction <add>, %53, %cst_36 [1] : vector<8x32xf32> to vector<8xf32>
    %55 = vector.shape_cast %54 : vector<8xf32> to vector<8x1xf32>
    %cst_37 = arith.constant 3.200000e+01 : f32
    %56 = vector.broadcast %cst_37 : f32 to vector<8x1xf32>
    %57 = arith.divf %55, %56 : vector<8x1xf32>
    %58 = vector.broadcast %57 : vector<8x1xf32> to vector<8x32xf32>
    %59 = arith.subf %53, %58 : vector<8x32xf32>
    %60 = arith.mulf %59, %59 : vector<8x32xf32>
    %cst_38 = arith.constant dense<0.000000e+00> : vector<8xf32>
    %61 = vector.multi_reduction <add>, %60, %cst_38 [1] : vector<8x32xf32> to vector<8xf32>
    %62 = vector.shape_cast %61 : vector<8xf32> to vector<8x1xf32>
    %cst_39 = arith.constant 3.200000e+01 : f32
    %63 = vector.broadcast %cst_39 : f32 to vector<8x1xf32>
    %64 = arith.divf %62, %63 : vector<8x1xf32>
    %cst_40 = arith.constant 9.99999974E-6 : f32
    %65 = vector.broadcast %cst_40 : f32 to vector<8x1xf32>
    %66 = arith.addf %64, %65 : vector<8x1xf32>
    %67 = math.rsqrt %66 : vector<8x1xf32>
    %68 = vector.broadcast %67 : vector<8x1xf32> to vector<8x32xf32>
    %69 = arith.mulf %59, %68 : vector<8x32xf32>
    %c0_41 = arith.constant 0 : index
    %c0_42 = arith.constant 0 : index
    %70 = vector.load %arg16[%c0_41, %c0_42] : memref<1x32xf32, #tpu.memory_space<vmem>>, vector<1x32xf32>
    %71 = vector.broadcast %70 : vector<1x32xf32> to vector<8x32xf32>
    %72 = arith.mulf %69, %71 : vector<8x32xf32>
    %c0_43 = arith.constant 0 : index
    %c0_44 = arith.constant 0 : index
    %73 = vector.load %arg17[%c0_43, %c0_44] : memref<1x32xf32, #tpu.memory_space<vmem>>, vector<1x32xf32>
    %74 = vector.broadcast %73 : vector<1x32xf32> to vector<8x32xf32>
    %75 = arith.addf %72, %74 : vector<8x32xf32>
    %76 = vector.broadcast %9 : vector<8x1xf32> to vector<8x32xf32>
    %77 = arith.mulf %75, %76 : vector<8x32xf32>
    %78 = arith.truncf %77 : vector<8x32xf32> to vector<8x32xbf16>
    %79 = vector.shape_cast %78 : vector<8x32xbf16> to vector<1x8x32xbf16>
    %80 = vector.broadcast %79 : vector<1x8x32xbf16> to vector<4x8x32xbf16>
    %c0_45 = arith.constant 0 : index
    %c0_46 = arith.constant 0 : index
    %c0_47 = arith.constant 0 : index
    %81 = vector.load %arg18[%c0_45, %c0_46, %c0_47] : memref<4x32x8xbf16, #tpu.memory_space<vmem>>, vector<4x32x8xbf16>
    "tpu.trace_start"() <{level = 10 : i32, message = "hld,hdk->hlk"}> : () -> ()
    %cst_48 = arith.constant dense<0.000000e+00> : vector<4x8x8xf32>
    %82 = tpu.matmul %80, %81, %cst_48 {dimension_numbers = #tpu.dot_dimension_numbers<[2], [1], [1], [2], [0, 0, 0, 1, 1, 2], [0], [0]>} : vector<4x8x32xbf16>, vector<4x32x8xbf16>, vector<4x8x8xf32> -> vector<4x8x8xf32>
    "tpu.trace_stop"() : () -> ()
    %c0_49 = arith.constant 0 : index
    %c0_50 = arith.constant 0 : index
    %c0_51 = arith.constant 0 : index
    %83 = vector.load %arg19[%c0_49, %c0_50, %c0_51] : memref<4x1x8xf32, #tpu.memory_space<vmem>>, vector<4x1x8xf32>
    %84 = vector.broadcast %83 : vector<4x1x8xf32> to vector<4x8x8xf32>
    %85 = arith.addf %82, %84 : vector<4x8x8xf32>
    %86 = arith.truncf %85 : vector<4x8x8xf32> to vector<4x8x8xbf16>
    %c0_52 = arith.constant 0 : index
    %c0_53 = arith.constant 0 : index
    %c0_54 = arith.constant 0 : index
    %87 = vector.load %arg37[%c0_52, %c0_53, %c0_54] : memref<4x8x8xbf16, #tpu.memory_space<vmem>>, vector<4x8x8xbf16>
    "tpu.trace_start"() <{level = 10 : i32, message = "hqd,hkd->hqk"}> : () -> ()
    %cst_55 = arith.constant dense<0.000000e+00> : vector<4x8x8xf32>
    %88 = tpu.matmul %86, %87, %cst_55 {dimension_numbers = #tpu.dot_dimension_numbers<[2], [2], [1], [1], [0, 0, 0, 1, 1, 1], [0], [0]>} : vector<4x8x8xbf16>, vector<4x8x8xbf16>, vector<4x8x8xf32> -> vector<4x8x8xf32>
    "tpu.trace_stop"() : () -> ()
    %89 = vector.shape_cast %18 : vector<8x8xf32> to vector<1x8x8xf32>
    %90 = vector.broadcast %89 : vector<1x8x8xf32> to vector<4x8x8xf32>
    %91 = arith.addf %88, %90 : vector<4x8x8xf32>
    %cst_56 = arith.constant dense<0xFF800000> : vector<4x8xf32>
    %92 = vector.multi_reduction <maximumf>, %91, %cst_56 [2] : vector<4x8x8xf32> to vector<4x8xf32>
    %93 = vector.shape_cast %92 : vector<4x8xf32> to vector<4x8x1xf32>
    %94 = vector.broadcast %93 : vector<4x8x1xf32> to vector<4x8x8xf32>
    %95 = arith.subf %91, %94 : vector<4x8x8xf32>
    %96 = math.exp %95 : vector<4x8x8xf32>
    %cst_57 = arith.constant dense<0.000000e+00> : vector<4x8xf32>
    %97 = vector.multi_reduction <add>, %96, %cst_57 [2] : vector<4x8x8xf32> to vector<4x8xf32>
    %98 = vector.shape_cast %97 : vector<4x8xf32> to vector<4x8x1xf32>
    %99 = tpu.reciprocal %98 {approx = true} : vector<4x8x1xf32> -> vector<4x8x1xf32>
    %100 = vector.broadcast %99 : vector<4x8x1xf32> to vector<4x8x8xf32>
    %101 = arith.mulf %96, %100 : vector<4x8x8xf32>
    %102 = arith.truncf %101 : vector<4x8x8xf32> to vector<4x8x8xbf16>
    %c0_58 = arith.constant 0 : index
    %c0_59 = arith.constant 0 : index
    %c0_60 = arith.constant 0 : index
    %103 = vector.load %arg38[%c0_58, %c0_59, %c0_60] : memref<4x8x8xbf16, #tpu.memory_space<vmem>>, vector<4x8x8xbf16>
    "tpu.trace_start"() <{level = 10 : i32, message = "hqk,hkd->hqd"}> : () -> ()
    %cst_61 = arith.constant dense<0.000000e+00> : vector<4x8x8xf32>
    %104 = tpu.matmul %102, %103, %cst_61 {dimension_numbers = #tpu.dot_dimension_numbers<[2], [1], [1], [2], [0, 0, 0, 1, 1, 2], [0], [0]>} : vector<4x8x8xbf16>, vector<4x8x8xbf16>, vector<4x8x8xf32> -> vector<4x8x8xf32>
    "tpu.trace_stop"() : () -> ()
    %105 = arith.truncf %104 : vector<4x8x8xf32> to vector<4x8x8xbf16>
    %c0_62 = arith.constant 0 : index
    %c0_63 = arith.constant 0 : index
    %c0_64 = arith.constant 0 : index
    %106 = vector.load %arg24[%c0_62, %c0_63, %c0_64] : memref<4x8x32xbf16, #tpu.memory_space<vmem>>, vector<4x8x32xbf16>
    "tpu.trace_start"() <{level = 10 : i32, message = "hqv,hvd->hqd"}> : () -> ()
    %cst_65 = arith.constant dense<0.000000e+00> : vector<4x8x32xf32>
    %107 = tpu.matmul %105, %106, %cst_65 {dimension_numbers = #tpu.dot_dimension_numbers<[2], [1], [1], [2], [0, 0, 0, 1, 1, 2], [0], [0]>} : vector<4x8x8xbf16>, vector<4x8x32xbf16>, vector<4x8x32xf32> -> vector<4x8x32xf32>
    "tpu.trace_stop"() : () -> ()
    %cst_66 = arith.constant dense<0.000000e+00> : vector<8x32xf32>
    %108 = vector.multi_reduction <add>, %107, %cst_66 [0] : vector<4x8x32xf32> to vector<8x32xf32>
    %c0_67 = arith.constant 0 : index
    %c0_68 = arith.constant 0 : index
    %109 = vector.load %arg25[%c0_67, %c0_68] : memref<1x32xf32, #tpu.memory_space<vmem>>, vector<1x32xf32>
    %110 = vector.broadcast %109 : vector<1x32xf32> to vector<8x32xf32>
    %111 = arith.addf %108, %110 : vector<8x32xf32>
    %112 = arith.addf %111, %77 : vector<8x32xf32>
    %cst_69 = arith.constant dense<0.000000e+00> : vector<8xf32>
    %113 = vector.multi_reduction <add>, %112, %cst_69 [1] : vector<8x32xf32> to vector<8xf32>
    %114 = vector.shape_cast %113 : vector<8xf32> to vector<8x1xf32>
    %cst_70 = arith.constant 3.200000e+01 : f32
    %115 = vector.broadcast %cst_70 : f32 to vector<8x1xf32>
    %116 = arith.divf %114, %115 : vector<8x1xf32>
    %117 = vector.broadcast %116 : vector<8x1xf32> to vector<8x32xf32>
    %118 = arith.subf %112, %117 : vector<8x32xf32>
    %119 = arith.mulf %118, %118 : vector<8x32xf32>
    %cst_71 = arith.constant dense<0.000000e+00> : vector<8xf32>
    %120 = vector.multi_reduction <add>, %119, %cst_71 [1] : vector<8x32xf32> to vector<8xf32>
    %121 = vector.shape_cast %120 : vector<8xf32> to vector<8x1xf32>
    %cst_72 = arith.constant 3.200000e+01 : f32
    %122 = vector.broadcast %cst_72 : f32 to vector<8x1xf32>
    %123 = arith.divf %121, %122 : vector<8x1xf32>
    %cst_73 = arith.constant 9.99999974E-6 : f32
    %124 = vector.broadcast %cst_73 : f32 to vector<8x1xf32>
    %125 = arith.addf %123, %124 : vector<8x1xf32>
    %126 = math.rsqrt %125 : vector<8x1xf32>
    %127 = vector.broadcast %126 : vector<8x1xf32> to vector<8x32xf32>
    %128 = arith.mulf %118, %127 : vector<8x32xf32>
    %c0_74 = arith.constant 0 : index
    %c0_75 = arith.constant 0 : index
    %129 = vector.load %arg26[%c0_74, %c0_75] : memref<1x32xf32, #tpu.memory_space<vmem>>, vector<1x32xf32>
    %130 = vector.broadcast %129 : vector<1x32xf32> to vector<8x32xf32>
    %131 = arith.mulf %128, %130 : vector<8x32xf32>
    %c0_76 = arith.constant 0 : index
    %c0_77 = arith.constant 0 : index
    %132 = vector.load %arg27[%c0_76, %c0_77] : memref<1x32xf32, #tpu.memory_space<vmem>>, vector<1x32xf32>
    %133 = vector.broadcast %132 : vector<1x32xf32> to vector<8x32xf32>
    %134 = arith.addf %131, %133 : vector<8x32xf32>
    %135 = vector.broadcast %9 : vector<8x1xf32> to vector<8x32xf32>
    %136 = arith.mulf %134, %135 : vector<8x32xf32>
    %137 = arith.truncf %136 : vector<8x32xf32> to vector<8x32xbf16>
    %c0_78 = arith.constant 0 : index
    %c0_79 = arith.constant 0 : index
    %138 = vector.load %arg28[%c0_78, %c0_79] : memref<32x64xbf16, #tpu.memory_space<vmem>>, vector<32x64xbf16>
    %cst_80 = arith.constant dense<0.000000e+00> : vector<8x64xf32>
    %139 = tpu.matmul %137, %138, %cst_80 {dimension_numbers = #tpu.dot_dimension_numbers<[1], [0], [0], [1], [0, 0, 1, 1], [], []>} : vector<8x32xbf16>, vector<32x64xbf16>, vector<8x64xf32> -> vector<8x64xf32>
    %c0_81 = arith.constant 0 : index
    %c0_82 = arith.constant 0 : index
    %140 = vector.load %arg29[%c0_81, %c0_82] : memref<1x64xf32, #tpu.memory_space<vmem>>, vector<1x64xf32>
    %141 = vector.broadcast %140 : vector<1x64xf32> to vector<8x64xf32>
    %142 = arith.addf %139, %141 : vector<8x64xf32>
    %cst_83 = arith.constant 0.000000e+00 : f32
    %143 = vector.broadcast %cst_83 : f32 to vector<8x64xf32>
    %144 = arith.maximumf %142, %143 : vector<8x64xf32>
    %145 = arith.truncf %144 : vector<8x64xf32> to vector<8x64xbf16>
    %c0_84 = arith.constant 0 : index
    %c0_85 = arith.constant 0 : index
    %146 = vector.load %arg30[%c0_84, %c0_85] : memref<64x32xbf16, #tpu.memory_space<vmem>>, vector<64x32xbf16>
    %cst_86 = arith.constant dense<0.000000e+00> : vector<8x32xf32>
    %147 = tpu.matmul %145, %146, %cst_86 {dimension_numbers = #tpu.dot_dimension_numbers<[1], [0], [0], [1], [0, 0, 1, 1], [], []>} : vector<8x64xbf16>, vector<64x32xbf16>, vector<8x32xf32> -> vector<8x32xf32>
    %c0_87 = arith.constant 0 : index
    %c0_88 = arith.constant 0 : index
    %148 = vector.load %arg31[%c0_87, %c0_88] : memref<1x32xf32, #tpu.memory_space<vmem>>, vector<1x32xf32>
    %149 = vector.broadcast %148 : vector<1x32xf32> to vector<8x32xf32>
    %150 = arith.addf %147, %149 : vector<8x32xf32>
    %151 = arith.addf %150, %136 : vector<8x32xf32>
    %cst_89 = arith.constant dense<0.000000e+00> : vector<8xf32>
    %152 = vector.multi_reduction <add>, %151, %cst_89 [1] : vector<8x32xf32> to vector<8xf32>
    %153 = vector.shape_cast %152 : vector<8xf32> to vector<8x1xf32>
    %cst_90 = arith.constant 3.200000e+01 : f32
    %154 = vector.broadcast %cst_90 : f32 to vector<8x1xf32>
    %155 = arith.divf %153, %154 : vector<8x1xf32>
    %156 = vector.broadcast %155 : vector<8x1xf32> to vector<8x32xf32>
    %157 = arith.subf %151, %156 : vector<8x32xf32>
    %158 = arith.mulf %157, %157 : vector<8x32xf32>
    %cst_91 = arith.constant dense<0.000000e+00> : vector<8xf32>
    %159 = vector.multi_reduction <add>, %158, %cst_91 [1] : vector<8x32xf32> to vector<8xf32>
    %160 = vector.shape_cast %159 : vector<8xf32> to vector<8x1xf32>
    %cst_92 = arith.constant 3.200000e+01 : f32
    %161 = vector.broadcast %cst_92 : f32 to vector<8x1xf32>
    %162 = arith.divf %160, %161 : vector<8x1xf32>
    %cst_93 = arith.constant 9.99999974E-6 : f32
    %163 = vector.broadcast %cst_93 : f32 to vector<8x1xf32>
    %164 = arith.addf %162, %163 : vector<8x1xf32>
    %165 = math.rsqrt %164 : vector<8x1xf32>
    %166 = vector.broadcast %165 : vector<8x1xf32> to vector<8x32xf32>
    %167 = arith.mulf %157, %166 : vector<8x32xf32>
    %c0_94 = arith.constant 0 : index
    %c0_95 = arith.constant 0 : index
    %168 = vector.load %arg32[%c0_94, %c0_95] : memref<1x32xf32, #tpu.memory_space<vmem>>, vector<1x32xf32>
    %169 = vector.broadcast %168 : vector<1x32xf32> to vector<8x32xf32>
    %170 = arith.mulf %167, %169 : vector<8x32xf32>
    %c0_96 = arith.constant 0 : index
    %c0_97 = arith.constant 0 : index
    %171 = vector.load %arg33[%c0_96, %c0_97] : memref<1x32xf32, #tpu.memory_space<vmem>>, vector<1x32xf32>
    %172 = vector.broadcast %171 : vector<1x32xf32> to vector<8x32xf32>
    %173 = arith.addf %170, %172 : vector<8x32xf32>
    %174 = vector.broadcast %9 : vector<8x1xf32> to vector<8x32xf32>
    %175 = arith.mulf %173, %174 : vector<8x32xf32>
    %176 = arith.truncf %175 : vector<8x32xf32> to vector<8x32xbf16>
    %c0_98 = arith.constant 0 : index
    %c0_99 = arith.constant 0 : index
    %c0_100 = arith.constant 0 : index
    %177 = vector.load %arg34[%c0_98, %c0_99, %c0_100] : memref<1x8x32xbf16, #tpu.memory_space<vmem>>, vector<1x8x32xbf16>
    %178 = vector.shape_cast %177 : vector<1x8x32xbf16> to vector<8x32xbf16>
    %179 = vector.shape_cast %176 : vector<8x32xbf16> to vector<1x8x32xbf16>
    tpu.vector_store %arg34[%c0_98, %c0_99, %c0_100], %179 {strides = array<i32>} : memref<1x8x32xbf16, #tpu.memory_space<vmem>>, vector<1x8x32xbf16>,
    return
  }
  func.func @transform_0(%arg0: i32, %arg1: i32) -> (i32, i32, i32) {
    %c0_i32 = arith.constant 0 : i32
    %c0_i32_0 = arith.constant 0 : i32
    %c0_i32_1 = arith.constant 0 : i32
    return %arg0, %c0_i32, %c0_i32_0 : i32, i32, i32
  }
  func.func @transform_1(%arg0: i32, %arg1: i32) -> (i32, i32, i32) {
    %c0_i32 = arith.constant 0 : i32
    %c0_i32_0 = arith.constant 0 : i32
    %c0_i32_1 = arith.constant 0 : i32
    return %arg0, %c0_i32, %c0_i32_0 : i32, i32, i32
  }
  func.func @transform_2(%arg0: i32, %arg1: i32) -> (i32, i32) {
    %c0_i32 = arith.constant 0 : i32
    %c0_i32_0 = arith.constant 0 : i32
    return %arg1, %c0_i32 : i32, i32
  }
  func.func @transform_3(%arg0: i32, %arg1: i32) -> (i32, i32, i32) {
    %c0_i32 = arith.constant 0 : i32
    %c0_i32_0 = arith.constant 0 : i32
    %c0_i32_1 = arith.constant 0 : i32
    return %arg0, %c0_i32, %c0_i32_0 : i32, i32, i32
  }
  func.func @transform_4(%arg0: i32, %arg1: i32) -> (i32, i32, i32) {
    %c0_i32 = arith.constant 0 : i32
    %c0_i32_0 = arith.constant 0 : i32
    %c0_i32_1 = arith.constant 0 : i32
    return %arg0, %c0_i32, %c0_i32_0 : i32, i32, i32
  }
  func.func @transform_5(%arg0: i32, %arg1: i32) -> (i32, i32, i32) {
    %c0_i32 = arith.constant 0 : i32
    %c0_i32_0 = arith.constant 0 : i32
    return %arg0, %arg1, %c0_i32 : i32, i32, i32
  }
  func.func @transform_6(%arg0: i32, %arg1: i32) -> (i32, i32, i32) {
    %c0_i32 = arith.constant 0 : i32
    %c0_i32_0 = arith.constant 0 : i32
    %c0_i32_1 = arith.constant 0 : i32
    %c0_i32_2 = arith.constant 0 : i32
    return %c0_i32, %c0_i32_0, %c0_i32_1 : i32, i32, i32
  }
  func.func @transform_7(%arg0: i32, %arg1: i32) -> (i32, i32, i32) {
    %c0_i32 = arith.constant 0 : i32
    %c0_i32_0 = arith.constant 0 : i32
    %c0_i32_1 = arith.constant 0 : i32
    %c0_i32_2 = arith.constant 0 : i32
    return %c0_i32, %c0_i32_0, %c0_i32_1 : i32, i32, i32
  }
  func.func @transform_8(%arg0: i32, %arg1: i32) -> (i32, i32, i32) {
    %c0_i32 = arith.constant 0 : i32
    %c0_i32_0 = arith.constant 0 : i32
    %c0_i32_1 = arith.constant 0 : i32
    %c0_i32_2 = arith.constant 0 : i32
    return %c0_i32, %c0_i32_0, %c0_i32_1 : i32, i32, i32
  }
  func.func @transform_9(%arg0: i32, %arg1: i32) -> (i32, i32, i32) {
    %c0_i32 = arith.constant 0 : i32
    %c0_i32_0 = arith.constant 0 : i32
    %c0_i32_1 = arith.constant 0 : i32
    %c0_i32_2 = arith.constant 0 : i32
    return %c0_i32, %c0_i32_0, %c0_i32_1 : i32, i32, i32
  }
  func.func @transform_10(%arg0: i32, %arg1: i32) -> (i32, i32, i32) {
    %c0_i32 = arith.constant 0 : i32
    %c0_i32_0 = arith.constant 0 : i32
    %c0_i32_1 = arith.constant 0 : i32
    %c0_i32_2 = arith.constant 0 : i32
    return %c0_i32, %c0_i32_0, %c0_i32_1 : i32, i32, i32
  }
  func.func @transform_11(%arg0: i32, %arg1: i32) -> (i32, i32, i32) {
    %c0_i32 = arith.constant 0 : i32
    %c0_i32_0 = arith.constant 0 : i32
    %c0_i32_1 = arith.constant 0 : i32
    %c0_i32_2 = arith.constant 0 : i32
    return %c0_i32, %c0_i32_0, %c0_i32_1 : i32, i32, i32
  }
  func.func @transform_12(%arg0: i32, %arg1: i32) -> (i32, i32, i32) {
    %c0_i32 = arith.constant 0 : i32
    %c0_i32_0 = arith.constant 0 : i32
    %c0_i32_1 = arith.constant 0 : i32
    %c0_i32_2 = arith.constant 0 : i32
    return %c0_i32, %c0_i32_0, %c0_i32_1 : i32, i32, i32
  }
  func.func @transform_13(%arg0: i32, %arg1: i32) -> (i32, i32) {
    %c0_i32 = arith.constant 0 : i32
    %c0_i32_0 = arith.constant 0 : i32
    %c0_i32_1 = arith.constant 0 : i32
    return %c0_i32, %c0_i32_0 : i32, i32
  }
  func.func @transform_14(%arg0: i32, %arg1: i32) -> (i32, i32) {
    %c0_i32 = arith.constant 0 : i32
    %c0_i32_0 = arith.constant 0 : i32
    %c0_i32_1 = arith.constant 0 : i32
    return %c0_i32, %c0_i32_0 : i32, i32
  }
  func.func @transform_15(%arg0: i32, %arg1: i32) -> (i32, i32) {
    %c0_i32 = arith.constant 0 : i32
    %c0_i32_0 = arith.constant 0 : i32
    %c0_i32_1 = arith.constant 0 : i32
    return %c0_i32, %c0_i32_0 : i32, i32
  }
  func.func @transform_16(%arg0: i32, %arg1: i32) -> (i32, i32, i32) {
    %c0_i32 = arith.constant 0 : i32
    %c0_i32_0 = arith.constant 0 : i32
    %c0_i32_1 = arith.constant 0 : i32
    %c0_i32_2 = arith.constant 0 : i32
    return %c0_i32, %c0_i32_0, %c0_i32_1 : i32, i32, i32
  }
  func.func @transform_17(%arg0: i32, %arg1: i32) -> (i32, i32, i32) {
    %c0_i32 = arith.constant 0 : i32
    %c0_i32_0 = arith.constant 0 : i32
    %c0_i32_1 = arith.constant 0 : i32
    %c0_i32_2 = arith.constant 0 : i32
    return %c0_i32, %c0_i32_0, %c0_i32_1 : i32, i32, i32
  }
  func.func @transform_18(%arg0: i32, %arg1: i32) -> (i32, i32, i32) {
    %c0_i32 = arith.constant 0 : i32
    %c0_i32_0 = arith.constant 0 : i32
    %c0_i32_1 = arith.constant 0 : i32
    %c0_i32_2 = arith.constant 0 : i32
    return %c0_i32, %c0_i32_0, %c0_i32_1 : i32, i32, i32
  }
  func.func @transform_19(%arg0: i32, %arg1: i32) -> (i32, i32, i32) {
    %c0_i32 = arith.constant 0 : i32
    %c0_i32_0 = arith.constant 0 : i32
    %c0_i32_1 = arith.constant 0 : i32
    %c0_i32_2 = arith.constant 0 : i32
    return %c0_i32, %c0_i32_0, %c0_i32_1 : i32, i32, i32
  }
  func.func @transform_20(%arg0: i32, %arg1: i32) -> (i32, i32, i32) {
    %c0_i32 = arith.constant 0 : i32
    %c0_i32_0 = arith.constant 0 : i32
    %c0_i32_1 = arith.constant 0 : i32
    %c0_i32_2 = arith.constant 0 : i32
    return %c0_i32, %c0_i32_0, %c0_i32_1 : i32, i32, i32
  }
  func.func @transform_21(%arg0: i32, %arg1: i32) -> (i32, i32, i32) {
    %c0_i32 = arith.constant 0 : i32
    %c0_i32_0 = arith.constant 0 : i32
    %c0_i32_1 = arith.constant 0 : i32
    %c0_i32_2 = arith.constant 0 : i32
    return %c0_i32, %c0_i32_0, %c0_i32_1 : i32, i32, i32
  }
  func.func @transform_22(%arg0: i32, %arg1: i32) -> (i32, i32, i32) {
    %c0_i32 = arith.constant 0 : i32
    %c0_i32_0 = arith.constant 0 : i32
    %c0_i32_1 = arith.constant 0 : i32
    %c0_i32_2 = arith.constant 0 : i32
    return %c0_i32, %c0_i32_0, %c0_i32_1 : i32, i32, i32
  }
  func.func @transform_23(%arg0: i32, %arg1: i32) -> (i32, i32) {
    %c0_i32 = arith.constant 0 : i32
    %c0_i32_0 = arith.constant 0 : i32
    %c0_i32_1 = arith.constant 0 : i32
    return %c0_i32, %c0_i32_0 : i32, i32
  }
  func.func @transform_24(%arg0: i32, %arg1: i32) -> (i32, i32) {
    %c0_i32 = arith.constant 0 : i32
    %c0_i32_0 = arith.constant 0 : i32
    %c0_i32_1 = arith.constant 0 : i32
    return %c0_i32, %c0_i32_0 : i32, i32
  }
  func.func @transform_25(%arg0: i32, %arg1: i32) -> (i32, i32) {
    %c0_i32 = arith.constant 0 : i32
    %c0_i32_0 = arith.constant 0 : i32
    %c0_i32_1 = arith.constant 0 : i32
    return %c0_i32, %c0_i32_0 : i32, i32
  }
  func.func @transform_26(%arg0: i32, %arg1: i32) -> (i32, i32) {
    %c0_i32 = arith.constant 0 : i32
    %c0_i32_0 = arith.constant 0 : i32
    %c0_i32_1 = arith.constant 0 : i32
    return %c0_i32, %c0_i32_0 : i32, i32
  }
  func.func @transform_27(%arg0: i32, %arg1: i32) -> (i32, i32) {
    %c0_i32 = arith.constant 0 : i32
    %c0_i32_0 = arith.constant 0 : i32
    %c0_i32_1 = arith.constant 0 : i32
    return %c0_i32, %c0_i32_0 : i32, i32
  }
  func.func @transform_28(%arg0: i32, %arg1: i32) -> (i32, i32) {
    %c0_i32 = arith.constant 0 : i32
    %c0_i32_0 = arith.constant 0 : i32
    %c0_i32_1 = arith.constant 0 : i32
    return %c0_i32, %c0_i32_0 : i32, i32
  }
  func.func @transform_29(%arg0: i32, %arg1: i32) -> (i32, i32) {
    %c0_i32 = arith.constant 0 : i32
    %c0_i32_0 = arith.constant 0 : i32
    %c0_i32_1 = arith.constant 0 : i32
    return %c0_i32, %c0_i32_0 : i32, i32
  }
  func.func @transform_30(%arg0: i32, %arg1: i32) -> (i32, i32) {
    %c0_i32 = arith.constant 0 : i32
    %c0_i32_0 = arith.constant 0 : i32
    %c0_i32_1 = arith.constant 0 : i32
    return %c0_i32, %c0_i32_0 : i32, i32
  }
  func.func @transform_31(%arg0: i32, %arg1: i32) -> (i32, i32) {
    %c0_i32 = arith.constant 0 : i32
    %c0_i32_0 = arith.constant 0 : i32
    %c0_i32_1 = arith.constant 0 : i32
    return %c0_i32, %c0_i32_0 : i32, i32
  }
  func.func @transform_32(%arg0: i32, %arg1: i32) -> (i32, i32, i32) {
    %c0_i32 = arith.constant 0 : i32
    %c0_i32_0 = arith.constant 0 : i32
    return %arg0, %arg1, %c0_i32 : i32, i32, i32
  }
}

</mosaic_0001>

<llo_original>
// kernel: decoder_forward.2
$region0: #{decoder_forward.2}
  #allocation0 [shape = 'u32[]', space=smem, size = 0x4, offset = 0x4, fixed_abs, tag = 'smem constant byte address 0x4 - core index']
  #allocation1 [shape = 'u32[72,128]{1,0:T(1,128)}', space=vmem, size = 0x9000, scoped, tag = 'internal scratch']
  #allocation2 [shape = 'bf16[4,8,8]{2,1,0:T(8,128)(2,1)}', space=vmem, size = 0x2000, scoped, tag = 'scratch operand']
  #allocation3 [shape = 'bf16[4,8,8]{2,1,0:T(8,128)(2,1)}', space=vmem, size = 0x2000, scoped, tag = 'scratch operand']
  #allocation4 [shape = 'bf16[4,8,8]{2,1,0:T(8,128)(2,1)}', space=vmem, size = 0x2000, scoped, tag = 'scratch operand']
  #allocation5 [shape = 'bf16[4,8,8]{2,1,0:T(8,128)(2,1)}', space=vmem, size = 0x2000, scoped, tag = 'scratch operand']
  %s0 = inlined_call_operand.smem [shape: u32[33], index: -1, kind: input, shape index: {}]
  %s1 = sld [smem:[%s0]]
  %s2 = scalar_lea.smem %s0, 1
  %s3 = sld [smem:[%s2]]
  %s4 = scalar_lea.smem %s0, 2
  %s5 = sld [smem:[%s4]]
  %s6 = scalar_lea.smem %s0, 3
  %s7 = sld [smem:[%s6]]
  %s8 = scalar_lea.smem %s0, 4
  %s9 = sld [smem:[%s8]]
  %s10 = scalar_lea.smem %s0, 5
  %s11 = sld [smem:[%s10]]
  %s12 = scalar_lea.smem %s0, 6
  %s13 = sld [smem:[%s12]]
  %s14 = scalar_lea.smem %s0, 7
  %s15 = sld [smem:[%s14]]
  %s16 = scalar_lea.smem %s0, 8
  %s17 = sld [smem:[%s16]]
  %s18 = scalar_lea.smem %s0, 9
  %s19 = sld [smem:[%s18]]
  %s20 = scalar_lea.smem %s0, 10
  %s21 = sld [smem:[%s20]]
  %s22 = scalar_lea.smem %s0, 11
  %s23 = sld [smem:[%s22]]
  %s24 = scalar_lea.smem %s0, 12
  %s25 = sld [smem:[%s24]]
  %s26 = scalar_lea.smem %s0, 13
  %s27 = sld [smem:[%s26]]
  %s28 = scalar_lea.smem %s0, 14
  %s29 = sld [smem:[%s28]]
  %s30 = scalar_lea.smem %s0, 15
  %s31 = sld [smem:[%s30]]
  %s32 = scalar_lea.smem %s0, 16
  %s33 = sld [smem:[%s32]]
  %s34 = scalar_lea.smem %s0, 17
  %s35 = sld [smem:[%s34]]
  %s36 = scalar_lea.smem %s0, 18
  %s37 = sld [smem:[%s36]]
  %s38 = scalar_lea.smem %s0, 19
  %s39 = sld [smem:[%s38]]
  %s40 = scalar_lea.smem %s0, 20
  %s41 = sld [smem:[%s40]]
  %s42 = scalar_lea.smem %s0, 21
  %s43 = sld [smem:[%s42]]
  %s44 = scalar_lea.smem %s0, 22
  %s45 = sld [smem:[%s44]]
  %s46 = scalar_lea.smem %s0, 23
  %s47 = sld [smem:[%s46]]
  %s48 = scalar_lea.smem %s0, 24
  %s49 = sld [smem:[%s48]]
  %s50 = scalar_lea.smem %s0, 25
  %s51 = sld [smem:[%s50]]
  %s52 = scalar_lea.smem %s0, 26
  %s53 = sld [smem:[%s52]]
  %s54 = scalar_lea.smem %s0, 27
  %s55 = sld [smem:[%s54]]
  %s56 = scalar_lea.smem %s0, 28
  %s57 = sld [smem:[%s56]]
  %s58 = scalar_lea.smem %s0, 29
  %s59 = sld [smem:[%s58]]
  %s60 = scalar_lea.smem %s0, 30
  %s61 = sld [smem:[%s60]]
  %s62 = scalar_lea.smem %s0, 31
  %s63 = sld [smem:[%s62]]
  %s64 = scalar_lea.smem %s0, 32
  %s65 = sld [smem:[%s64]]
  %s66 = sld [smem:[#allocation0]]
  $region165: #{decoder_forward.2} parent=0
    _
  %s68 = ssub.s32 1, %s66
  %s69 = scalar_select 0, %s68, %s66
  loop: start=0, step=1, limit=4
  $region2: #{decoder_forward.2} parent=0 // loop_pre_header
    _
  $region3: #{decoder_forward.2} parent=0 // loop_header
    %s71 = sphi 0, %s75
    %p72 = scmp.ge.s32.totalorder %s71, 4
    %s78 = sphi 0, %s90
    %s79 = sphi 0, %s86
    %s80 = sphi 0, %s78
    %s81 = sphi 0, %s79
    %s82 = sphi 0, %s80
    %s83 = sphi 0, %s81
    %s93 = sphi 0, %s95
    %s96 = sphi 0, %s93
    %s97 = sphi 0, %s96
    %s113 = sphi 0, %s97
    %s119 = sphi 0, %s121
    %s122 = sphi 0, %s119
    %s123 = sphi 0, %s122
    %s139 = sphi 0, %s123
    %s145 = sphi 0, %s147
    %s148 = sphi 0, %s145
    %s149 = sphi 0, %s148
    %s165 = sphi 0, %s149
    %s171 = sphi 0, %s173
    %s174 = sphi 0, %s171
    %s175 = sphi 0, %s174
    %s191 = sphi 0, %s175
    %s197 = sphi 0, %s199
    %s200 = sphi 0, %s197
    %s201 = sphi 0, %s200
    %s217 = sphi 0, %s201
    %s225 = sphi 0, %s227
    %s228 = sphi 0, %s225
    %s229 = sphi 0, %s228
    %s245 = sphi 0, %s229
    %s249 = sphi 0, %s249
    %s251 = sphi 0, %s249
    %s252 = sphi 0, %s251
    %s266 = sphi 0, %s252
    %s270 = sphi 0, %s270
    %s272 = sphi 0, %s270
    %s273 = sphi 0, %s272
    %s287 = sphi 0, %s273
    %s291 = sphi 0, %s291
    %s293 = sphi 0, %s291
    %s294 = sphi 0, %s293
    %s308 = sphi 0, %s294
    %s312 = sphi 0, %s312
    %s314 = sphi 0, %s312
    %s315 = sphi 0, %s314
    %s329 = sphi 0, %s315
    %s333 = sphi 0, %s333
    %s335 = sphi 0, %s333
    %s336 = sphi 0, %s335
    %s350 = sphi 0, %s336
    %s354 = sphi 0, %s354
    %s356 = sphi 0, %s354
    %s357 = sphi 0, %s356
    %s371 = sphi 0, %s357
    %s375 = sphi 0, %s375
    %s377 = sphi 0, %s375
    %s378 = sphi 0, %s377
    %s392 = sphi 0, %s378
    %s396 = sphi 0, %s396
    %s398 = sphi 0, %s396
    %s399 = sphi 0, %s398
    %s413 = sphi 0, %s399
    %s417 = sphi 0, %s417
    %s419 = sphi 0, %s417
    %s420 = sphi 0, %s419
    %s434 = sphi 0, %s420
    %s438 = sphi 0, %s438
    %s440 = sphi 0, %s438
    %s441 = sphi 0, %s440
    %s455 = sphi 0, %s441
    %s459 = sphi 0, %s459
    %s461 = sphi 0, %s459
    %s462 = sphi 0, %s461
    %s476 = sphi 0, %s462
    %s480 = sphi 0, %s480
    %s482 = sphi 0, %s480
    %s483 = sphi 0, %s482
    %s497 = sphi 0, %s483
    %s501 = sphi 0, %s501
    %s503 = sphi 0, %s501
    %s504 = sphi 0, %s503
    %s518 = sphi 0, %s504
    %s522 = sphi 0, %s522
    %s524 = sphi 0, %s522
    %s525 = sphi 0, %s524
    %s539 = sphi 0, %s525
    %s543 = sphi 0, %s543
    %s545 = sphi 0, %s543
    %s546 = sphi 0, %s545
    %s560 = sphi 0, %s546
    %s564 = sphi 0, %s564
    %s566 = sphi 0, %s564
    %s567 = sphi 0, %s566
    %s581 = sphi 0, %s567
    %s585 = sphi 0, %s585
    %s587 = sphi 0, %s585
    %s588 = sphi 0, %s587
    %s602 = sphi 0, %s588
    %s606 = sphi 0, %s606
    %s608 = sphi 0, %s606
    %s609 = sphi 0, %s608
    %s623 = sphi 0, %s609
    %s627 = sphi 0, %s627
    %s629 = sphi 0, %s627
    %s630 = sphi 0, %s629
    %s644 = sphi 0, %s630
    %s648 = sphi 0, %s648
    %s650 = sphi 0, %s648
    %s651 = sphi 0, %s650
    %s665 = sphi 0, %s651
    %s669 = sphi 0, %s669
    %s671 = sphi 0, %s669
    %s672 = sphi 0, %s671
    %s686 = sphi 0, %s672
    %s690 = sphi 0, %s690
    %s692 = sphi 0, %s690
    %s693 = sphi 0, %s692
    %s707 = sphi 0, %s693
    %s711 = sphi 0, %s711
    %s713 = sphi 0, %s711
    %s714 = sphi 0, %s713
    %s728 = sphi 0, %s714
    %s732 = sphi 0, %s732
    %s734 = sphi 0, %s732
    %s735 = sphi 0, %s734
    %s749 = sphi 0, %s735
    %s753 = sphi 0, %s753
    %s755 = sphi 0, %s753
    %s756 = sphi 0, %s755
    %s770 = sphi 0, %s756
    %s774 = sphi 0, %s774
    %s776 = sphi 0, %s774
    %s777 = sphi 0, %s776
    %s791 = sphi 0, %s777
    %s799 = sphi 0, %s801
    %s802 = sphi 0, %s799
    %s803 = sphi 0, %s802
    %s819 = sphi 0, %s803
  $region4: #{decoder_forward.2} parent=0 // loop_header_branch
    %74 = sbr.rel (%p72) target = $region8
  $region5: #{decoder_forward.2} parent=0 // loop_body
    %s76 = ssub.s32 %s71, 1
    %s77 = ssub.s32 %s71, 2
    %s84 = sadd.s32 1, %s79
    %p85 = scmp.ge.s32.totalorder %s84, 1
    %s86 = scalar_select %p85, 0, %s84
    %s87 = sadd.s32 1, %s78
    %s88 = scalar_select %p85, %s87, %s78
    %p89 = scmp.ge.s32.totalorder %s88, 2
    %s90 = scalar_select %p89, 0, %s88
    %s91 = ssub.s32 %s78, %s90
    %p92 = scmp.eq.s32.totalorder %s91, 0
    %s94 = sadd.s32 %s93, 1
    %s95 = scalar_select %p92, %s93, %s94
    %p98 = pneg %p92
    %p99 = scmp.eq.s32.totalorder %s71, 1
    %p100 = por %p98, %p99
    %p101 = scmp.ne.s32.totalorder %s93, %s96
    %p102 = scmp.eq.s32.totalorder %s71, 0
    %p103 = por %p101, %p102
    %p104 = scmp.ne.s32.totalorder %s93, %s96
    %p105 = scmp.eq.s32.totalorder %s76, 1
    %p106 = por %p104, %p105
    %p107 = scmp.ne.s32.totalorder %s96, %s97
    %p108 = scmp.eq.s32.totalorder %s76, 0
    %p109 = por %p107, %p108
    %p110 = scmp.ne.s32.totalorder %s96, %s97
    %p111 = scmp.eq.s32.totalorder %s77, 1
    %p112 = por %p110, %p111
    %p114 = scmp.ne.s32.totalorder %s97, %s113
    %p115 = scmp.eq.s32.totalorder %s77, 0
    %p116 = por %p114, %p115
    %s117 = ssub.s32 %s78, %s90
    %p118 = scmp.eq.s32.totalorder %s117, 0
    %s120 = sadd.s32 %s119, 1
    %s121 = scalar_select %p118, %s119, %s120
    %p124 = pneg %p118
    %p125 = scmp.eq.s32.totalorder %s71, 1
    %p126 = por %p124, %p125
    %p127 = scmp.ne.s32.totalorder %s119, %s122
    %p128 = scmp.eq.s32.totalorder %s71, 0
    %p129 = por %p127, %p128
    %p130 = scmp.ne.s32.totalorder %s119, %s122
    %p131 = scmp.eq.s32.totalorder %s76, 1
    %p132 = por %p130, %p131
    %p133 = scmp.ne.s32.totalorder %s122, %s123
    %p134 = scmp.eq.s32.totalorder %s76, 0
    %p135 = por %p133, %p134
    %p136 = scmp.ne.s32.totalorder %s122, %s123
    %p137 = scmp.eq.s32.totalorder %s77, 1
    %p138 = por %p136, %p137
    %p140 = scmp.ne.s32.totalorder %s123, %s139
    %p141 = scmp.eq.s32.totalorder %s77, 0
    %p142 = por %p140, %p141
    %s143 = ssub.s32 %s79, %s86
    %p144 = scmp.eq.s32.totalorder %s143, 0
    %s146 = sadd.s32 %s145, 1
    %s147 = scalar_select %p144, %s145, %s146
    %p150 = pneg %p144
    %p151 = scmp.eq.s32.totalorder %s71, 1
    %p152 = por %p150, %p151
    %p153 = scmp.ne.s32.totalorder %s145, %s148
    %p154 = scmp.eq.s32.totalorder %s71, 0
    %p155 = por %p153, %p154
    %p156 = scmp.ne.s32.totalorder %s145, %s148
    %p157 = scmp.eq.s32.totalorder %s76, 1
    %p158 = por %p156, %p157
    %p159 = scmp.ne.s32.totalorder %s148, %s149
    %p160 = scmp.eq.s32.totalorder %s76, 0
    %p161 = por %p159, %p160
    %p162 = scmp.ne.s32.totalorder %s148, %s149
    %p163 = scmp.eq.s32.totalorder %s77, 1
    %p164 = por %p162, %p163
    %p166 = scmp.ne.s32.totalorder %s149, %s165
    %p167 = scmp.eq.s32.totalorder %s77, 0
    %p168 = por %p166, %p167
    %s169 = ssub.s32 %s78, %s90
    %p170 = scmp.eq.s32.totalorder %s169, 0
    %s172 = sadd.s32 %s171, 1
    %s173 = scalar_select %p170, %s171, %s172
    %p176 = pneg %p170
    %p177 = scmp.eq.s32.totalorder %s71, 1
    %p178 = por %p176, %p177
    %p179 = scmp.ne.s32.totalorder %s171, %s174
    %p180 = scmp.eq.s32.totalorder %s71, 0
    %p181 = por %p179, %p180
    %p182 = scmp.ne.s32.totalorder %s171, %s174
    %p183 = scmp.eq.s32.totalorder %s76, 1
    %p184 = por %p182, %p183
    %p185 = scmp.ne.s32.totalorder %s174, %s175
    %p186 = scmp.eq.s32.totalorder %s76, 0
    %p187 = por %p185, %p186
    %p188 = scmp.ne.s32.totalorder %s174, %s175
    %p189 = scmp.eq.s32.totalorder %s77, 1
    %p190 = por %p188, %p189
    %p192 = scmp.ne.s32.totalorder %s175, %s191
    %p193 = scmp.eq.s32.totalorder %s77, 0
    %p194 = por %p192, %p193
    %s195 = ssub.s32 %s78, %s90
    %p196 = scmp.eq.s32.totalorder %s195, 0
    %s198 = sadd.s32 %s197, 1
    %s199 = scalar_select %p196, %s197, %s198
    %p202 = pneg %p196
    %p203 = scmp.eq.s32.totalorder %s71, 1
    %p204 = por %p202, %p203
    %p205 = scmp.ne.s32.totalorder %s197, %s200
    %p206 = scmp.eq.s32.totalorder %s71, 0
    %p207 = por %p205, %p206
    %p208 = scmp.ne.s32.totalorder %s197, %s200
    %p209 = scmp.eq.s32.totalorder %s76, 1
    %p210 = por %p208, %p209
    %p211 = scmp.ne.s32.totalorder %s200, %s201
    %p212 = scmp.eq.s32.totalorder %s76, 0
    %p213 = por %p211, %p212
    %p214 = scmp.ne.s32.totalorder %s200, %s201
    %p215 = scmp.eq.s32.totalorder %s77, 1
    %p216 = por %p214, %p215
    %p218 = scmp.ne.s32.totalorder %s201, %s217
    %p219 = scmp.eq.s32.totalorder %s77, 0
    %p220 = por %p218, %p219
    %s221 = ssub.s32 %s78, %s90
    %s222 = ssub.s32 %s79, %s86
    %s223 = sor.u32 %s221, %s222
    %p224 = scmp.eq.s32.totalorder %s223, 0
    %s226 = sadd.s32 %s225, 1
    %s227 = scalar_select %p224, %s225, %s226
    %p230 = pneg %p224
    %p231 = scmp.eq.s32.totalorder %s71, 1
    %p232 = por %p230, %p231
    %p233 = scmp.ne.s32.totalorder %s225, %s228
    %p234 = scmp.eq.s32.totalorder %s71, 0
    %p235 = por %p233, %p234
    %p236 = scmp.ne.s32.totalorder %s225, %s228
    %p237 = scmp.eq.s32.totalorder %s76, 1
    %p238 = por %p236, %p237
    %p239 = scmp.ne.s32.totalorder %s228, %s229
    %p240 = scmp.eq.s32.totalorder %s76, 0
    %p241 = por %p239, %p240
    %p242 = scmp.ne.s32.totalorder %s228, %s229
    %p243 = scmp.eq.s32.totalorder %s77, 1
    %p244 = por %p242, %p243
    %p246 = scmp.ne.s32.totalorder %s229, %s245
    %p247 = scmp.eq.s32.totalorder %s77, 0
    %p248 = por %p246, %p247
    %s250 = sadd.s32 %s249, 1
    %p253 = scmp.eq.s32.totalorder %s71, 1
    %p254 = scmp.ne.s32.totalorder %s249, %s251
    %p255 = scmp.eq.s32.totalorder %s71, 0
    %p256 = por %p254, %p255
    %p257 = scmp.ne.s32.totalorder %s249, %s251
    %p258 = scmp.eq.s32.totalorder %s76, 1
    %p259 = por %p257, %p258
    %p260 = scmp.ne.s32.totalorder %s251, %s252
    %p261 = scmp.eq.s32.totalorder %s76, 0
    %p262 = por %p260, %p261
    %p263 = scmp.ne.s32.totalorder %s251, %s252
    %p264 = scmp.eq.s32.totalorder %s77, 1
    %p265 = por %p263, %p264
    %p267 = scmp.ne.s32.totalorder %s252, %s266
    %p268 = scmp.eq.s32.totalorder %s77, 0
    %p269 = por %p267, %p268
    %s271 = sadd.s32 %s270, 1
    %p274 = scmp.eq.s32.totalorder %s71, 1
    %p275 = scmp.ne.s32.totalorder %s270, %s272
    %p276 = scmp.eq.s32.totalorder %s71, 0
    %p277 = por %p275, %p276
    %p278 = scmp.ne.s32.totalorder %s270, %s272
    %p279 = scmp.eq.s32.totalorder %s76, 1
    %p280 = por %p278, %p279
    %p281 = scmp.ne.s32.totalorder %s272, %s273
    %p282 = scmp.eq.s32.totalorder %s76, 0
    %p283 = por %p281, %p282
    %p284 = scmp.ne.s32.totalorder %s272, %s273
    %p285 = scmp.eq.s32.totalorder %s77, 1
    %p286 = por %p284, %p285
    %p288 = scmp.ne.s32.totalorder %s273, %s287
    %p289 = scmp.eq.s32.totalorder %s77, 0
    %p290 = por %p288, %p289
    %s292 = sadd.s32 %s291, 1
    %p295 = scmp.eq.s32.totalorder %s71, 1
    %p296 = scmp.ne.s32.totalorder %s291, %s293
    %p297 = scmp.eq.s32.totalorder %s71, 0
    %p298 = por %p296, %p297
    %p299 = scmp.ne.s32.totalorder %s291, %s293
    %p300 = scmp.eq.s32.totalorder %s76, 1
    %p301 = por %p299, %p300
    %p302 = scmp.ne.s32.totalorder %s293, %s294
    %p303 = scmp.eq.s32.totalorder %s76, 0
    %p304 = por %p302, %p303
    %p305 = scmp.ne.s32.totalorder %s293, %s294
    %p306 = scmp.eq.s32.totalorder %s77, 1
    %p307 = por %p305, %p306
    %p309 = scmp.ne.s32.totalorder %s294, %s308
    %p310 = scmp.eq.s32.totalorder %s77, 0
    %p311 = por %p309, %p310
    %s313 = sadd.s32 %s312, 1
    %p316 = scmp.eq.s32.totalorder %s71, 1
    %p317 = scmp.ne.s32.totalorder %s312, %s314
    %p318 = scmp.eq.s32.totalorder %s71, 0
    %p319 = por %p317, %p318
    %p320 = scmp.ne.s32.totalorder %s312, %s314
    %p321 = scmp.eq.s32.totalorder %s76, 1
    %p322 = por %p320, %p321
    %p323 = scmp.ne.s32.totalorder %s314, %s315
    %p324 = scmp.eq.s32.totalorder %s76, 0
    %p325 = por %p323, %p324
    %p326 = scmp.ne.s32.totalorder %s314, %s315
    %p327 = scmp.eq.s32.totalorder %s77, 1
    %p328 = por %p326, %p327
    %p330 = scmp.ne.s32.totalorder %s315, %s329
    %p331 = scmp.eq.s32.totalorder %s77, 0
    %p332 = por %p330, %p331
    %s334 = sadd.s32 %s333, 1
    %p337 = scmp.eq.s32.totalorder %s71, 1
    %p338 = scmp.ne.s32.totalorder %s333, %s335
    %p339 = scmp.eq.s32.totalorder %s71, 0
    %p340 = por %p338, %p339
    %p341 = scmp.ne.s32.totalorder %s333, %s335
    %p342 = scmp.eq.s32.totalorder %s76, 1
    %p343 = por %p341, %p342
    %p344 = scmp.ne.s32.totalorder %s335, %s336
    %p345 = scmp.eq.s32.totalorder %s76, 0
    %p346 = por %p344, %p345
    %p347 = scmp.ne.s32.totalorder %s335, %s336
    %p348 = scmp.eq.s32.totalorder %s77, 1
    %p349 = por %p347, %p348
    %p351 = scmp.ne.s32.totalorder %s336, %s350
    %p352 = scmp.eq.s32.totalorder %s77, 0
    %p353 = por %p351, %p352
    %s355 = sadd.s32 %s354, 1
    %p358 = scmp.eq.s32.totalorder %s71, 1
    %p359 = scmp.ne.s32.totalorder %s354, %s356
    %p360 = scmp.eq.s32.totalorder %s71, 0
    %p361 = por %p359, %p360
    %p362 = scmp.ne.s32.totalorder %s354, %s356
    %p363 = scmp.eq.s32.totalorder %s76, 1
    %p364 = por %p362, %p363
    %p365 = scmp.ne.s32.totalorder %s356, %s357
    %p366 = scmp.eq.s32.totalorder %s76, 0
    %p367 = por %p365, %p366
    %p368 = scmp.ne.s32.totalorder %s356, %s357
    %p369 = scmp.eq.s32.totalorder %s77, 1
    %p370 = por %p368, %p369
    %p372 = scmp.ne.s32.totalorder %s357, %s371
    %p373 = scmp.eq.s32.totalorder %s77, 0
    %p374 = por %p372, %p373
    %s376 = sadd.s32 %s375, 1
    %p379 = scmp.eq.s32.totalorder %s71, 1
    %p380 = scmp.ne.s32.totalorder %s375, %s377
    %p381 = scmp.eq.s32.totalorder %s71, 0
    %p382 = por %p380, %p381
    %p383 = scmp.ne.s32.totalorder %s375, %s377
    %p384 = scmp.eq.s32.totalorder %s76, 1
    %p385 = por %p383, %p384
    %p386 = scmp.ne.s32.totalorder %s377, %s378
    %p387 = scmp.eq.s32.totalorder %s76, 0
    %p388 = por %p386, %p387
    %p389 = scmp.ne.s32.totalorder %s377, %s378
    %p390 = scmp.eq.s32.totalorder %s77, 1
    %p391 = por %p389, %p390
    %p393 = scmp.ne.s32.totalorder %s378, %s392
    %p394 = scmp.eq.s32.totalorder %s77, 0
    %p395 = por %p393, %p394
    %s397 = sadd.s32 %s396, 1
    %p400 = scmp.eq.s32.totalorder %s71, 1
    %p401 = scmp.ne.s32.totalorder %s396, %s398
    %p402 = scmp.eq.s32.totalorder %s71, 0
    %p403 = por %p401, %p402
    %p404 = scmp.ne.s32.totalorder %s396, %s398
    %p405 = scmp.eq.s32.totalorder %s76, 1
    %p406 = por %p404, %p405
    %p407 = scmp.ne.s32.totalorder %s398, %s399
    %p408 = scmp.eq.s32.totalorder %s76, 0
    %p409 = por %p407, %p408
    %p410 = scmp.ne.s32.totalorder %s398, %s399
    %p411 = scmp.eq.s32.totalorder %s77, 1
    %p412 = por %p410, %p411
    %p414 = scmp.ne.s32.totalorder %s399, %s413
    %p415 = scmp.eq.s32.totalorder %s77, 0
    %p416 = por %p414, %p415
    %s418 = sadd.s32 %s417, 1
    %p421 = scmp.eq.s32.totalorder %s71, 1
    %p422 = scmp.ne.s32.totalorder %s417, %s419
    %p423 = scmp.eq.s32.totalorder %s71, 0
    %p424 = por %p422, %p423
    %p425 = scmp.ne.s32.totalorder %s417, %s419
    %p426 = scmp.eq.s32.totalorder %s76, 1
    %p427 = por %p425, %p426
    %p428 = scmp.ne.s32.totalorder %s419, %s420
    %p429 = scmp.eq.s32.totalorder %s76, 0
    %p430 = por %p428, %p429
    %p431 = scmp.ne.s32.totalorder %s419, %s420
    %p432 = scmp.eq.s32.totalorder %s77, 1
    %p433 = por %p431, %p432
    %p435 = scmp.ne.s32.totalorder %s420, %s434
    %p436 = scmp.eq.s32.totalorder %s77, 0
    %p437 = por %p435, %p436
    %s439 = sadd.s32 %s438, 1
    %p442 = scmp.eq.s32.totalorder %s71, 1
    %p443 = scmp.ne.s32.totalorder %s438, %s440
    %p444 = scmp.eq.s32.totalorder %s71, 0
    %p445 = por %p443, %p444
    %p446 = scmp.ne.s32.totalorder %s438, %s440
    %p447 = scmp.eq.s32.totalorder %s76, 1
    %p448 = por %p446, %p447
    %p449 = scmp.ne.s32.totalorder %s440, %s441
    %p450 = scmp.eq.s32.totalorder %s76, 0
    %p451 = por %p449, %p450
    %p452 = scmp.ne.s32.totalorder %s440, %s441
    %p453 = scmp.eq.s32.totalorder %s77, 1
    %p454 = por %p452, %p453
    %p456 = scmp.ne.s32.totalorder %s441, %s455
    %p457 = scmp.eq.s32.totalorder %s77, 0
    %p458 = por %p456, %p457
    %s460 = sadd.s32 %s459, 1
    %p463 = scmp.eq.s32.totalorder %s71, 1
    %p464 = scmp.ne.s32.totalorder %s459, %s461
    %p465 = scmp.eq.s32.totalorder %s71, 0
    %p466 = por %p464, %p465
    %p467 = scmp.ne.s32.totalorder %s459, %s461
    %p468 = scmp.eq.s32.totalorder %s76, 1
    %p469 = por %p467, %p468
    %p470 = scmp.ne.s32.totalorder %s461, %s462
    %p471 = scmp.eq.s32.totalorder %s76, 0
    %p472 = por %p470, %p471
    %p473 = scmp.ne.s32.totalorder %s461, %s462
    %p474 = scmp.eq.s32.totalorder %s77, 1
    %p475 = por %p473, %p474
    %p477 = scmp.ne.s32.totalorder %s462, %s476
    %p478 = scmp.eq.s32.totalorder %s77, 0
    %p479 = por %p477, %p478
    %s481 = sadd.s32 %s480, 1
    %p484 = scmp.eq.s32.totalorder %s71, 1
    %p485 = scmp.ne.s32.totalorder %s480, %s482
    %p486 = scmp.eq.s32.totalorder %s71, 0
    %p487 = por %p485, %p486
    %p488 = scmp.ne.s32.totalorder %s480, %s482
    %p489 = scmp.eq.s32.totalorder %s76, 1
    %p490 = por %p488, %p489
    %p491 = scmp.ne.s32.totalorder %s482, %s483
    %p492 = scmp.eq.s32.totalorder %s76, 0
    %p493 = por %p491, %p492
    %p494 = scmp.ne.s32.totalorder %s482, %s483
    %p495 = scmp.eq.s32.totalorder %s77, 1
    %p496 = por %p494, %p495
    %p498 = scmp.ne.s32.totalorder %s483, %s497
    %p499 = scmp.eq.s32.totalorder %s77, 0
    %p500 = por %p498, %p499
    %s502 = sadd.s32 %s501, 1
    %p505 = scmp.eq.s32.totalorder %s71, 1
    %p506 = scmp.ne.s32.totalorder %s501, %s503
    %p507 = scmp.eq.s32.totalorder %s71, 0
    %p508 = por %p506, %p507
    %p509 = scmp.ne.s32.totalorder %s501, %s503
    %p510 = scmp.eq.s32.totalorder %s76, 1
    %p511 = por %p509, %p510
    %p512 = scmp.ne.s32.totalorder %s503, %s504
    %p513 = scmp.eq.s32.totalorder %s76, 0
    %p514 = por %p512, %p513
    %p515 = scmp.ne.s32.totalorder %s503, %s504
    %p516 = scmp.eq.s32.totalorder %s77, 1
    %p517 = por %p515, %p516
    %p519 = scmp.ne.s32.totalorder %s504, %s518
    %p520 = scmp.eq.s32.totalorder %s77, 0
    %p521 = por %p519, %p520
    %s523 = sadd.s32 %s522, 1
    %p526 = scmp.eq.s32.totalorder %s71, 1
    %p527 = scmp.ne.s32.totalorder %s522, %s524
    %p528 = scmp.eq.s32.totalorder %s71, 0
    %p529 = por %p527, %p528
    %p530 = scmp.ne.s32.totalorder %s522, %s524
    %p531 = scmp.eq.s32.totalorder %s76, 1
    %p532 = por %p530, %p531
    %p533 = scmp.ne.s32.totalorder %s524, %s525
    %p534 = scmp.eq.s32.totalorder %s76, 0
    %p535 = por %p533, %p534
    %p536 = scmp.ne.s32.totalorder %s524, %s525
    %p537 = scmp.eq.s32.totalorder %s77, 1
    %p538 = por %p536, %p537
    %p540 = scmp.ne.s32.totalorder %s525, %s539
    %p541 = scmp.eq.s32.totalorder %s77, 0
    %p542 = por %p540, %p541
    %s544 = sadd.s32 %s543, 1
    %p547 = scmp.eq.s32.totalorder %s71, 1
    %p548 = scmp.ne.s32.totalorder %s543, %s545
    %p549 = scmp.eq.s32.totalorder %s71, 0
    %p550 = por %p548, %p549
    %p551 = scmp.ne.s32.totalorder %s543, %s545
    %p552 = scmp.eq.s32.totalorder %s76, 1
    %p553 = por %p551, %p552
    %p554 = scmp.ne.s32.totalorder %s545, %s546
    %p555 = scmp.eq.s32.totalorder %s76, 0
    %p556 = por %p554, %p555
    %p557 = scmp.ne.s32.totalorder %s545, %s546
    %p558 = scmp.eq.s32.totalorder %s77, 1
    %p559 = por %p557, %p558
    %p561 = scmp.ne.s32.totalorder %s546, %s560
    %p562 = scmp.eq.s32.totalorder %s77, 0
    %p563 = por %p561, %p562
    %s565 = sadd.s32 %s564, 1
    %p568 = scmp.eq.s32.totalorder %s71, 1
    %p569 = scmp.ne.s32.totalorder %s564, %s566
    %p570 = scmp.eq.s32.totalorder %s71, 0
    %p571 = por %p569, %p570
    %p572 = scmp.ne.s32.totalorder %s564, %s566
    %p573 = scmp.eq.s32.totalorder %s76, 1
    %p574 = por %p572, %p573
    %p575 = scmp.ne.s32.totalorder %s566, %s567
    %p576 = scmp.eq.s32.totalorder %s76, 0
    %p577 = por %p575, %p576
    %p578 = scmp.ne.s32.totalorder %s566, %s567
    %p579 = scmp.eq.s32.totalorder %s77, 1
    %p580 = por %p578, %p579
    %p582 = scmp.ne.s32.totalorder %s567, %s581
    %p583 = scmp.eq.s32.totalorder %s77, 0
    %p584 = por %p582, %p583
    %s586 = sadd.s32 %s585, 1
    %p589 = scmp.eq.s32.totalorder %s71, 1
    %p590 = scmp.ne.s32.totalorder %s585, %s587
    %p591 = scmp.eq.s32.totalorder %s71, 0
    %p592 = por %p590, %p591
    %p593 = scmp.ne.s32.totalorder %s585, %s587
    %p594 = scmp.eq.s32.totalorder %s76, 1
    %p595 = por %p593, %p594
    %p596 = scmp.ne.s32.totalorder %s587, %s588
    %p597 = scmp.eq.s32.totalorder %s76, 0
    %p598 = por %p596, %p597
    %p599 = scmp.ne.s32.totalorder %s587, %s588
    %p600 = scmp.eq.s32.totalorder %s77, 1
    %p601 = por %p599, %p600
    %p603 = scmp.ne.s32.totalorder %s588, %s602
    %p604 = scmp.eq.s32.totalorder %s77, 0
    %p605 = por %p603, %p604
    %s607 = sadd.s32 %s606, 1
    %p610 = scmp.eq.s32.totalorder %s71, 1
    %p611 = scmp.ne.s32.totalorder %s606, %s608
    %p612 = scmp.eq.s32.totalorder %s71, 0
    %p613 = por %p611, %p612
    %p614 = scmp.ne.s32.totalorder %s606, %s608
    %p615 = scmp.eq.s32.totalorder %s76, 1
    %p616 = por %p614, %p615
    %p617 = scmp.ne.s32.totalorder %s608, %s609
    %p618 = scmp.eq.s32.totalorder %s76, 0
    %p619 = por %p617, %p618
    %p620 = scmp.ne.s32.totalorder %s608, %s609
    %p621 = scmp.eq.s32.totalorder %s77, 1
    %p622 = por %p620, %p621
    %p624 = scmp.ne.s32.totalorder %s609, %s623
    %p625 = scmp.eq.s32.totalorder %s77, 0
    %p626 = por %p624, %p625
    %s628 = sadd.s32 %s627, 1
    %p631 = scmp.eq.s32.totalorder %s71, 1
    %p632 = scmp.ne.s32.totalorder %s627, %s629
    %p633 = scmp.eq.s32.totalorder %s71, 0
    %p634 = por %p632, %p633
    %p635 = scmp.ne.s32.totalorder %s627, %s629
    %p636 = scmp.eq.s32.totalorder %s76, 1
    %p637 = por %p635, %p636
    %p638 = scmp.ne.s32.totalorder %s629, %s630
    %p639 = scmp.eq.s32.totalorder %s76, 0
    %p640 = por %p638, %p639
    %p641 = scmp.ne.s32.totalorder %s629, %s630
    %p642 = scmp.eq.s32.totalorder %s77, 1
    %p643 = por %p641, %p642
    %p645 = scmp.ne.s32.totalorder %s630, %s644
    %p646 = scmp.eq.s32.totalorder %s77, 0
    %p647 = por %p645, %p646
    %s649 = sadd.s32 %s648, 1
    %p652 = scmp.eq.s32.totalorder %s71, 1
    %p653 = scmp.ne.s32.totalorder %s648, %s650
    %p654 = scmp.eq.s32.totalorder %s71, 0
    %p655 = por %p653, %p654
    %p656 = scmp.ne.s32.totalorder %s648, %s650
    %p657 = scmp.eq.s32.totalorder %s76, 1
    %p658 = por %p656, %p657
    %p659 = scmp.ne.s32.totalorder %s650, %s651
    %p660 = scmp.eq.s32.totalorder %s76, 0
    %p661 = por %p659, %p660
    %p662 = scmp.ne.s32.totalorder %s650, %s651
    %p663 = scmp.eq.s32.totalorder %s77, 1
    %p664 = por %p662, %p663
    %p666 = scmp.ne.s32.totalorder %s651, %s665
    %p667 = scmp.eq.s32.totalorder %s77, 0
    %p668 = por %p666, %p667
    %s670 = sadd.s32 %s669, 1
    %p673 = scmp.eq.s32.totalorder %s71, 1
    %p674 = scmp.ne.s32.totalorder %s669, %s671
    %p675 = scmp.eq.s32.totalorder %s71, 0
    %p676 = por %p674, %p675
    %p677 = scmp.ne.s32.totalorder %s669, %s671
    %p678 = scmp.eq.s32.totalorder %s76, 1
    %p679 = por %p677, %p678
    %p680 = scmp.ne.s32.totalorder %s671, %s672
    %p681 = scmp.eq.s32.totalorder %s76, 0
    %p682 = por %p680, %p681
    %p683 = scmp.ne.s32.totalorder %s671, %s672
    %p684 = scmp.eq.s32.totalorder %s77, 1
    %p685 = por %p683, %p684
    %p687 = scmp.ne.s32.totalorder %s672, %s686
    %p688 = scmp.eq.s32.totalorder %s77, 0
    %p689 = por %p687, %p688
    %s691 = sadd.s32 %s690, 1
    %p694 = scmp.eq.s32.totalorder %s71, 1
    %p695 = scmp.ne.s32.totalorder %s690, %s692
    %p696 = scmp.eq.s32.totalorder %s71, 0
    %p697 = por %p695, %p696
    %p698 = scmp.ne.s32.totalorder %s690, %s692
    %p699 = scmp.eq.s32.totalorder %s76, 1
    %p700 = por %p698, %p699
    %p701 = scmp.ne.s32.totalorder %s692, %s693
    %p702 = scmp.eq.s32.totalorder %s76, 0
    %p703 = por %p701, %p702
    %p704 = scmp.ne.s32.totalorder %s692, %s693
    %p705 = scmp.eq.s32.totalorder %s77, 1
    %p706 = por %p704, %p705
    %p708 = scmp.ne.s32.totalorder %s693, %s707
    %p709 = scmp.eq.s32.totalorder %s77, 0
    %p710 = por %p708, %p709
    %s712 = sadd.s32 %s711, 1
    %p715 = scmp.eq.s32.totalorder %s71, 1
    %p716 = scmp.ne.s32.totalorder %s711, %s713
    %p717 = scmp.eq.s32.totalorder %s71, 0
    %p718 = por %p716, %p717
    %p719 = scmp.ne.s32.totalorder %s711, %s713
    %p720 = scmp.eq.s32.totalorder %s76, 1
    %p721 = por %p719, %p720
    %p722 = scmp.ne.s32.totalorder %s713, %s714
    %p723 = scmp.eq.s32.totalorder %s76, 0
    %p724 = por %p722, %p723
    %p725 = scmp.ne.s32.totalorder %s713, %s714
    %p726 = scmp.eq.s32.totalorder %s77, 1
    %p727 = por %p725, %p726
    %p729 = scmp.ne.s32.totalorder %s714, %s728
    %p730 = scmp.eq.s32.totalorder %s77, 0
    %p731 = por %p729, %p730
    %s733 = sadd.s32 %s732, 1
    %p736 = scmp.eq.s32.totalorder %s71, 1
    %p737 = scmp.ne.s32.totalorder %s732, %s734
    %p738 = scmp.eq.s32.totalorder %s71, 0
    %p739 = por %p737, %p738
    %p740 = scmp.ne.s32.totalorder %s732, %s734
    %p741 = scmp.eq.s32.totalorder %s76, 1
    %p742 = por %p740, %p741
    %p743 = scmp.ne.s32.totalorder %s734, %s735
    %p744 = scmp.eq.s32.totalorder %s76, 0
    %p745 = por %p743, %p744
    %p746 = scmp.ne.s32.totalorder %s734, %s735
    %p747 = scmp.eq.s32.totalorder %s77, 1
    %p748 = por %p746, %p747
    %p750 = scmp.ne.s32.totalorder %s735, %s749
    %p751 = scmp.eq.s32.totalorder %s77, 0
    %p752 = por %p750, %p751
    %s754 = sadd.s32 %s753, 1
    %p757 = scmp.eq.s32.totalorder %s71, 1
    %p758 = scmp.ne.s32.totalorder %s753, %s755
    %p759 = scmp.eq.s32.totalorder %s71, 0
    %p760 = por %p758, %p759
    %p761 = scmp.ne.s32.totalorder %s753, %s755
    %p762 = scmp.eq.s32.totalorder %s76, 1
    %p763 = por %p761, %p762
    %p764 = scmp.ne.s32.totalorder %s755, %s756
    %p765 = scmp.eq.s32.totalorder %s76, 0
    %p766 = por %p764, %p765
    %p767 = scmp.ne.s32.totalorder %s755, %s756
    %p768 = scmp.eq.s32.totalorder %s77, 1
    %p769 = por %p767, %p768
    %p771 = scmp.ne.s32.totalorder %s756, %s770
    %p772 = scmp.eq.s32.totalorder %s77, 0
    %p773 = por %p771, %p772
    %s775 = sadd.s32 %s774, 1
    %p778 = scmp.eq.s32.totalorder %s71, 1
    %p779 = scmp.ne.s32.totalorder %s774, %s776
    %p780 = scmp.eq.s32.totalorder %s71, 0
    %p781 = por %p779, %p780
    %p782 = scmp.ne.s32.totalorder %s774, %s776
    %p783 = scmp.eq.s32.totalorder %s76, 1
    %p784 = por %p782, %p783
    %p785 = scmp.ne.s32.totalorder %s776, %s777
    %p786 = scmp.eq.s32.totalorder %s76, 0
    %p787 = por %p785, %p786
    %p788 = scmp.ne.s32.totalorder %s776, %s777
    %p789 = scmp.eq.s32.totalorder %s77, 1
    %p790 = por %p788, %p789
    %p792 = scmp.ne.s32.totalorder %s777, %s791
    %p793 = scmp.eq.s32.totalorder %s77, 0
    %p794 = por %p792, %p793
    %s795 = ssub.s32 %s78, %s90
    %s796 = ssub.s32 %s79, %s86
    %s797 = sor.u32 %s795, %s796
    %p798 = scmp.eq.s32.totalorder %s797, 0
    %s800 = sadd.s32 %s799, 1
    %s801 = scalar_select %p798, %s799, %s800
    %p804 = pneg %p798
    %p805 = scmp.eq.s32.totalorder %s71, 1
    %p806 = por %p804, %p805
    %p807 = scmp.ne.s32.totalorder %s799, %s802
    %p808 = scmp.eq.s32.totalorder %s71, 0
    %p809 = por %p807, %p808
    %p810 = scmp.ne.s32.totalorder %s799, %s802
    %p811 = scmp.eq.s32.totalorder %s76, 1
    %p812 = por %p810, %p811
    %p813 = scmp.ne.s32.totalorder %s802, %s803
    %p814 = scmp.eq.s32.totalorder %s76, 0
    %p815 = por %p813, %p814
    %p816 = scmp.ne.s32.totalorder %s802, %s803
    %p817 = scmp.eq.s32.totalorder %s77, 1
    %p818 = por %p816, %p817
    %p820 = scmp.ne.s32.totalorder %s803, %s819
    %p821 = scmp.eq.s32.totalorder %s77, 0
    %p822 = por %p820, %p821
    %p823 = scmp.le.s32.totalorder 1, %s71
    %p824 = scmp.lt.s32.totalorder %s71, 3
    %p825 = pnand %p823, %p824
    %p826 = pneg %p825
    // Predicated region
    $region9: #{decoder_forward.2} parent=5 // pred_check
      _
    $region10: #{decoder_forward.2} parent=5 // pred_check_branch
      %828 = sbr.rel (%p825) target = $region12
    $region11: #{decoder_forward.2} parent=5 // pred_region
      %s829 = ssub.s32 %s71, 1
      // Predicated region
      $region13: #{decoder_forward.2} parent=11 // pred_check
        %p830 = pneg %p161
      $region14: #{decoder_forward.2} parent=11 // pred_check_branch
        %832 = sbr.rel (%p830) target = $region16
      $region15: #{decoder_forward.2} parent=11 // pred_region
        %p833 = scmp.lt.s32.totalorder %s81, 0
        %s834 = scalar_select %p833, %s81, 0
        %s835 = smul.addr %s834, 8
        %s836 = scalar_lea.vmem %s5, %s835
      $region16: #{decoder_forward.2} parent=11 // pred_fallthru
        _
      // Predicated region
      $region17: #{decoder_forward.2} parent=11 // pred_check
        %p837 = pneg %p262
      $region18: #{decoder_forward.2} parent=11 // pred_check_branch
        %839 = sbr.rel (%p837) target = $region20
      $region19: #{decoder_forward.2} parent=11 // pred_region
        _
      $region20: #{decoder_forward.2} parent=11 // pred_fallthru
        _
      // Predicated region
      $region21: #{decoder_forward.2} parent=11 // pred_check
        %p840 = pneg %p283
      $region22: #{decoder_forward.2} parent=11 // pred_check_branch
        %842 = sbr.rel (%p840) target = $region24
      $region23: #{decoder_forward.2} parent=11 // pred_region
        _
      $region24: #{decoder_forward.2} parent=11 // pred_fallthru
        _
      // Predicated region
      $region25: #{decoder_forward.2} parent=11 // pred_check
        %p843 = pneg %p304
      $region26: #{decoder_forward.2} parent=11 // pred_check_branch
        %845 = sbr.rel (%p843) target = $region28
      $region27: #{decoder_forward.2} parent=11 // pred_region
        _
      $region28: #{decoder_forward.2} parent=11 // pred_fallthru
        _
      // Predicated region
      $region29: #{decoder_forward.2} parent=11 // pred_check
        %p846 = pneg %p325
      $region30: #{decoder_forward.2} parent=11 // pred_check_branch
        %848 = sbr.rel (%p846) target = $region32
      $region31: #{decoder_forward.2} parent=11 // pred_region
        _
      $region32: #{decoder_forward.2} parent=11 // pred_fallthru
        _
      // Predicated region
      $region33: #{decoder_forward.2} parent=11 // pred_check
        %p849 = pneg %p346
      $region34: #{decoder_forward.2} parent=11 // pred_check_branch
        %851 = sbr.rel (%p849) target = $region36
      $region35: #{decoder_forward.2} parent=11 // pred_region
        _
      $region36: #{decoder_forward.2} parent=11 // pred_fallthru
        _
      // Predicated region
      $region37: #{decoder_forward.2} parent=11 // pred_check
        %p852 = pneg %p367
      $region38: #{decoder_forward.2} parent=11 // pred_check_branch
        %854 = sbr.rel (%p852) target = $region40
      $region39: #{decoder_forward.2} parent=11 // pred_region
        _
      $region40: #{decoder_forward.2} parent=11 // pred_fallthru
        _
      // Predicated region
      $region41: #{decoder_forward.2} parent=11 // pred_check
        %p855 = pneg %p388
      $region42: #{decoder_forward.2} parent=11 // pred_check_branch
        %857 = sbr.rel (%p855) target = $region44
      $region43: #{decoder_forward.2} parent=11 // pred_region
        _
      $region44: #{decoder_forward.2} parent=11 // pred_fallthru
        _
      // Predicated region
      $region45: #{decoder_forward.2} parent=11 // pred_check
        %p858 = pneg %p409
      $region46: #{decoder_forward.2} parent=11 // pred_check_branch
        %860 = sbr.rel (%p858) target = $region48
      $region47: #{decoder_forward.2} parent=11 // pred_region
        _
      $region48: #{decoder_forward.2} parent=11 // pred_fallthru
        _
      // Predicated region
      $region49: #{decoder_forward.2} parent=11 // pred_check
        %p861 = pneg %p430
      $region50: #{decoder_forward.2} parent=11 // pred_check_branch
        %863 = sbr.rel (%p861) target = $region52
      $region51: #{decoder_forward.2} parent=11 // pred_region
        _
      $region52: #{decoder_forward.2} parent=11 // pred_fallthru
        _
      // Predicated region
      $region53: #{decoder_forward.2} parent=11 // pred_check
        %p864 = pneg %p451
      $region54: #{decoder_forward.2} parent=11 // pred_check_branch
        %866 = sbr.rel (%p864) target = $region56
      $region55: #{decoder_forward.2} parent=11 // pred_region
        _
      $region56: #{decoder_forward.2} parent=11 // pred_fallthru
        _
      // Predicated region
      $region57: #{decoder_forward.2} parent=11 // pred_check
        %p867 = pneg %p472
      $region58: #{decoder_forward.2} parent=11 // pred_check_branch
        %869 = sbr.rel (%p867) target = $region60
      $region59: #{decoder_forward.2} parent=11 // pred_region
        _
      $region60: #{decoder_forward.2} parent=11 // pred_fallthru
        _
      // Predicated region
      $region61: #{decoder_forward.2} parent=11 // pred_check
        %p870 = pneg %p493
      $region62: #{decoder_forward.2} parent=11 // pred_check_branch
        %872 = sbr.rel (%p870) target = $region64
      $region63: #{decoder_forward.2} parent=11 // pred_region
        _
      $region64: #{decoder_forward.2} parent=11 // pred_fallthru
        _
      // Predicated region
      $region65: #{decoder_forward.2} parent=11 // pred_check
        %p873 = pneg %p514
      $region66: #{decoder_forward.2} parent=11 // pred_check_branch
        %875 = sbr.rel (%p873) target = $region68
      $region67: #{decoder_forward.2} parent=11 // pred_region
        _
      $region68: #{decoder_forward.2} parent=11 // pred_fallthru
        _
      // Predicated region
      $region69: #{decoder_forward.2} parent=11 // pred_check
        %p876 = pneg %p535
      $region70: #{decoder_forward.2} parent=11 // pred_check_branch
        %878 = sbr.rel (%p876) target = $region72
      $region71: #{decoder_forward.2} parent=11 // pred_region
        _
      $region72: #{decoder_forward.2} parent=11 // pred_fallthru
        _
      // Predicated region
      $region73: #{decoder_forward.2} parent=11 // pred_check
        %p879 = pneg %p556
      $region74: #{decoder_forward.2} parent=11 // pred_check_branch
        %881 = sbr.rel (%p879) target = $region76
      $region75: #{decoder_forward.2} parent=11 // pred_region
        _
      $region76: #{decoder_forward.2} parent=11 // pred_fallthru
        _
      // Predicated region
      $region77: #{decoder_forward.2} parent=11 // pred_check
        %p882 = pneg %p577
      $region78: #{decoder_forward.2} parent=11 // pred_check_branch
        %884 = sbr.rel (%p882) target = $region80
      $region79: #{decoder_forward.2} parent=11 // pred_region
        _
      $region80: #{decoder_forward.2} parent=11 // pred_fallthru
        _
      // Predicated region
      $region81: #{decoder_forward.2} parent=11 // pred_check
        %p885 = pneg %p598
      $region82: #{decoder_forward.2} parent=11 // pred_check_branch
        %887 = sbr.rel (%p885) target = $region84
      $region83: #{decoder_forward.2} parent=11 // pred_region
        _
      $region84: #{decoder_forward.2} parent=11 // pred_fallthru
        _
      // Predicated region
      $region85: #{decoder_forward.2} parent=11 // pred_check
        %p888 = pneg %p619
      $region86: #{decoder_forward.2} parent=11 // pred_check_branch
        %890 = sbr.rel (%p888) target = $region88
      $region87: #{decoder_forward.2} parent=11 // pred_region
        _
      $region88: #{decoder_forward.2} parent=11 // pred_fallthru
        _
      // Predicated region
      $region89: #{decoder_forward.2} parent=11 // pred_check
        %p891 = pneg %p640
      $region90: #{decoder_forward.2} parent=11 // pred_check_branch
        %893 = sbr.rel (%p891) target = $region92
      $region91: #{decoder_forward.2} parent=11 // pred_region
        _
      $region92: #{decoder_forward.2} parent=11 // pred_fallthru
        _
      // Predicated region
      $region93: #{decoder_forward.2} parent=11 // pred_check
        %p894 = pneg %p661
      $region94: #{decoder_forward.2} parent=11 // pred_check_branch
        %896 = sbr.rel (%p894) target = $region96
      $region95: #{decoder_forward.2} parent=11 // pred_region
        _
      $region96: #{decoder_forward.2} parent=11 // pred_fallthru
        _
      // Predicated region
      $region97: #{decoder_forward.2} parent=11 // pred_check
        %p897 = pneg %p682
      $region98: #{decoder_forward.2} parent=11 // pred_check_branch
        %899 = sbr.rel (%p897) target = $region100
      $region99: #{decoder_forward.2} parent=11 // pred_region
        _
      $region100: #{decoder_forward.2} parent=11 // pred_fallthru
        _
      // Predicated region
      $region101: #{decoder_forward.2} parent=11 // pred_check
        %p900 = pneg %p703
      $region102: #{decoder_forward.2} parent=11 // pred_check_branch
        %902 = sbr.rel (%p900) target = $region104
      $region103: #{decoder_forward.2} parent=11 // pred_region
        _
      $region104: #{decoder_forward.2} parent=11 // pred_fallthru
        _
      // Predicated region
      $region105: #{decoder_forward.2} parent=11 // pred_check
        %p903 = pneg %p724
      $region106: #{decoder_forward.2} parent=11 // pred_check_branch
        %905 = sbr.rel (%p903) target = $region108
      $region107: #{decoder_forward.2} parent=11 // pred_region
        _
      $region108: #{decoder_forward.2} parent=11 // pred_fallthru
        _
      // Predicated region
      $region109: #{decoder_forward.2} parent=11 // pred_check
        %p906 = pneg %p745
      $region110: #{decoder_forward.2} parent=11 // pred_check_branch
        %908 = sbr.rel (%p906) target = $region112
      $region111: #{decoder_forward.2} parent=11 // pred_region
        _
      $region112: #{decoder_forward.2} parent=11 // pred_fallthru
        _
      // Predicated region
      $region113: #{decoder_forward.2} parent=11 // pred_check
        %p909 = pneg %p766
      $region114: #{decoder_forward.2} parent=11 // pred_check_branch
        %911 = sbr.rel (%p909) target = $region116
      $region115: #{decoder_forward.2} parent=11 // pred_region
        _
      $region116: #{decoder_forward.2} parent=11 // pred_fallthru
        _
      // Predicated region
      $region117: #{decoder_forward.2} parent=11 // pred_check
        %p912 = pneg %p787
      $region118: #{decoder_forward.2} parent=11 // pred_check_branch
        %914 = sbr.rel (%p912) target = $region120
      $region119: #{decoder_forward.2} parent=11 // pred_region
        _
      $region120: #{decoder_forward.2} parent=11 // pred_fallthru
        _
    $region12: #{decoder_forward.2} parent=5 // pred_fallthru
      _
    %p915 = scmp.lt.s32.totalorder %s71, 2
    // Predicated region
    $region121: #{decoder_forward.2} parent=5 // pred_check
      %p916 = pneg %p915
    $region122: #{decoder_forward.2} parent=5 // pred_check_branch
      %918 = sbr.rel (%p916) target = $region124
    $region123: #{decoder_forward.2} parent=5 // pred_region
      // Predicated region
      $region125: #{decoder_forward.2} parent=123 // pred_check
        %p919 = pneg %p103
      $region126: #{decoder_forward.2} parent=123 // pred_check_branch
        %921 = sbr.rel (%p919) target = $region128
      $region127: #{decoder_forward.2} parent=123 // pred_region
        %p922 = scmp.lt.s32.totalorder %s78, 1
        %s923 = scalar_select %p922, %s78, 1
        %s924 = smul.addr %s923, 4
        %s925 = scalar_lea.vmem %s1, %s924
      $region128: #{decoder_forward.2} parent=123 // pred_fallthru
        _
      // Predicated region
      $region129: #{decoder_forward.2} parent=123 // pred_check
        %p926 = pneg %p129
      $region130: #{decoder_forward.2} parent=123 // pred_check_branch
        %928 = sbr.rel (%p926) target = $region132
      $region131: #{decoder_forward.2} parent=123 // pred_region
        %p929 = scmp.lt.s32.totalorder %s78, 1
        %s930 = scalar_select %p929, %s78, 1
        %s931 = smul.addr %s930, 4
        %s932 = scalar_lea.vmem %s3, %s931
      $region132: #{decoder_forward.2} parent=123 // pred_fallthru
        _
      // Predicated region
      $region133: #{decoder_forward.2} parent=123 // pred_check
        %p933 = pneg %p181
      $region134: #{decoder_forward.2} parent=123 // pred_check_branch
        %935 = sbr.rel (%p933) target = $region136
      $region135: #{decoder_forward.2} parent=123 // pred_region
        %p936 = scmp.lt.s32.totalorder %s78, 1
        %s937 = scalar_select %p936, %s78, 1
        %s938 = scalar_lea.vmem %s7, %s937
      $region136: #{decoder_forward.2} parent=123 // pred_fallthru
        _
      // Predicated region
      $region137: #{decoder_forward.2} parent=123 // pred_check
        %p939 = pneg %p207
      $region138: #{decoder_forward.2} parent=123 // pred_check_branch
        %941 = sbr.rel (%p939) target = $region140
      $region139: #{decoder_forward.2} parent=123 // pred_region
        %p942 = scmp.lt.s32.totalorder %s78, 1
        %s943 = scalar_select %p942, %s78, 1
        %s944 = scalar_lea.vmem %s9, %s943
      $region140: #{decoder_forward.2} parent=123 // pred_fallthru
        _
      // Predicated region
      $region141: #{decoder_forward.2} parent=123 // pred_check
        %p945 = pneg %p235
      $region142: #{decoder_forward.2} parent=123 // pred_check_branch
        %947 = sbr.rel (%p945) target = $region144
      $region143: #{decoder_forward.2} parent=123 // pred_region
        %p948 = scmp.lt.s32.totalorder %s78, 1
        %s949 = scalar_select %p948, %s78, 1
        %p950 = scmp.lt.s32.totalorder %s79, 0
        %s951 = scalar_select %p950, %s79, 0
        %s952 = sadd.s32 %s951, %s949
        %s953 = smul.addr %s952, 8
        %s954 = scalar_lea.vmem %s11, %s953
      $region144: #{decoder_forward.2} parent=123 // pred_fallthru
        _
    $region124: #{decoder_forward.2} parent=5 // pred_fallthru
      _
    %p955 = scmp.le.s32.totalorder 1, %s71
    %p956 = scmp.lt.s32.totalorder %s71, 3
    %p957 = pnand %p955, %p956
    %p958 = pneg %p957
    // Predicated region
    $region145: #{decoder_forward.2} parent=5 // pred_check
      _
    $region146: #{decoder_forward.2} parent=5 // pred_check_branch
      %960 = sbr.rel (%p957) target = $region148
    $region147: #{decoder_forward.2} parent=5 // pred_region
      %s961 = ssub.s32 %s71, 1
      %p962 = scmp.lt.s32.totalorder %s80, 1
      %s963 = scalar_select %p962, %s80, 1
      %s964 = smul.addr %s963, 4
      %s965 = scalar_lea.vmem %s1, %s964
      %p966 = pneg %p109
      %p967 = pneg %p106
      %p968 = scmp.lt.s32.totalorder %s80, 1
      %s969 = scalar_select %p968, %s80, 1
      %s970 = smul.addr %s969, 4
      %s971 = scalar_lea.vmem %s3, %s970
      %p972 = pneg %p135
      %p973 = pneg %p132
      %p974 = scmp.lt.s32.totalorder %s81, 0
      %s975 = scalar_select %p974, %s81, 0
      %s976 = smul.addr %s975, 8
      %s977 = scalar_lea.vmem %s5, %s976
      %p978 = pneg %p161
      %p979 = pneg %p158
      %p980 = scmp.lt.s32.totalorder %s80, 1
      %s981 = scalar_select %p980, %s80, 1
      %s982 = scalar_lea.vmem %s7, %s981
      %p983 = pneg %p187
      %p984 = pneg %p184
      %p985 = scmp.lt.s32.totalorder %s80, 1
      %s986 = scalar_select %p985, %s80, 1
      %s987 = scalar_lea.vmem %s9, %s986
      %p988 = pneg %p213
      %p989 = pneg %p210
      %p990 = scmp.lt.s32.totalorder %s80, 1
      %s991 = scalar_select %p990, %s80, 1
      %p992 = scmp.lt.s32.totalorder %s81, 0
      %s993 = scalar_select %p992, %s81, 0
      %s994 = sadd.s32 %s993, %s991
      %s995 = smul.addr %s994, 8
      %s996 = scalar_lea.vmem %s11, %s995
      %p997 = pneg %p241
      %p998 = pneg %p238
      %p999 = pneg %p262
      %p1000 = pneg %p259
      %p1001 = pneg %p283
      %p1002 = pneg %p280
      %p1003 = pneg %p304
      %p1004 = pneg %p301
      %p1005 = pneg %p325
      %p1006 = pneg %p322
      %p1007 = pneg %p346
      %p1008 = pneg %p343
      %p1009 = pneg %p367
      %p1010 = pneg %p364
      %p1011 = pneg %p388
      %p1012 = pneg %p385
      %p1013 = pneg %p409
      %p1014 = pneg %p406
      %p1015 = pneg %p430
      %p1016 = pneg %p427
      %p1017 = pneg %p451
      %p1018 = pneg %p448
      %p1019 = pneg %p472
      %p1020 = pneg %p469
      %p1021 = pneg %p493
      %p1022 = pneg %p490
      %p1023 = pneg %p514
      %p1024 = pneg %p511
      %p1025 = pneg %p535
      %p1026 = pneg %p532
      %p1027 = pneg %p556
      %p1028 = pneg %p553
      %p1029 = pneg %p577
      %p1030 = pneg %p574
      %p1031 = pneg %p598
      %p1032 = pneg %p595
      %p1033 = pneg %p619
      %p1034 = pneg %p616
      %p1035 = pneg %p640
      %p1036 = pneg %p637
      %p1037 = pneg %p661
      %p1038 = pneg %p658
      %p1039 = pneg %p682
      %p1040 = pneg %p679
      %p1041 = pneg %p703
      %p1042 = pneg %p700
      %p1043 = pneg %p724
      %p1044 = pneg %p721
      %p1045 = pneg %p745
      %p1046 = pneg %p742
      %p1047 = pneg %p766
      %p1048 = pneg %p763
      %p1049 = pneg %p787
      %p1050 = pneg %p784
      %p1051 = pneg %p815
      %p1052 = pneg %p812
      %p1053 = scmp.lt.s32.totalorder %s80, 1
      %s1054 = scalar_select %p1053, %s80, 1
      %p1055 = scmp.lt.s32.totalorder %s81, 0
      %s1056 = scalar_select %p1055, %s81, 0
      %s1057 = sadd.s32 %s1056, %s1054
      %s1058 = smul.addr %s1057, 4
      %s1059 = scalar_lea.vmem %s65, %s1058
      %p1060 = scmp.lt.s32.totalorder %s80, 1
      %s1061 = scalar_select %p1060, %s80, 1
      %s1062 = smul.addr %s1061, 4
      %s1063 = scalar_lea.vmem %s1, %s1062
      %p1064 = scmp.lt.s32.totalorder %s80, 1
      %s1065 = scalar_select %p1064, %s80, 1
      %s1066 = smul.addr %s1065, 4
      %s1067 = scalar_lea.vmem %s3, %s1066
      %p1068 = scmp.lt.s32.totalorder %s81, 0
      %s1069 = scalar_select %p1068, %s81, 0
      %s1070 = smul.addr %s1069, 8
      %s1071 = scalar_lea.vmem %s5, %s1070
      %p1072 = scmp.lt.s32.totalorder %s80, 1
      %s1073 = scalar_select %p1072, %s80, 1
      %s1074 = scalar_lea.vmem %s7, %s1073
      %p1075 = scmp.lt.s32.totalorder %s80, 1
      %s1076 = scalar_select %p1075, %s80, 1
      %s1077 = scalar_lea.vmem %s9, %s1076
      %p1078 = scmp.lt.s32.totalorder %s80, 1
      %s1079 = scalar_select %p1078, %s80, 1
      %p1080 = scmp.lt.s32.totalorder %s81, 0
      %s1081 = scalar_select %p1080, %s81, 0
      %s1082 = sadd.s32 %s1081, %s1079
      %s1083 = smul.addr %s1082, 8
      %s1084 = scalar_lea.vmem %s11, %s1083
      %p1085 = scmp.lt.s32.totalorder %s80, 1
      %s1086 = scalar_select %p1085, %s80, 1
      %p1087 = scmp.lt.s32.totalorder %s81, 0
      %s1088 = scalar_select %p1087, %s81, 0
      %s1089 = sadd.s32 %s1088, %s1086
      %s1090 = smul.addr %s1089, 4
      %s1091 = scalar_lea.vmem %s65, %s1090
      %p1093 = scmp.eq.s32.totalorder %s81, 0
      // Predicated region
      $region149: #{decoder_forward.2} parent=147 // pred_check
        %p1094 = pneg %p1093
      $region150: #{decoder_forward.2} parent=147 // pred_check_branch
        %1096 = sbr.rel (%p1094) target = $region152
      $region151: #{decoder_forward.2} parent=147 // pred_region
        %v1097 = vld [vmem:[%s1063] sm:$0xf]
        %v1098 = vld [vmem:[%s17] sm:$0xf]
        %v1099 = vld [vmem:[%s17 + $0x4] sm:$0xf]
        %v1100 = vld [vmem:[%s17 + $0x8] sm:$0xf]
        %v1101 = vld [vmem:[%s17 + $0xc] sm:$0xf]
        %v1102 = vld [vmem:[%s17 + $0x10] sm:$0xf]
        %v1103 = vld [vmem:[%s17 + $0x14] sm:$0xf]
        %v1104 = vld [vmem:[%s17 + $0x18] sm:$0xf]
        %v1105 = vld [vmem:[%s17 + $0x1c] sm:$0xf]
        %v1106 = vld [vmem:[%s17 + $0x20] sm:$0xf]
        %v1107 = vld [vmem:[%s17 + $0x24] sm:$0xf]
        %v1108 = vld [vmem:[%s17 + $0x28] sm:$0xf]
        %v1109 = vld [vmem:[%s17 + $0x2c] sm:$0xf]
        %v1110 = vld [vmem:[%s17 + $0x30] sm:$0xf]
        %v1111 = vld [vmem:[%s17 + $0x34] sm:$0xf]
        %v1112 = vld [vmem:[%s17 + $0x38] sm:$0xf]
        %v1113 = vld [vmem:[%s17 + $0x3c] sm:$0xf]
        %v1114 = vld [vmem:[%s19] sm:$0x1]
        %v1115 = vld [vmem:[%s19 + $0x1] sm:$0x1]
        %v1116 = vld [vmem:[%s19 + $0x2] sm:$0x1]
        %v1117 = vld [vmem:[%s19 + $0x3] sm:$0x1]
        %v1122 = vperm.slane %v1114, 0
        %v1123 = vperm.slane %v1115, 0
        %v1124 = vperm.slane %v1116, 0
        %v1125 = vperm.slane %v1117, 0
        %v1134 = vunpack.c.l.b16 %v1098
        %v1135 = vunpack.c.l.b16 %v1099
        %v1136 = vunpack.c.l.b16 %v1100
        %v1137 = vunpack.c.l.b16 %v1101
        %v1138 = vpack.c.b16 %v1135, %v1134
        %v1139 = vpack.c.b16 %v1137, %v1136
        %vm1142 = vcmask 261120
        %v1144 = vsel %vm1142, %v1097, 0
        %1146 = vmatpush.bf16.msra.mxu0 0
        %1147 = vmatpush.bf16.msra.mxu0 0
        %1148 = vmatpush.bf16.msra.mxu0 0
        %1149 = vmatpush.bf16.msra.mxu0 0
        %1150 = vmatpush.bf16.msra.mxu0 0
        %1151 = vmatpush.bf16.msra.mxu0 0
        %1152 = vmatpush.bf16.msra.mxu0 %v1139
        %1153 = vmatpush.bf16.msra.mxu0 %v1138
        %1154 = vmatmul.bf16.gmra.mxu0 %v1144
        %v1155 = vpop.f32.mrf.mxu0
        %v1156 = vadd.f32 %v1122, %v1155
        %v1157 = vpop.f32.mrf.mxu0
        %1158 = vdwg.mxu0
        %v1163 = vunpack.c.l.b16 %v1102
        %v1164 = vunpack.c.l.b16 %v1103
        %v1165 = vunpack.c.l.b16 %v1104
        %v1166 = vunpack.c.l.b16 %v1105
        %v1167 = vpack.c.b16 %v1164, %v1163
        %v1168 = vpack.c.b16 %v1166, %v1165
        %1171 = vmatpush.bf16.msra.mxu0 0
        %1172 = vmatpush.bf16.msra.mxu0 0
        %1173 = vmatpush.bf16.msra.mxu0 0
        %1174 = vmatpush.bf16.msra.mxu0 0
        %1175 = vmatpush.bf16.msra.mxu0 0
        %1176 = vmatpush.bf16.msra.mxu0 0
        %1177 = vmatpush.bf16.msra.mxu0 %v1168
        %1178 = vmatpush.bf16.msra.mxu0 %v1167
        %1179 = vmatmul.bf16.gmra.mxu0 %v1144
        %v1180 = vpop.f32.mrf.mxu0
        %v1181 = vadd.f32 %v1123, %v1180
        %v1182 = vpop.f32.mrf.mxu0
        %1183 = vdwg.mxu0
        %v1188 = vunpack.c.l.b16 %v1106
        %v1189 = vunpack.c.l.b16 %v1107
        %v1190 = vunpack.c.l.b16 %v1108
        %v1191 = vunpack.c.l.b16 %v1109
        %v1192 = vpack.c.b16 %v1189, %v1188
        %v1193 = vpack.c.b16 %v1191, %v1190
        %1196 = vmatpush.bf16.msra.mxu0 0
        %1197 = vmatpush.bf16.msra.mxu0 0
        %1198 = vmatpush.bf16.msra.mxu0 0
        %1199 = vmatpush.bf16.msra.mxu0 0
        %1200 = vmatpush.bf16.msra.mxu0 0
        %1201 = vmatpush.bf16.msra.mxu0 0
        %1202 = vmatpush.bf16.msra.mxu0 %v1193
        %1203 = vmatpush.bf16.msra.mxu0 %v1192
        %1204 = vmatmul.bf16.gmra.mxu0 %v1144
        %v1205 = vpop.f32.mrf.mxu0
        %v1206 = vadd.f32 %v1124, %v1205
        %v1207 = vpop.f32.mrf.mxu0
        %1208 = vdwg.mxu0
        %v1213 = vunpack.c.l.b16 %v1110
        %v1214 = vunpack.c.l.b16 %v1111
        %v1215 = vunpack.c.l.b16 %v1112
        %v1216 = vunpack.c.l.b16 %v1113
        %v1217 = vpack.c.b16 %v1214, %v1213
        %v1218 = vpack.c.b16 %v1216, %v1215
        %1221 = vmatpush.bf16.msra.mxu0 0
        %1222 = vmatpush.bf16.msra.mxu0 0
        %1223 = vmatpush.bf16.msra.mxu0 0
        %1224 = vmatpush.bf16.msra.mxu0 0
        %1225 = vmatpush.bf16.msra.mxu0 0
        %1226 = vmatpush.bf16.msra.mxu0 0
        %1227 = vmatpush.bf16.msra.mxu0 %v1218
        %1228 = vmatpush.bf16.msra.mxu0 %v1217
        %1229 = vmatmul.bf16.gmra.mxu0 %v1144
        %v1230 = vpop.f32.mrf.mxu0
        %v1231 = vadd.f32 %v1125, %v1230
        %v1232 = vpop.f32.mrf.mxu0
        %1233 = vdwg.mxu0
        %v1234 = vpack.c.bf16 %v1156, %v1156
        %v1235 = vpack.c.bf16 %v1181, %v1181
        %v1236 = vpack.c.bf16 %v1206, %v1206
        %v1237 = vpack.c.bf16 %v1231, %v1231
        %vm1238 = vcmask 60416
        %1239 = vst.msk [vmem:[#allocation2] sm:$0xf] %vm1238, %v1234
        %1240 = vst.msk [vmem:[#allocation2 + $0x4] sm:$0xf] %vm1238, %v1235
        %1241 = vst.msk [vmem:[#allocation2 + $0x8] sm:$0xf] %vm1238, %v1236
        %1242 = vst.msk [vmem:[#allocation2 + $0xc] sm:$0xf] %vm1238, %v1237
        %v1243 = vld [vmem:[%s21] sm:$0xf]
        %v1244 = vld [vmem:[%s21 + $0x4] sm:$0xf]
        %v1245 = vld [vmem:[%s21 + $0x8] sm:$0xf]
        %v1246 = vld [vmem:[%s21 + $0xc] sm:$0xf]
        %v1247 = vld [vmem:[%s21 + $0x10] sm:$0xf]
        %v1248 = vld [vmem:[%s21 + $0x14] sm:$0xf]
        %v1249 = vld [vmem:[%s21 + $0x18] sm:$0xf]
        %v1250 = vld [vmem:[%s21 + $0x1c] sm:$0xf]
        %v1251 = vld [vmem:[%s21 + $0x20] sm:$0xf]
        %v1252 = vld [vmem:[%s21 + $0x24] sm:$0xf]
        %v1253 = vld [vmem:[%s21 + $0x28] sm:$0xf]
        %v1254 = vld [vmem:[%s21 + $0x2c] sm:$0xf]
        %v1255 = vld [vmem:[%s21 + $0x30] sm:$0xf]
        %v1256 = vld [vmem:[%s21 + $0x34] sm:$0xf]
        %v1257 = vld [vmem:[%s21 + $0x38] sm:$0xf]
        %v1258 = vld [vmem:[%s21 + $0x3c] sm:$0xf]
        %v1259 = vld [vmem:[%s23] sm:$0x1]
        %v1260 = vld [vmem:[%s23 + $0x1] sm:$0x1]
        %v1261 = vld [vmem:[%s23 + $0x2] sm:$0x1]
        %v1262 = vld [vmem:[%s23 + $0x3] sm:$0x1]
        %v1267 = vperm.slane %v1259, 0
        %v1268 = vperm.slane %v1260, 0
        %v1269 = vperm.slane %v1261, 0
        %v1270 = vperm.slane %v1262, 0
        %v1279 = vunpack.c.l.b16 %v1243
        %v1280 = vunpack.c.l.b16 %v1244
        %v1281 = vunpack.c.l.b16 %v1245
        %v1282 = vunpack.c.l.b16 %v1246
        %v1283 = vpack.c.b16 %v1280, %v1279
        %v1284 = vpack.c.b16 %v1282, %v1281
        %1287 = vmatpush.bf16.msra.mxu0 0
        %1288 = vmatpush.bf16.msra.mxu0 0
        %1289 = vmatpush.bf16.msra.mxu0 0
        %1290 = vmatpush.bf16.msra.mxu0 0
        %1291 = vmatpush.bf16.msra.mxu0 0
        %1292 = vmatpush.bf16.msra.mxu0 0
        %1293 = vmatpush.bf16.msra.mxu0 %v1284
        %1294 = vmatpush.bf16.msra.mxu0 %v1283
        %1295 = vmatmul.bf16.gmra.mxu0 %v1144
        %v1296 = vpop.f32.mrf.mxu0
        %v1297 = vadd.f32 %v1267, %v1296
        %v1298 = vpop.f32.mrf.mxu0
        %1299 = vdwg.mxu0
        %v1304 = vunpack.c.l.b16 %v1247
        %v1305 = vunpack.c.l.b16 %v1248
        %v1306 = vunpack.c.l.b16 %v1249
        %v1307 = vunpack.c.l.b16 %v1250
        %v1308 = vpack.c.b16 %v1305, %v1304
        %v1309 = vpack.c.b16 %v1307, %v1306
        %1312 = vmatpush.bf16.msra.mxu0 0
        %1313 = vmatpush.bf16.msra.mxu0 0
        %1314 = vmatpush.bf16.msra.mxu0 0
        %1315 = vmatpush.bf16.msra.mxu0 0
        %1316 = vmatpush.bf16.msra.mxu0 0
        %1317 = vmatpush.bf16.msra.mxu0 0
        %1318 = vmatpush.bf16.msra.mxu0 %v1309
        %1319 = vmatpush.bf16.msra.mxu0 %v1308
        %1320 = vmatmul.bf16.gmra.mxu0 %v1144
        %v1321 = vpop.f32.mrf.mxu0
        %v1322 = vadd.f32 %v1268, %v1321
        %v1323 = vpop.f32.mrf.mxu0
        %1324 = vdwg.mxu0
        %v1329 = vunpack.c.l.b16 %v1251
        %v1330 = vunpack.c.l.b16 %v1252
        %v1331 = vunpack.c.l.b16 %v1253
        %v1332 = vunpack.c.l.b16 %v1254
        %v1333 = vpack.c.b16 %v1330, %v1329
        %v1334 = vpack.c.b16 %v1332, %v1331
        %1337 = vmatpush.bf16.msra.mxu0 0
        %1338 = vmatpush.bf16.msra.mxu0 0
        %1339 = vmatpush.bf16.msra.mxu0 0
        %1340 = vmatpush.bf16.msra.mxu0 0
        %1341 = vmatpush.bf16.msra.mxu0 0
        %1342 = vmatpush.bf16.msra.mxu0 0
        %1343 = vmatpush.bf16.msra.mxu0 %v1334
        %1344 = vmatpush.bf16.msra.mxu0 %v1333
        %1345 = vmatmul.bf16.gmra.mxu0 %v1144
        %v1346 = vpop.f32.mrf.mxu0
        %v1347 = vadd.f32 %v1269, %v1346
        %v1348 = vpop.f32.mrf.mxu0
        %1349 = vdwg.mxu0
        %v1354 = vunpack.c.l.b16 %v1255
        %v1355 = vunpack.c.l.b16 %v1256
        %v1356 = vunpack.c.l.b16 %v1257
        %v1357 = vunpack.c.l.b16 %v1258
        %v1358 = vpack.c.b16 %v1355, %v1354
        %v1359 = vpack.c.b16 %v1357, %v1356
        %1362 = vmatpush.bf16.msra.mxu0 0
        %1363 = vmatpush.bf16.msra.mxu0 0
        %1364 = vmatpush.bf16.msra.mxu0 0
        %1365 = vmatpush.bf16.msra.mxu0 0
        %1366 = vmatpush.bf16.msra.mxu0 0
        %1367 = vmatpush.bf16.msra.mxu0 0
        %1368 = vmatpush.bf16.msra.mxu0 %v1359
        %1369 = vmatpush.bf16.msra.mxu0 %v1358
        %1370 = vmatmul.bf16.gmra.mxu0 %v1144
        %v1371 = vpop.f32.mrf.mxu0
        %v1372 = vadd.f32 %v1270, %v1371
        %v1373 = vpop.f32.mrf.mxu0
        %1374 = vdwg.mxu0
        %v1375 = vpack.c.bf16 %v1297, %v1297
        %v1376 = vpack.c.bf16 %v1322, %v1322
        %v1377 = vpack.c.bf16 %v1347, %v1347
        %v1378 = vpack.c.bf16 %v1372, %v1372
        %1379 = vst.msk [vmem:[#allocation3] sm:$0xf] %vm1238, %v1375
        %1380 = vst.msk [vmem:[#allocation3 + $0x4] sm:$0xf] %vm1238, %v1376
        %1381 = vst.msk [vmem:[#allocation3 + $0x8] sm:$0xf] %vm1238, %v1377
        %1382 = vst.msk [vmem:[#allocation3 + $0xc] sm:$0xf] %vm1238, %v1378
        %v1383 = vld [vmem:[%s1067] sm:$0xf]
        %v1384 = vld [vmem:[%s37] sm:$0xf]
        %v1385 = vld [vmem:[%s37 + $0x4] sm:$0xf]
        %v1386 = vld [vmem:[%s37 + $0x8] sm:$0xf]
        %v1387 = vld [vmem:[%s37 + $0xc] sm:$0xf]
        %v1388 = vld [vmem:[%s37 + $0x10] sm:$0xf]
        %v1389 = vld [vmem:[%s37 + $0x14] sm:$0xf]
        %v1390 = vld [vmem:[%s37 + $0x18] sm:$0xf]
        %v1391 = vld [vmem:[%s37 + $0x1c] sm:$0xf]
        %v1392 = vld [vmem:[%s37 + $0x20] sm:$0xf]
        %v1393 = vld [vmem:[%s37 + $0x24] sm:$0xf]
        %v1394 = vld [vmem:[%s37 + $0x28] sm:$0xf]
        %v1395 = vld [vmem:[%s37 + $0x2c] sm:$0xf]
        %v1396 = vld [vmem:[%s37 + $0x30] sm:$0xf]
        %v1397 = vld [vmem:[%s37 + $0x34] sm:$0xf]
        %v1398 = vld [vmem:[%s37 + $0x38] sm:$0xf]
        %v1399 = vld [vmem:[%s37 + $0x3c] sm:$0xf]
        %v1400 = vld [vmem:[%s39] sm:$0x1]
        %v1401 = vld [vmem:[%s39 + $0x1] sm:$0x1]
        %v1402 = vld [vmem:[%s39 + $0x2] sm:$0x1]
        %v1403 = vld [vmem:[%s39 + $0x3] sm:$0x1]
        %v1408 = vperm.slane %v1400, 0
        %v1409 = vperm.slane %v1401, 0
        %v1410 = vperm.slane %v1402, 0
        %v1411 = vperm.slane %v1403, 0
        %v1420 = vunpack.c.l.b16 %v1384
        %v1421 = vunpack.c.l.b16 %v1385
        %v1422 = vunpack.c.l.b16 %v1386
        %v1423 = vunpack.c.l.b16 %v1387
        %v1424 = vpack.c.b16 %v1421, %v1420
        %v1425 = vpack.c.b16 %v1423, %v1422
        %v1429 = vsel %vm1142, %v1383, 0
        %1431 = vmatpush.bf16.msra.mxu0 0
        %1432 = vmatpush.bf16.msra.mxu0 0
        %1433 = vmatpush.bf16.msra.mxu0 0
        %1434 = vmatpush.bf16.msra.mxu0 0
        %1435 = vmatpush.bf16.msra.mxu0 0
        %1436 = vmatpush.bf16.msra.mxu0 0
        %1437 = vmatpush.bf16.msra.mxu0 %v1425
        %1438 = vmatpush.bf16.msra.mxu0 %v1424
        %1439 = vmatmul.bf16.gmra.mxu0 %v1429
        %v1440 = vpop.f32.mrf.mxu0
        %v1441 = vadd.f32 %v1408, %v1440
        %v1442 = vpop.f32.mrf.mxu0
        %1443 = vdwg.mxu0
        %v1448 = vunpack.c.l.b16 %v1388
        %v1449 = vunpack.c.l.b16 %v1389
        %v1450 = vunpack.c.l.b16 %v1390
        %v1451 = vunpack.c.l.b16 %v1391
        %v1452 = vpack.c.b16 %v1449, %v1448
        %v1453 = vpack.c.b16 %v1451, %v1450
        %1456 = vmatpush.bf16.msra.mxu0 0
        %1457 = vmatpush.bf16.msra.mxu0 0
        %1458 = vmatpush.bf16.msra.mxu0 0
        %1459 = vmatpush.bf16.msra.mxu0 0
        %1460 = vmatpush.bf16.msra.mxu0 0
        %1461 = vmatpush.bf16.msra.mxu0 0
        %1462 = vmatpush.bf16.msra.mxu0 %v1453
        %1463 = vmatpush.bf16.msra.mxu0 %v1452
        %1464 = vmatmul.bf16.gmra.mxu0 %v1429
        %v1465 = vpop.f32.mrf.mxu0
        %v1466 = vadd.f32 %v1409, %v1465
        %v1467 = vpop.f32.mrf.mxu0
        %1468 = vdwg.mxu0
        %v1473 = vunpack.c.l.b16 %v1392
        %v1474 = vunpack.c.l.b16 %v1393
        %v1475 = vunpack.c.l.b16 %v1394
        %v1476 = vunpack.c.l.b16 %v1395
        %v1477 = vpack.c.b16 %v1474, %v1473
        %v1478 = vpack.c.b16 %v1476, %v1475
        %1481 = vmatpush.bf16.msra.mxu0 0
        %1482 = vmatpush.bf16.msra.mxu0 0
        %1483 = vmatpush.bf16.msra.mxu0 0
        %1484 = vmatpush.bf16.msra.mxu0 0
        %1485 = vmatpush.bf16.msra.mxu0 0
        %1486 = vmatpush.bf16.msra.mxu0 0
        %1487 = vmatpush.bf16.msra.mxu0 %v1478
        %1488 = vmatpush.bf16.msra.mxu0 %v1477
        %1489 = vmatmul.bf16.gmra.mxu0 %v1429
        %v1490 = vpop.f32.mrf.mxu0
        %v1491 = vadd.f32 %v1410, %v1490
        %v1492 = vpop.f32.mrf.mxu0
        %1493 = vdwg.mxu0
        %v1498 = vunpack.c.l.b16 %v1396
        %v1499 = vunpack.c.l.b16 %v1397
        %v1500 = vunpack.c.l.b16 %v1398
        %v1501 = vunpack.c.l.b16 %v1399
        %v1502 = vpack.c.b16 %v1499, %v1498
        %v1503 = vpack.c.b16 %v1501, %v1500
        %1506 = vmatpush.bf16.msra.mxu0 0
        %1507 = vmatpush.bf16.msra.mxu0 0
        %1508 = vmatpush.bf16.msra.mxu0 0
        %1509 = vmatpush.bf16.msra.mxu0 0
        %1510 = vmatpush.bf16.msra.mxu0 0
        %1511 = vmatpush.bf16.msra.mxu0 0
        %1512 = vmatpush.bf16.msra.mxu0 %v1503
        %1513 = vmatpush.bf16.msra.mxu0 %v1502
        %1514 = vmatmul.bf16.gmra.mxu0 %v1429
        %v1515 = vpop.f32.mrf.mxu0
        %v1516 = vadd.f32 %v1411, %v1515
        %v1517 = vpop.f32.mrf.mxu0
        %1518 = vdwg.mxu0
        %v1519 = vpack.c.bf16 %v1441, %v1441
        %v1520 = vpack.c.bf16 %v1466, %v1466
        %v1521 = vpack.c.bf16 %v1491, %v1491
        %v1522 = vpack.c.bf16 %v1516, %v1516
        %1523 = vst.msk [vmem:[#allocation4] sm:$0xf] %vm1238, %v1519
        %1524 = vst.msk [vmem:[#allocation4 + $0x4] sm:$0xf] %vm1238, %v1520
        %1525 = vst.msk [vmem:[#allocation4 + $0x8] sm:$0xf] %vm1238, %v1521
        %1526 = vst.msk [vmem:[#allocation4 + $0xc] sm:$0xf] %vm1238, %v1522
        %v1527 = vld [vmem:[%s41] sm:$0xf]
        %v1528 = vld [vmem:[%s41 + $0x4] sm:$0xf]
        %v1529 = vld [vmem:[%s41 + $0x8] sm:$0xf]
        %v1530 = vld [vmem:[%s41 + $0xc] sm:$0xf]
        %v1531 = vld [vmem:[%s41 + $0x10] sm:$0xf]
        %v1532 = vld [vmem:[%s41 + $0x14] sm:$0xf]
        %v1533 = vld [vmem:[%s41 + $0x18] sm:$0xf]
        %v1534 = vld [vmem:[%s41 + $0x1c] sm:$0xf]
        %v1535 = vld [vmem:[%s41 + $0x20] sm:$0xf]
        %v1536 = vld [vmem:[%s41 + $0x24] sm:$0xf]
        %v1537 = vld [vmem:[%s41 + $0x28] sm:$0xf]
        %v1538 = vld [vmem:[%s41 + $0x2c] sm:$0xf]
        %v1539 = vld [vmem:[%s41 + $0x30] sm:$0xf]
        %v1540 = vld [vmem:[%s41 + $0x34] sm:$0xf]
        %v1541 = vld [vmem:[%s41 + $0x38] sm:$0xf]
        %v1542 = vld [vmem:[%s41 + $0x3c] sm:$0xf]
        %v1543 = vld [vmem:[%s43] sm:$0x1]
        %v1544 = vld [vmem:[%s43 + $0x1] sm:$0x1]
        %v1545 = vld [vmem:[%s43 + $0x2] sm:$0x1]
        %v1546 = vld [vmem:[%s43 + $0x3] sm:$0x1]
        %v1551 = vperm.slane %v1543, 0
        %v1552 = vperm.slane %v1544, 0
        %v1553 = vperm.slane %v1545, 0
        %v1554 = vperm.slane %v1546, 0
        %v1563 = vunpack.c.l.b16 %v1527
        %v1564 = vunpack.c.l.b16 %v1528
        %v1565 = vunpack.c.l.b16 %v1529
        %v1566 = vunpack.c.l.b16 %v1530
        %v1567 = vpack.c.b16 %v1564, %v1563
        %v1568 = vpack.c.b16 %v1566, %v1565
        %1571 = vmatpush.bf16.msra.mxu0 0
        %1572 = vmatpush.bf16.msra.mxu0 0
        %1573 = vmatpush.bf16.msra.mxu0 0
        %1574 = vmatpush.bf16.msra.mxu0 0
        %1575 = vmatpush.bf16.msra.mxu0 0
        %1576 = vmatpush.bf16.msra.mxu0 0
        %1577 = vmatpush.bf16.msra.mxu0 %v1568
        %1578 = vmatpush.bf16.msra.mxu0 %v1567
        %1579 = vmatmul.bf16.gmra.mxu0 %v1429
        %v1580 = vpop.f32.mrf.mxu0
        %v1581 = vadd.f32 %v1551, %v1580
        %v1582 = vpop.f32.mrf.mxu0
        %1583 = vdwg.mxu0
        %v1588 = vunpack.c.l.b16 %v1531
        %v1589 = vunpack.c.l.b16 %v1532
        %v1590 = vunpack.c.l.b16 %v1533
        %v1591 = vunpack.c.l.b16 %v1534
        %v1592 = vpack.c.b16 %v1589, %v1588
        %v1593 = vpack.c.b16 %v1591, %v1590
        %1596 = vmatpush.bf16.msra.mxu0 0
        %1597 = vmatpush.bf16.msra.mxu0 0
        %1598 = vmatpush.bf16.msra.mxu0 0
        %1599 = vmatpush.bf16.msra.mxu0 0
        %1600 = vmatpush.bf16.msra.mxu0 0
        %1601 = vmatpush.bf16.msra.mxu0 0
        %1602 = vmatpush.bf16.msra.mxu0 %v1593
        %1603 = vmatpush.bf16.msra.mxu0 %v1592
        %1604 = vmatmul.bf16.gmra.mxu0 %v1429
        %v1605 = vpop.f32.mrf.mxu0
        %v1606 = vadd.f32 %v1552, %v1605
        %v1607 = vpop.f32.mrf.mxu0
        %1608 = vdwg.mxu0
        %v1613 = vunpack.c.l.b16 %v1535
        %v1614 = vunpack.c.l.b16 %v1536
        %v1615 = vunpack.c.l.b16 %v1537
        %v1616 = vunpack.c.l.b16 %v1538
        %v1617 = vpack.c.b16 %v1614, %v1613
        %v1618 = vpack.c.b16 %v1616, %v1615
        %1621 = vmatpush.bf16.msra.mxu0 0
        %1622 = vmatpush.bf16.msra.mxu0 0
        %1623 = vmatpush.bf16.msra.mxu0 0
        %1624 = vmatpush.bf16.msra.mxu0 0
        %1625 = vmatpush.bf16.msra.mxu0 0
        %1626 = vmatpush.bf16.msra.mxu0 0
        %1627 = vmatpush.bf16.msra.mxu0 %v1618
        %1628 = vmatpush.bf16.msra.mxu0 %v1617
        %1629 = vmatmul.bf16.gmra.mxu0 %v1429
        %v1630 = vpop.f32.mrf.mxu0
        %v1631 = vadd.f32 %v1553, %v1630
        %v1632 = vpop.f32.mrf.mxu0
        %1633 = vdwg.mxu0
        %v1638 = vunpack.c.l.b16 %v1539
        %v1639 = vunpack.c.l.b16 %v1540
        %v1640 = vunpack.c.l.b16 %v1541
        %v1641 = vunpack.c.l.b16 %v1542
        %v1642 = vpack.c.b16 %v1639, %v1638
        %v1643 = vpack.c.b16 %v1641, %v1640
        %1646 = vmatpush.bf16.msra.mxu0 0
        %1647 = vmatpush.bf16.msra.mxu0 0
        %1648 = vmatpush.bf16.msra.mxu0 0
        %1649 = vmatpush.bf16.msra.mxu0 0
        %1650 = vmatpush.bf16.msra.mxu0 0
        %1651 = vmatpush.bf16.msra.mxu0 0
        %1652 = vmatpush.bf16.msra.mxu0 %v1643
        %1653 = vmatpush.bf16.msra.mxu0 %v1642
        %1654 = vmatmul.bf16.gmra.mxu0 %v1429
        %v1655 = vpop.f32.mrf.mxu0
        %v1656 = vadd.f32 %v1554, %v1655
        %v1657 = vpop.f32.mrf.mxu0
        %1658 = vdwg.mxu0
        %v1659 = vpack.c.bf16 %v1581, %v1581
        %v1660 = vpack.c.bf16 %v1606, %v1606
        %v1661 = vpack.c.bf16 %v1631, %v1631
        %v1662 = vpack.c.bf16 %v1656, %v1656
        %1663 = vst.msk [vmem:[#allocation5] sm:$0xf] %vm1238, %v1659
        %1664 = vst.msk [vmem:[#allocation5 + $0x4] sm:$0xf] %vm1238, %v1660
        %1665 = vst.msk [vmem:[#allocation5 + $0x8] sm:$0xf] %vm1238, %v1661
        %1666 = vst.msk [vmem:[#allocation5 + $0xc] sm:$0xf] %vm1238, %v1662
      $region152: #{decoder_forward.2} parent=147 // pred_fallthru
        _
      %s1667 = smul.u32 %s81, 8
      %s1668 = sshra.s32 %s1667, 3
      %s1669 = sand.u32 %s1667, 7
      %s1670 = smul.addr %s1668, 4
      %s1671 = scalar_lea.vmem %s1063, %s1670
      %v1672 = vld [vmem:[%s1671] sm:$0xf]
      %v1673 = vld [vmem:[%s1084] sm:$0xff]
      %v1674 = vld [vmem:[%s1071] sm:$0xff]
      %v1675 = vld [vmem:[%s1074] sm:$0x1]
      %v1677 = vperm.slane %v1675, 0
      %v1679 = vadd.f32 %v1674, %v1677
      %v1680 = vld [vmem:[%s1077] sm:$0x1]
      %v1681 = vunpack.c.l.bf16 %v1672
      %v1682 = vld [vmem:[%s13] sm:$0xf]
      %v1683 = vld [vmem:[%s13 + $0x4] sm:$0xf]
      %v1684 = vld [vmem:[%s13 + $0x8] sm:$0xf]
      %v1685 = vld [vmem:[%s13 + $0xc] sm:$0xf]
      %v1686 = vld [vmem:[%s13 + $0x10] sm:$0xf]
      %v1687 = vld [vmem:[%s13 + $0x14] sm:$0xf]
      %v1688 = vld [vmem:[%s13 + $0x18] sm:$0xf]
      %v1689 = vld [vmem:[%s13 + $0x1c] sm:$0xf]
      %v1690 = vld [vmem:[%s13 + $0x20] sm:$0xf]
      %v1691 = vld [vmem:[%s13 + $0x24] sm:$0xf]
      %v1692 = vld [vmem:[%s13 + $0x28] sm:$0xf]
      %v1693 = vld [vmem:[%s13 + $0x2c] sm:$0xf]
      %v1694 = vld [vmem:[%s13 + $0x30] sm:$0xf]
      %v1695 = vld [vmem:[%s13 + $0x34] sm:$0xf]
      %v1696 = vld [vmem:[%s13 + $0x38] sm:$0xf]
      %v1697 = vld [vmem:[%s13 + $0x3c] sm:$0xf]
      %v1698 = vld [vmem:[%s15] sm:$0x1]
      %v1699 = vld [vmem:[%s15 + $0x1] sm:$0x1]
      %v1700 = vld [vmem:[%s15 + $0x2] sm:$0x1]
      %v1701 = vld [vmem:[%s15 + $0x3] sm:$0x1]
      %v1706 = vperm.slane %v1698, 0
      %v1707 = vperm.slane %v1699, 0
      %v1708 = vperm.slane %v1700, 0
      %v1709 = vperm.slane %v1701, 0
      %v1718 = vunpack.c.l.b16 %v1682
      %v1719 = vunpack.c.l.b16 %v1683
      %v1720 = vunpack.c.l.b16 %v1684
      %v1721 = vunpack.c.l.b16 %v1685
      %v1722 = vpack.c.b16 %v1719, %v1718
      %v1723 = vpack.c.b16 %v1721, %v1720
      %vm1726 = vcmask 261120
      %v1728 = vsel %vm1726, %v1672, 0
      %1730 = vmatpush.bf16.msra.mxu0 0
      %1731 = vmatpush.bf16.msra.mxu0 0
      %1732 = vmatpush.bf16.msra.mxu0 0
      %1733 = vmatpush.bf16.msra.mxu0 0
      %1734 = vmatpush.bf16.msra.mxu0 0
      %1735 = vmatpush.bf16.msra.mxu0 0
      %1736 = vmatpush.bf16.msra.mxu0 %v1723
      %1737 = vmatpush.bf16.msra.mxu0 %v1722
      %1738 = vmatmul.bf16.gmra.mxu0 %v1728
      %v1739 = vpop.f32.mrf.mxu0
      %v1740 = vadd.f32 %v1706, %v1739
      %v1741 = vpop.f32.mrf.mxu0
      %1742 = vdwg.mxu0
      %v1747 = vunpack.c.l.b16 %v1686
      %v1748 = vunpack.c.l.b16 %v1687
      %v1749 = vunpack.c.l.b16 %v1688
      %v1750 = vunpack.c.l.b16 %v1689
      %v1751 = vpack.c.b16 %v1748, %v1747
      %v1752 = vpack.c.b16 %v1750, %v1749
      %1755 = vmatpush.bf16.msra.mxu0 0
      %1756 = vmatpush.bf16.msra.mxu0 0
      %1757 = vmatpush.bf16.msra.mxu0 0
      %1758 = vmatpush.bf16.msra.mxu0 0
      %1759 = vmatpush.bf16.msra.mxu0 0
      %1760 = vmatpush.bf16.msra.mxu0 0
      %1761 = vmatpush.bf16.msra.mxu0 %v1752
      %1762 = vmatpush.bf16.msra.mxu0 %v1751
      %1763 = vmatmul.bf16.gmra.mxu0 %v1728
      %v1764 = vpop.f32.mrf.mxu0
      %v1765 = vadd.f32 %v1707, %v1764
      %v1766 = vpop.f32.mrf.mxu0
      %1767 = vdwg.mxu0
      %v1772 = vunpack.c.l.b16 %v1690
      %v1773 = vunpack.c.l.b16 %v1691
      %v1774 = vunpack.c.l.b16 %v1692
      %v1775 = vunpack.c.l.b16 %v1693
      %v1776 = vpack.c.b16 %v1773, %v1772
      %v1777 = vpack.c.b16 %v1775, %v1774
      %1780 = vmatpush.bf16.msra.mxu0 0
      %1781 = vmatpush.bf16.msra.mxu0 0
      %1782 = vmatpush.bf16.msra.mxu0 0
      %1783 = vmatpush.bf16.msra.mxu0 0
      %1784 = vmatpush.bf16.msra.mxu0 0
      %1785 = vmatpush.bf16.msra.mxu0 0
      %1786 = vmatpush.bf16.msra.mxu0 %v1777
      %1787 = vmatpush.bf16.msra.mxu0 %v1776
      %1788 = vmatmul.bf16.gmra.mxu0 %v1728
      %v1789 = vpop.f32.mrf.mxu0
      %v1790 = vadd.f32 %v1708, %v1789
      %v1791 = vpop.f32.mrf.mxu0
      %1792 = vdwg.mxu0
      %v1797 = vunpack.c.l.b16 %v1694
      %v1798 = vunpack.c.l.b16 %v1695
      %v1799 = vunpack.c.l.b16 %v1696
      %v1800 = vunpack.c.l.b16 %v1697
      %v1801 = vpack.c.b16 %v1798, %v1797
      %v1802 = vpack.c.b16 %v1800, %v1799
      %1805 = vmatpush.bf16.msra.mxu0 0
      %1806 = vmatpush.bf16.msra.mxu0 0
      %1807 = vmatpush.bf16.msra.mxu0 0
      %1808 = vmatpush.bf16.msra.mxu0 0
      %1809 = vmatpush.bf16.msra.mxu0 0
      %1810 = vmatpush.bf16.msra.mxu0 0
      %1811 = vmatpush.bf16.msra.mxu0 %v1802
      %1812 = vmatpush.bf16.msra.mxu0 %v1801
      %1813 = vmatmul.bf16.gmra.mxu0 %v1728
      %v1814 = vpop.f32.mrf.mxu0
      %v1815 = vadd.f32 %v1709, %v1814
      %v1816 = vpop.f32.mrf.mxu0
      %1817 = vdwg.mxu0
      %v1818 = vpack.c.bf16 %v1740, %v1740
      %v1819 = vpack.c.bf16 %v1765, %v1765
      %v1820 = vpack.c.bf16 %v1790, %v1790
      %v1821 = vpack.c.bf16 %v1815, %v1815
      %v1822 = vld [vmem:[#allocation2] sm:$0xf]
      %v1823 = vld [vmem:[#allocation2 + $0x4] sm:$0xf]
      %v1824 = vld [vmem:[#allocation2 + $0x8] sm:$0xf]
      %v1825 = vld [vmem:[#allocation2 + $0xc] sm:$0xf]
      %vm1826 = vcmask 64512
      %v1828 = vsel %vm1826, %v1818, 0
      %v1831 = vsel %vm1826, %v1822, 0
      %1833 = vmatpush.bf16.xpose.msra.mxu0 0
      %1834 = vmatpush.bf16.xpose.msra.mxu0 0
      %1835 = vmatpush.bf16.xpose.msra.mxu0 0
      %1836 = vmatpush.bf16.xpose.msra.mxu0 0
      %1837 = vmatpush.bf16.xpose.msra.mxu0 0
      %1838 = vmatpush.bf16.xpose.msra.mxu0 0
      %1839 = vmatpush.bf16.xpose.msra.mxu0 0
      %1840 = vmatpush.bf16.xpose.msra.mxu0 %v1831
      %1841 = vmatmul.bf16.gmra.mxu0 %v1828
      %v1842 = vpop.f32.mrf.mxu0
      %v1843 = vadd.f32 %v1679, %v1842
      %v1844 = vpop.f32.mrf.mxu0
      %1845 = vdwg.mxu0
      %v1847 = vsel %vm1826, %v1819, 0
      %v1850 = vsel %vm1826, %v1823, 0
      %1852 = vmatpush.bf16.xpose.msra.mxu0 0
      %1853 = vmatpush.bf16.xpose.msra.mxu0 0
      %1854 = vmatpush.bf16.xpose.msra.mxu0 0
      %1855 = vmatpush.bf16.xpose.msra.mxu0 0
      %1856 = vmatpush.bf16.xpose.msra.mxu0 0
      %1857 = vmatpush.bf16.xpose.msra.mxu0 0
      %1858 = vmatpush.bf16.xpose.msra.mxu0 0
      %1859 = vmatpush.bf16.xpose.msra.mxu0 %v1850
      %1860 = vmatmul.bf16.gmra.mxu0 %v1847
      %v1861 = vpop.f32.mrf.mxu0
      %v1862 = vadd.f32 %v1679, %v1861
      %v1863 = vpop.f32.mrf.mxu0
      %1864 = vdwg.mxu0
      %v1866 = vsel %vm1826, %v1820, 0
      %v1869 = vsel %vm1826, %v1824, 0
      %1871 = vmatpush.bf16.xpose.msra.mxu0 0
      %1872 = vmatpush.bf16.xpose.msra.mxu0 0
      %1873 = vmatpush.bf16.xpose.msra.mxu0 0
      %1874 = vmatpush.bf16.xpose.msra.mxu0 0
      %1875 = vmatpush.bf16.xpose.msra.mxu0 0
      %1876 = vmatpush.bf16.xpose.msra.mxu0 0
      %1877 = vmatpush.bf16.xpose.msra.mxu0 0
      %1878 = vmatpush.bf16.xpose.msra.mxu0 %v1869
      %1879 = vmatmul.bf16.gmra.mxu0 %v1866
      %v1880 = vpop.f32.mrf.mxu0
      %v1881 = vadd.f32 %v1679, %v1880
      %v1882 = vpop.f32.mrf.mxu0
      %1883 = vdwg.mxu0
      %v1885 = vsel %vm1826, %v1821, 0
      %v1888 = vsel %vm1826, %v1825, 0
      %1890 = vmatpush.bf16.xpose.msra.mxu0 0
      %1891 = vmatpush.bf16.xpose.msra.mxu0 0
      %1892 = vmatpush.bf16.xpose.msra.mxu0 0
      %1893 = vmatpush.bf16.xpose.msra.mxu0 0
      %1894 = vmatpush.bf16.xpose.msra.mxu0 0
      %1895 = vmatpush.bf16.xpose.msra.mxu0 0
      %1896 = vmatpush.bf16.xpose.msra.mxu0 0
      %1897 = vmatpush.bf16.xpose.msra.mxu0 %v1888
      %1898 = vmatmul.bf16.gmra.mxu0 %v1885
      %v1899 = vpop.f32.mrf.mxu0
      %v1900 = vadd.f32 %v1679, %v1899
      %v1901 = vpop.f32.mrf.mxu0
      %1902 = vdwg.mxu0
      %v1903 = vsel %vm1826, %v1843, -inf
      %1904 = vmax.xlane.f32.xlu0 %v1903
      %v1905 = vpop.xlane.xlu0 %1904
      %v1906 = vsel %vm1826, %v1862, -inf
      %1907 = vmax.xlane.f32.xlu0 %v1906
      %v1908 = vpop.xlane.xlu0 %1907
      %v1909 = vsel %vm1826, %v1881, -inf
      %1910 = vmax.xlane.f32.xlu0 %v1909
      %v1911 = vpop.xlane.xlu0 %1910
      %v1912 = vsel %vm1826, %v1900, -inf
      %1913 = vmax.xlane.f32.xlu0 %v1912
      %v1914 = vpop.xlane.xlu0 %1913
      %v1915 = vsub.f32 %v1843, %v1905
      %v1916 = vsub.f32 %v1862, %v1908
      %v1917 = vsub.f32 %v1881, %v1911
      %v1918 = vsub.f32 %v1900, %v1914
      %v1919 = vmul.f32 %v1915, 1.442695
      %v1920 = vpow.pop %v1919
      %v1921 = vmul.f32 %v1916, 1.442695
      %v1922 = vpow.pop %v1921
      %v1923 = vmul.f32 %v1917, 1.442695
      %v1924 = vpow.pop %v1923
      %v1925 = vmul.f32 %v1918, 1.442695
      %v1926 = vpow.pop %v1925
      %v1927 = vsel %vm1826, %v1920, 0.0
      %1928 = vadd.xlane.f32.xlu0 %v1927
      %v1929 = vpop.xlane.xlu0 %1928
      %v1930 = vsel %vm1826, %v1922, 0.0
      %1931 = vadd.xlane.f32.xlu0 %v1930
      %v1932 = vpop.xlane.xlu0 %1931
      %v1933 = vsel %vm1826, %v1924, 0.0
      %1934 = vadd.xlane.f32.xlu0 %v1933
      %v1935 = vpop.xlane.xlu0 %1934
      %v1936 = vsel %vm1826, %v1926, 0.0
      %1937 = vadd.xlane.f32.xlu0 %v1936
      %v1938 = vpop.xlane.xlu0 %1937
      %v1939 = vrcp.pop %v1929
      %v1940 = vrcp.pop %v1932
      %v1941 = vrcp.pop %v1935
      %v1942 = vrcp.pop %v1938
      %v1943 = vmul.f32 %v1920, %v1939
      %v1944 = vmul.f32 %v1922, %v1940
      %v1945 = vmul.f32 %v1924, %v1941
      %v1946 = vmul.f32 %v1926, %v1942
      %v1947 = vpack.c.bf16 %v1943, %v1943
      %v1948 = vpack.c.bf16 %v1944, %v1944
      %v1949 = vpack.c.bf16 %v1945, %v1945
      %v1950 = vpack.c.bf16 %v1946, %v1946
      %v1951 = vld [vmem:[#allocation3] sm:$0xf]
      %v1952 = vld [vmem:[#allocation3 + $0x4] sm:$0xf]
      %v1953 = vld [vmem:[#allocation3 + $0x8] sm:$0xf]
      %v1954 = vld [vmem:[#allocation3 + $0xc] sm:$0xf]
      %v1956 = vsel %vm1826, %v1947, 0
      %vm1958 = vcmask 1043456
      %v1960 = vsel %vm1958, %v1951, 0
      %1962 = vmatpush.bf16.msra.mxu0 0
      %1963 = vmatpush.bf16.msra.mxu0 0
      %1964 = vmatpush.bf16.msra.mxu0 0
      %1965 = vmatpush.bf16.msra.mxu0 0
      %1966 = vmatpush.bf16.msra.mxu0 0
      %1967 = vmatpush.bf16.msra.mxu0 0
      %1968 = vmatpush.bf16.msra.mxu0 0
      %1969 = vmatpush.bf16.msra.mxu0 %v1960
      %1970 = vmatmul.bf16.gmra.mxu0 %v1956
      %v1971 = vpop.f32.mrf.mxu0
      %v1972 = vadd.f32 0.0, %v1971
      %v1973 = vpop.f32.mrf.mxu0
      %1974 = vdwg.mxu0
      %v1976 = vsel %vm1826, %v1948, 0
      %v1979 = vsel %vm1958, %v1952, 0
      %1981 = vmatpush.bf16.msra.mxu0 0
      %1982 = vmatpush.bf16.msra.mxu0 0
      %1983 = vmatpush.bf16.msra.mxu0 0
      %1984 = vmatpush.bf16.msra.mxu0 0
      %1985 = vmatpush.bf16.msra.mxu0 0
      %1986 = vmatpush.bf16.msra.mxu0 0
      %1987 = vmatpush.bf16.msra.mxu0 0
      %1988 = vmatpush.bf16.msra.mxu0 %v1979
      %1989 = vmatmul.bf16.gmra.mxu0 %v1976
      %v1990 = vpop.f32.mrf.mxu0
      %v1991 = vadd.f32 0.0, %v1990
      %v1992 = vpop.f32.mrf.mxu0
      %1993 = vdwg.mxu0
      %v1995 = vsel %vm1826, %v1949, 0
      %v1998 = vsel %vm1958, %v1953, 0
      %2000 = vmatpush.bf16.msra.mxu0 0
      %2001 = vmatpush.bf16.msra.mxu0 0
      %2002 = vmatpush.bf16.msra.mxu0 0
      %2003 = vmatpush.bf16.msra.mxu0 0
      %2004 = vmatpush.bf16.msra.mxu0 0
      %2005 = vmatpush.bf16.msra.mxu0 0
      %2006 = vmatpush.bf16.msra.mxu0 0
      %2007 = vmatpush.bf16.msra.mxu0 %v1998
      %2008 = vmatmul.bf16.gmra.mxu0 %v1995
      %v2009 = vpop.f32.mrf.mxu0
      %v2010 = vadd.f32 0.0, %v2009
      %v2011 = vpop.f32.mrf.mxu0
      %2012 = vdwg.mxu0
      %v2014 = vsel %vm1826, %v1950, 0
      %v2017 = vsel %vm1958, %v1954, 0
      %2019 = vmatpush.bf16.msra.mxu0 0
      %2020 = vmatpush.bf16.msra.mxu0 0
      %2021 = vmatpush.bf16.msra.mxu0 0
      %2022 = vmatpush.bf16.msra.mxu0 0
      %2023 = vmatpush.bf16.msra.mxu0 0
      %2024 = vmatpush.bf16.msra.mxu0 0
      %2025 = vmatpush.bf16.msra.mxu0 0
      %2026 = vmatpush.bf16.msra.mxu0 %v2017
      %2027 = vmatmul.bf16.gmra.mxu0 %v2014
      %v2028 = vpop.f32.mrf.mxu0
      %v2029 = vadd.f32 0.0, %v2028
      %v2030 = vpop.f32.mrf.mxu0
      %2031 = vdwg.mxu0
      %v2032 = vpack.c.bf16 %v1972, %v1972
      %v2033 = vpack.c.bf16 %v1991, %v1991
      %v2034 = vpack.c.bf16 %v2010, %v2010
      %v2035 = vpack.c.bf16 %v2029, %v2029
      %v2036 = vld [vmem:[%s25] sm:$0xf]
      %v2037 = vld [vmem:[%s25 + $0x4] sm:$0xf]
      %v2038 = vld [vmem:[%s25 + $0x8] sm:$0xf]
      %v2039 = vld [vmem:[%s25 + $0xc] sm:$0xf]
      %v2041 = vsel %vm1826, %v2032, 0
      %v2044 = vsel %vm1958, %v2036, 0
      %2046 = vmatpush.bf16.msra.mxu0 0
      %2047 = vmatpush.bf16.msra.mxu0 0
      %2048 = vmatpush.bf16.msra.mxu0 0
      %2049 = vmatpush.bf16.msra.mxu0 0
      %2050 = vmatpush.bf16.msra.mxu0 0
      %2051 = vmatpush.bf16.msra.mxu0 0
      %2052 = vmatpush.bf16.msra.mxu0 0
      %2053 = vmatpush.bf16.msra.mxu0 %v2044
      %2054 = vmatmul.bf16.gmra.mxu0 %v2041
      %v2055 = vpop.f32.mrf.mxu0
      %v2056 = vadd.f32 0.0, %v2055
      %v2057 = vpop.f32.mrf.mxu0
      %2058 = vdwg.mxu0
      %v2060 = vsel %vm1826, %v2033, 0
      %v2063 = vsel %vm1958, %v2037, 0
      %2065 = vmatpush.bf16.msra.mxu0 0
      %2066 = vmatpush.bf16.msra.mxu0 0
      %2067 = vmatpush.bf16.msra.mxu0 0
      %2068 = vmatpush.bf16.msra.mxu0 0
      %2069 = vmatpush.bf16.msra.mxu0 0
      %2070 = vmatpush.bf16.msra.mxu0 0
      %2071 = vmatpush.bf16.msra.mxu0 0
      %2072 = vmatpush.bf16.msra.mxu0 %v2063
      %2073 = vmatmul.bf16.gmra.mxu0 %v2060
      %v2074 = vpop.f32.mrf.mxu0
      %v2075 = vadd.f32 0.0, %v2074
      %v2076 = vpop.f32.mrf.mxu0
      %2077 = vdwg.mxu0
      %v2079 = vsel %vm1826, %v2034, 0
      %v2082 = vsel %vm1958, %v2038, 0
      %2084 = vmatpush.bf16.msra.mxu0 0
      %2085 = vmatpush.bf16.msra.mxu0 0
      %2086 = vmatpush.bf16.msra.mxu0 0
      %2087 = vmatpush.bf16.msra.mxu0 0
      %2088 = vmatpush.bf16.msra.mxu0 0
      %2089 = vmatpush.bf16.msra.mxu0 0
      %2090 = vmatpush.bf16.msra.mxu0 0
      %2091 = vmatpush.bf16.msra.mxu0 %v2082
      %2092 = vmatmul.bf16.gmra.mxu0 %v2079
      %v2093 = vpop.f32.mrf.mxu0
      %v2094 = vadd.f32 0.0, %v2093
      %v2095 = vpop.f32.mrf.mxu0
      %2096 = vdwg.mxu0
      %v2098 = vsel %vm1826, %v2035, 0
      %v2101 = vsel %vm1958, %v2039, 0
      %2103 = vmatpush.bf16.msra.mxu0 0
      %2104 = vmatpush.bf16.msra.mxu0 0
      %2105 = vmatpush.bf16.msra.mxu0 0
      %2106 = vmatpush.bf16.msra.mxu0 0
      %2107 = vmatpush.bf16.msra.mxu0 0
      %2108 = vmatpush.bf16.msra.mxu0 0
      %2109 = vmatpush.bf16.msra.mxu0 0
      %2110 = vmatpush.bf16.msra.mxu0 %v2101
      %2111 = vmatmul.bf16.gmra.mxu0 %v2098
      %v2112 = vpop.f32.mrf.mxu0
      %v2113 = vadd.f32 0.0, %v2112
      %v2114 = vpop.f32.mrf.mxu0
      %2115 = vdwg.mxu0
      %v2116 = vsel %vm1726, %v2056, 0.0
      %v2117 = vsel %vm1726, %v2075, 0.0
      %v2118 = vadd.f32 %v2116, %v2117
      %v2119 = vsel %vm1726, %v2094, 0.0
      %v2120 = vadd.f32 %v2118, %v2119
      %v2121 = vsel %vm1726, %v2113, 0.0
      %v2122 = vadd.f32 %v2120, %v2121
      %v2123 = vld [vmem:[%s27] sm:$0x1]
      %v2125 = vperm.slane %v2123, 0
      %v2127 = vadd.f32 %v2122, %v2125
      %v2128 = vadd.f32 %v2127, %v1681
      %v2129 = vsel %vm1726, %v2128, 0.0
      %2130 = vadd.xlane.f32.xlu0 %v2129
      %v2131 = vpop.xlane.xlu0 %2130
      %v2132 = vrcp.pop 32.0
      %v2133 = vmul.f32 32.0, %v2132
      %v2134 = vsub.f32 1.0, %v2133
      %v2135 = vmul.f32 %v2132, %v2134
      %v2136 = vadd.f32 %v2132, %v2135
      %vm2137 = vweird.f32 %v2132
      %v2138 = vsel %vm2137, %v2132, %v2136
      %v2139 = vmul.f32 %v2131, %v2138
      %v2140 = vsub.f32 %v2128, %v2139
      %v2141 = vmul.f32 %v2140, %v2140
      %v2142 = vsel %vm1726, %v2141, 0.0
      %2143 = vadd.xlane.f32.xlu0 %v2142
      %v2144 = vpop.xlane.xlu0 %2143
      %v2145 = vmul.f32 %v2144, %v2138
      %v2146 = vadd.f32 %v2145, 1e-05
      %v2147 = vrsqrt.pop %v2146
      %v2148 = vmul.f32 %v2147, %v2146
      %v2149 = vmul.f32 %v2148, %v2147
      %v2150 = vmul.f32 0.5, %v2149
      %v2151 = vsub.f32 1.5, %v2150
      %v2152 = vmul.f32 %v2147, %v2151
      %vm2153 = vweird.f32 %v2146
      %vm2154 = vweird.f32 %v2147
      %vm2155 = vmor %vm2153, %vm2154
      %v2156 = vsel %vm2155, %v2147, %v2152
      %v2157 = vmul.f32 %v2140, %v2156
      %v2158 = vld [vmem:[%s29] sm:$0x1]
      %v2160 = vperm.slane %v2158, 0
      %v2162 = vmul.f32 %v2157, %v2160
      %v2163 = vld [vmem:[%s31] sm:$0x1]
      %v2165 = vperm.slane %v2163, 0
      %v2167 = vadd.f32 %v2162, %v2165
      %2169 = vset.pattern.permute.xlu0 0
      %2170 = vperm.xlu0 %2169, %v1673
      %v2171 = vpop.permute.xlu0 %2170
      %v2173 = vmul.f32 %v2167, %v2171
      %v2174 = vpack.c.bf16 %v2173, %v2173
      %v2175 = vld [vmem:[%s33] sm:$0xf]
      %v2176 = vld [vmem:[%s33 + $0x4] sm:$0xf]
      %v2177 = vld [vmem:[%s33 + $0x8] sm:$0xf]
      %v2178 = vld [vmem:[%s33 + $0xc] sm:$0xf]
      %v2179 = vld [vmem:[%s33 + $0x10] sm:$0xf]
      %v2180 = vld [vmem:[%s33 + $0x14] sm:$0xf]
      %v2181 = vld [vmem:[%s33 + $0x18] sm:$0xf]
      %v2182 = vld [vmem:[%s33 + $0x1c] sm:$0xf]
      %v2183 = vld [vmem:[%s33 + $0x20] sm:$0xf]
      %v2184 = vld [vmem:[%s33 + $0x24] sm:$0xf]
      %v2185 = vld [vmem:[%s33 + $0x28] sm:$0xf]
      %v2186 = vld [vmem:[%s33 + $0x2c] sm:$0xf]
      %v2187 = vld [vmem:[%s33 + $0x30] sm:$0xf]
      %v2188 = vld [vmem:[%s33 + $0x34] sm:$0xf]
      %v2189 = vld [vmem:[%s33 + $0x38] sm:$0xf]
      %v2190 = vld [vmem:[%s33 + $0x3c] sm:$0xf]
      %v2191 = vld [vmem:[%s35] sm:$0x1]
      %v2192 = vld [vmem:[%s35 + $0x1] sm:$0x1]
      %v2193 = vld [vmem:[%s35 + $0x2] sm:$0x1]
      %v2194 = vld [vmem:[%s35 + $0x3] sm:$0x1]
      %v2199 = vperm.slane %v2191, 0
      %v2200 = vperm.slane %v2192, 0
      %v2201 = vperm.slane %v2193, 0
      %v2202 = vperm.slane %v2194, 0
      %v2211 = vunpack.c.l.b16 %v2175
      %v2212 = vunpack.c.l.b16 %v2176
      %v2213 = vunpack.c.l.b16 %v2177
      %v2214 = vunpack.c.l.b16 %v2178
      %v2215 = vpack.c.b16 %v2212, %v2211
      %v2216 = vpack.c.b16 %v2214, %v2213
      %v2220 = vsel %vm1726, %v2174, 0
      %2222 = vmatpush.bf16.msra.mxu0 0
      %2223 = vmatpush.bf16.msra.mxu0 0
      %2224 = vmatpush.bf16.msra.mxu0 0
      %2225 = vmatpush.bf16.msra.mxu0 0
      %2226 = vmatpush.bf16.msra.mxu0 0
      %2227 = vmatpush.bf16.msra.mxu0 0
      %2228 = vmatpush.bf16.msra.mxu0 %v2216
      %2229 = vmatpush.bf16.msra.mxu0 %v2215
      %2230 = vmatmul.bf16.gmra.mxu0 %v2220
      %v2231 = vpop.f32.mrf.mxu0
      %v2232 = vadd.f32 %v2199, %v2231
      %v2233 = vpop.f32.mrf.mxu0
      %2234 = vdwg.mxu0
      %v2239 = vunpack.c.l.b16 %v2179
      %v2240 = vunpack.c.l.b16 %v2180
      %v2241 = vunpack.c.l.b16 %v2181
      %v2242 = vunpack.c.l.b16 %v2182
      %v2243 = vpack.c.b16 %v2240, %v2239
      %v2244 = vpack.c.b16 %v2242, %v2241
      %2247 = vmatpush.bf16.msra.mxu0 0
      %2248 = vmatpush.bf16.msra.mxu0 0
      %2249 = vmatpush.bf16.msra.mxu0 0
      %2250 = vmatpush.bf16.msra.mxu0 0
      %2251 = vmatpush.bf16.msra.mxu0 0
      %2252 = vmatpush.bf16.msra.mxu0 0
      %2253 = vmatpush.bf16.msra.mxu0 %v2244
      %2254 = vmatpush.bf16.msra.mxu0 %v2243
      %2255 = vmatmul.bf16.gmra.mxu0 %v2220
      %v2256 = vpop.f32.mrf.mxu0
      %v2257 = vadd.f32 %v2200, %v2256
      %v2258 = vpop.f32.mrf.mxu0
      %2259 = vdwg.mxu0
      %v2264 = vunpack.c.l.b16 %v2183
      %v2265 = vunpack.c.l.b16 %v2184
      %v2266 = vunpack.c.l.b16 %v2185
      %v2267 = vunpack.c.l.b16 %v2186
      %v2268 = vpack.c.b16 %v2265, %v2264
      %v2269 = vpack.c.b16 %v2267, %v2266
      %2272 = vmatpush.bf16.msra.mxu0 0
      %2273 = vmatpush.bf16.msra.mxu0 0
      %2274 = vmatpush.bf16.msra.mxu0 0
      %2275 = vmatpush.bf16.msra.mxu0 0
      %2276 = vmatpush.bf16.msra.mxu0 0
      %2277 = vmatpush.bf16.msra.mxu0 0
      %2278 = vmatpush.bf16.msra.mxu0 %v2269
      %2279 = vmatpush.bf16.msra.mxu0 %v2268
      %2280 = vmatmul.bf16.gmra.mxu0 %v2220
      %v2281 = vpop.f32.mrf.mxu0
      %v2282 = vadd.f32 %v2201, %v2281
      %v2283 = vpop.f32.mrf.mxu0
      %2284 = vdwg.mxu0
      %v2289 = vunpack.c.l.b16 %v2187
      %v2290 = vunpack.c.l.b16 %v2188
      %v2291 = vunpack.c.l.b16 %v2189
      %v2292 = vunpack.c.l.b16 %v2190
      %v2293 = vpack.c.b16 %v2290, %v2289
      %v2294 = vpack.c.b16 %v2292, %v2291
      %2297 = vmatpush.bf16.msra.mxu0 0
      %2298 = vmatpush.bf16.msra.mxu0 0
      %2299 = vmatpush.bf16.msra.mxu0 0
      %2300 = vmatpush.bf16.msra.mxu0 0
      %2301 = vmatpush.bf16.msra.mxu0 0
      %2302 = vmatpush.bf16.msra.mxu0 0
      %2303 = vmatpush.bf16.msra.mxu0 %v2294
      %2304 = vmatpush.bf16.msra.mxu0 %v2293
      %2305 = vmatmul.bf16.gmra.mxu0 %v2220
      %v2306 = vpop.f32.mrf.mxu0
      %v2307 = vadd.f32 %v2202, %v2306
      %v2308 = vpop.f32.mrf.mxu0
      %2309 = vdwg.mxu0
      %v2310 = vpack.c.bf16 %v2232, %v2232
      %v2311 = vpack.c.bf16 %v2257, %v2257
      %v2312 = vpack.c.bf16 %v2282, %v2282
      %v2313 = vpack.c.bf16 %v2307, %v2307
      %v2314 = vld [vmem:[#allocation4] sm:$0xf]
      %v2315 = vld [vmem:[#allocation4 + $0x4] sm:$0xf]
      %v2316 = vld [vmem:[#allocation4 + $0x8] sm:$0xf]
      %v2317 = vld [vmem:[#allocation4 + $0xc] sm:$0xf]
      %v2319 = vperm.slane %v1680, 0
      %v2322 = vsel %vm1826, %v2310, 0
      %v2325 = vsel %vm1826, %v2314, 0
      %2327 = vmatpush.bf16.xpose.msra.mxu0 0
      %2328 = vmatpush.bf16.xpose.msra.mxu0 0
      %2329 = vmatpush.bf16.xpose.msra.mxu0 0
      %2330 = vmatpush.bf16.xpose.msra.mxu0 0
      %2331 = vmatpush.bf16.xpose.msra.mxu0 0
      %2332 = vmatpush.bf16.xpose.msra.mxu0 0
      %2333 = vmatpush.bf16.xpose.msra.mxu0 0
      %2334 = vmatpush.bf16.xpose.msra.mxu0 %v2325
      %2335 = vmatmul.bf16.gmra.mxu0 %v2322
      %v2336 = vpop.f32.mrf.mxu0
      %v2337 = vadd.f32 %v2319, %v2336
      %v2338 = vpop.f32.mrf.mxu0
      %2339 = vdwg.mxu0
      %v2341 = vsel %vm1826, %v2311, 0
      %v2344 = vsel %vm1826, %v2315, 0
      %2346 = vmatpush.bf16.xpose.msra.mxu0 0
      %2347 = vmatpush.bf16.xpose.msra.mxu0 0
      %2348 = vmatpush.bf16.xpose.msra.mxu0 0
      %2349 = vmatpush.bf16.xpose.msra.mxu0 0
      %2350 = vmatpush.bf16.xpose.msra.mxu0 0
      %2351 = vmatpush.bf16.xpose.msra.mxu0 0
      %2352 = vmatpush.bf16.xpose.msra.mxu0 0
      %2353 = vmatpush.bf16.xpose.msra.mxu0 %v2344
      %2354 = vmatmul.bf16.gmra.mxu0 %v2341
      %v2355 = vpop.f32.mrf.mxu0
      %v2356 = vadd.f32 %v2319, %v2355
      %v2357 = vpop.f32.mrf.mxu0
      %2358 = vdwg.mxu0
      %v2360 = vsel %vm1826, %v2312, 0
      %v2363 = vsel %vm1826, %v2316, 0
      %2365 = vmatpush.bf16.xpose.msra.mxu0 0
      %2366 = vmatpush.bf16.xpose.msra.mxu0 0
      %2367 = vmatpush.bf16.xpose.msra.mxu0 0
      %2368 = vmatpush.bf16.xpose.msra.mxu0 0
      %2369 = vmatpush.bf16.xpose.msra.mxu0 0
      %2370 = vmatpush.bf16.xpose.msra.mxu0 0
      %2371 = vmatpush.bf16.xpose.msra.mxu0 0
      %2372 = vmatpush.bf16.xpose.msra.mxu0 %v2363
      %2373 = vmatmul.bf16.gmra.mxu0 %v2360
      %v2374 = vpop.f32.mrf.mxu0
      %v2375 = vadd.f32 %v2319, %v2374
      %v2376 = vpop.f32.mrf.mxu0
      %2377 = vdwg.mxu0
      %v2379 = vsel %vm1826, %v2313, 0
      %v2382 = vsel %vm1826, %v2317, 0
      %2384 = vmatpush.bf16.xpose.msra.mxu0 0
      %2385 = vmatpush.bf16.xpose.msra.mxu0 0
      %2386 = vmatpush.bf16.xpose.msra.mxu0 0
      %2387 = vmatpush.bf16.xpose.msra.mxu0 0
      %2388 = vmatpush.bf16.xpose.msra.mxu0 0
      %2389 = vmatpush.bf16.xpose.msra.mxu0 0
      %2390 = vmatpush.bf16.xpose.msra.mxu0 0
      %2391 = vmatpush.bf16.xpose.msra.mxu0 %v2382
      %2392 = vmatmul.bf16.gmra.mxu0 %v2379
      %v2393 = vpop.f32.mrf.mxu0
      %v2394 = vadd.f32 %v2319, %v2393
      %v2395 = vpop.f32.mrf.mxu0
      %2396 = vdwg.mxu0
      %v2397 = vsel %vm1826, %v2337, -inf
      %2398 = vmax.xlane.f32.xlu0 %v2397
      %v2399 = vpop.xlane.xlu0 %2398
      %v2400 = vsel %vm1826, %v2356, -inf
      %2401 = vmax.xlane.f32.xlu0 %v2400
      %v2402 = vpop.xlane.xlu0 %2401
      %v2403 = vsel %vm1826, %v2375, -inf
      %2404 = vmax.xlane.f32.xlu0 %v2403
      %v2405 = vpop.xlane.xlu0 %2404
      %v2406 = vsel %vm1826, %v2394, -inf
      %2407 = vmax.xlane.f32.xlu0 %v2406
      %v2408 = vpop.xlane.xlu0 %2407
      %v2409 = vsub.f32 %v2337, %v2399
      %v2410 = vsub.f32 %v2356, %v2402
      %v2411 = vsub.f32 %v2375, %v2405
      %v2412 = vsub.f32 %v2394, %v2408
      %v2413 = vmul.f32 %v2409, 1.442695
      %v2414 = vpow.pop %v2413
      %v2415 = vmul.f32 %v2410, 1.442695
      %v2416 = vpow.pop %v2415
      %v2417 = vmul.f32 %v2411, 1.442695
      %v2418 = vpow.pop %v2417
      %v2419 = vmul.f32 %v2412, 1.442695
      %v2420 = vpow.pop %v2419
      %v2421 = vsel %vm1826, %v2414, 0.0
      %2422 = vadd.xlane.f32.xlu0 %v2421
      %v2423 = vpop.xlane.xlu0 %2422
      %v2424 = vsel %vm1826, %v2416, 0.0
      %2425 = vadd.xlane.f32.xlu0 %v2424
      %v2426 = vpop.xlane.xlu0 %2425
      %v2427 = vsel %vm1826, %v2418, 0.0
      %2428 = vadd.xlane.f32.xlu0 %v2427
      %v2429 = vpop.xlane.xlu0 %2428
      %v2430 = vsel %vm1826, %v2420, 0.0
      %2431 = vadd.xlane.f32.xlu0 %v2430
      %v2432 = vpop.xlane.xlu0 %2431
      %v2433 = vrcp.pop %v2423
      %v2434 = vrcp.pop %v2426
      %v2435 = vrcp.pop %v2429
      %v2436 = vrcp.pop %v2432
      %v2437 = vmul.f32 %v2414, %v2433
      %v2438 = vmul.f32 %v2416, %v2434
      %v2439 = vmul.f32 %v2418, %v2435
      %v2440 = vmul.f32 %v2420, %v2436
      %v2441 = vpack.c.bf16 %v2437, %v2437
      %v2442 = vpack.c.bf16 %v2438, %v2438
      %v2443 = vpack.c.bf16 %v2439, %v2439
      %v2444 = vpack.c.bf16 %v2440, %v2440
      %v2445 = vld [vmem:[#allocation5] sm:$0xf]
      %v2446 = vld [vmem:[#allocation5 + $0x4] sm:$0xf]
      %v2447 = vld [vmem:[#allocation5 + $0x8] sm:$0xf]
      %v2448 = vld [vmem:[#allocation5 + $0xc] sm:$0xf]
      %v2450 = vsel %vm1826, %v2441, 0
      %v2453 = vsel %vm1958, %v2445, 0
      %2455 = vmatpush.bf16.msra.mxu0 0
      %2456 = vmatpush.bf16.msra.mxu0 0
      %2457 = vmatpush.bf16.msra.mxu0 0
      %2458 = vmatpush.bf16.msra.mxu0 0
      %2459 = vmatpush.bf16.msra.mxu0 0
      %2460 = vmatpush.bf16.msra.mxu0 0
      %2461 = vmatpush.bf16.msra.mxu0 0
      %2462 = vmatpush.bf16.msra.mxu0 %v2453
      %2463 = vmatmul.bf16.gmra.mxu0 %v2450
      %v2464 = vpop.f32.mrf.mxu0
      %v2465 = vadd.f32 0.0, %v2464
      %v2466 = vpop.f32.mrf.mxu0
      %2467 = vdwg.mxu0
      %v2469 = vsel %vm1826, %v2442, 0
      %v2472 = vsel %vm1958, %v2446, 0
      %2474 = vmatpush.bf16.msra.mxu0 0
      %2475 = vmatpush.bf16.msra.mxu0 0
      %2476 = vmatpush.bf16.msra.mxu0 0
      %2477 = vmatpush.bf16.msra.mxu0 0
      %2478 = vmatpush.bf16.msra.mxu0 0
      %2479 = vmatpush.bf16.msra.mxu0 0
      %2480 = vmatpush.bf16.msra.mxu0 0
      %2481 = vmatpush.bf16.msra.mxu0 %v2472
      %2482 = vmatmul.bf16.gmra.mxu0 %v2469
      %v2483 = vpop.f32.mrf.mxu0
      %v2484 = vadd.f32 0.0, %v2483
      %v2485 = vpop.f32.mrf.mxu0
      %2486 = vdwg.mxu0
      %v2488 = vsel %vm1826, %v2443, 0
      %v2491 = vsel %vm1958, %v2447, 0
      %2493 = vmatpush.bf16.msra.mxu0 0
      %2494 = vmatpush.bf16.msra.mxu0 0
      %2495 = vmatpush.bf16.msra.mxu0 0
      %2496 = vmatpush.bf16.msra.mxu0 0
      %2497 = vmatpush.bf16.msra.mxu0 0
      %2498 = vmatpush.bf16.msra.mxu0 0
      %2499 = vmatpush.bf16.msra.mxu0 0
      %2500 = vmatpush.bf16.msra.mxu0 %v2491
      %2501 = vmatmul.bf16.gmra.mxu0 %v2488
      %v2502 = vpop.f32.mrf.mxu0
      %v2503 = vadd.f32 0.0, %v2502
      %v2504 = vpop.f32.mrf.mxu0
      %2505 = vdwg.mxu0
      %v2507 = vsel %vm1826, %v2444, 0
      %v2510 = vsel %vm1958, %v2448, 0
      %2512 = vmatpush.bf16.msra.mxu0 0
      %2513 = vmatpush.bf16.msra.mxu0 0
      %2514 = vmatpush.bf16.msra.mxu0 0
      %2515 = vmatpush.bf16.msra.mxu0 0
      %2516 = vmatpush.bf16.msra.mxu0 0
      %2517 = vmatpush.bf16.msra.mxu0 0
      %2518 = vmatpush.bf16.msra.mxu0 0
      %2519 = vmatpush.bf16.msra.mxu0 %v2510
      %2520 = vmatmul.bf16.gmra.mxu0 %v2507
      %v2521 = vpop.f32.mrf.mxu0
      %v2522 = vadd.f32 0.0, %v2521
      %v2523 = vpop.f32.mrf.mxu0
      %2524 = vdwg.mxu0
      %v2525 = vpack.c.bf16 %v2465, %v2465
      %v2526 = vpack.c.bf16 %v2484, %v2484
      %v2527 = vpack.c.bf16 %v2503, %v2503
      %v2528 = vpack.c.bf16 %v2522, %v2522
      %v2529 = vld [vmem:[%s45] sm:$0xf]
      %v2530 = vld [vmem:[%s45 + $0x4] sm:$0xf]
      %v2531 = vld [vmem:[%s45 + $0x8] sm:$0xf]
      %v2532 = vld [vmem:[%s45 + $0xc] sm:$0xf]
      %v2534 = vsel %vm1826, %v2525, 0
      %v2537 = vsel %vm1958, %v2529, 0
      %2539 = vmatpush.bf16.msra.mxu0 0
      %2540 = vmatpush.bf16.msra.mxu0 0
      %2541 = vmatpush.bf16.msra.mxu0 0
      %2542 = vmatpush.bf16.msra.mxu0 0
      %2543 = vmatpush.bf16.msra.mxu0 0
      %2544 = vmatpush.bf16.msra.mxu0 0
      %2545 = vmatpush.bf16.msra.mxu0 0
      %2546 = vmatpush.bf16.msra.mxu0 %v2537
      %2547 = vmatmul.bf16.gmra.mxu0 %v2534
      %v2548 = vpop.f32.mrf.mxu0
      %v2549 = vadd.f32 0.0, %v2548
      %v2550 = vpop.f32.mrf.mxu0
      %2551 = vdwg.mxu0
      %v2553 = vsel %vm1826, %v2526, 0
      %v2556 = vsel %vm1958, %v2530, 0
      %2558 = vmatpush.bf16.msra.mxu0 0
      %2559 = vmatpush.bf16.msra.mxu0 0
      %2560 = vmatpush.bf16.msra.mxu0 0
      %2561 = vmatpush.bf16.msra.mxu0 0
      %2562 = vmatpush.bf16.msra.mxu0 0
      %2563 = vmatpush.bf16.msra.mxu0 0
      %2564 = vmatpush.bf16.msra.mxu0 0
      %2565 = vmatpush.bf16.msra.mxu0 %v2556
      %2566 = vmatmul.bf16.gmra.mxu0 %v2553
      %v2567 = vpop.f32.mrf.mxu0
      %v2568 = vadd.f32 0.0, %v2567
      %v2569 = vpop.f32.mrf.mxu0
      %2570 = vdwg.mxu0
      %v2572 = vsel %vm1826, %v2527, 0
      %v2575 = vsel %vm1958, %v2531, 0
      %2577 = vmatpush.bf16.msra.mxu0 0
      %2578 = vmatpush.bf16.msra.mxu0 0
      %2579 = vmatpush.bf16.msra.mxu0 0
      %2580 = vmatpush.bf16.msra.mxu0 0
      %2581 = vmatpush.bf16.msra.mxu0 0
      %2582 = vmatpush.bf16.msra.mxu0 0
      %2583 = vmatpush.bf16.msra.mxu0 0
      %2584 = vmatpush.bf16.msra.mxu0 %v2575
      %2585 = vmatmul.bf16.gmra.mxu0 %v2572
      %v2586 = vpop.f32.mrf.mxu0
      %v2587 = vadd.f32 0.0, %v2586
      %v2588 = vpop.f32.mrf.mxu0
      %2589 = vdwg.mxu0
      %v2591 = vsel %vm1826, %v2528, 0
      %v2594 = vsel %vm1958, %v2532, 0
      %2596 = vmatpush.bf16.msra.mxu0 0
      %2597 = vmatpush.bf16.msra.mxu0 0
      %2598 = vmatpush.bf16.msra.mxu0 0
      %2599 = vmatpush.bf16.msra.mxu0 0
      %2600 = vmatpush.bf16.msra.mxu0 0
      %2601 = vmatpush.bf16.msra.mxu0 0
      %2602 = vmatpush.bf16.msra.mxu0 0
      %2603 = vmatpush.bf16.msra.mxu0 %v2594
      %2604 = vmatmul.bf16.gmra.mxu0 %v2591
      %v2605 = vpop.f32.mrf.mxu0
      %v2606 = vadd.f32 0.0, %v2605
      %v2607 = vpop.f32.mrf.mxu0
      %2608 = vdwg.mxu0
      %v2609 = vsel %vm1726, %v2549, 0.0
      %v2610 = vsel %vm1726, %v2568, 0.0
      %v2611 = vadd.f32 %v2609, %v2610
      %v2612 = vsel %vm1726, %v2587, 0.0
      %v2613 = vadd.f32 %v2611, %v2612
      %v2614 = vsel %vm1726, %v2606, 0.0
      %v2615 = vadd.f32 %v2613, %v2614
      %v2616 = vld [vmem:[%s47] sm:$0x1]
      %v2618 = vperm.slane %v2616, 0
      %v2620 = vadd.f32 %v2615, %v2618
      %v2621 = vadd.f32 %v2620, %v2173
      %v2622 = vsel %vm1726, %v2621, 0.0
      %2623 = vadd.xlane.f32.xlu0 %v2622
      %v2624 = vpop.xlane.xlu0 %2623
      %v2625 = vmul.f32 %v2624, %v2138
      %v2626 = vsub.f32 %v2621, %v2625
      %v2627 = vmul.f32 %v2626, %v2626
      %v2628 = vsel %vm1726, %v2627, 0.0
      %2629 = vadd.xlane.f32.xlu0 %v2628
      %v2630 = vpop.xlane.xlu0 %2629
      %v2631 = vmul.f32 %v2630, %v2138
      %v2632 = vadd.f32 %v2631, 1e-05
      %v2633 = vrsqrt.pop %v2632
      %v2634 = vmul.f32 %v2633, %v2632
      %v2635 = vmul.f32 %v2634, %v2633
      %v2636 = vmul.f32 0.5, %v2635
      %v2637 = vsub.f32 1.5, %v2636
      %v2638 = vmul.f32 %v2633, %v2637
      %vm2639 = vweird.f32 %v2632
      %vm2640 = vweird.f32 %v2633
      %vm2641 = vmor %vm2639, %vm2640
      %v2642 = vsel %vm2641, %v2633, %v2638
      %v2643 = vmul.f32 %v2626, %v2642
      %v2644 = vld [vmem:[%s49] sm:$0x1]
      %v2646 = vperm.slane %v2644, 0
      %v2648 = vmul.f32 %v2643, %v2646
      %v2649 = vld [vmem:[%s51] sm:$0x1]
      %v2651 = vperm.slane %v2649, 0
      %v2653 = vadd.f32 %v2648, %v2651
      %v2654 = vmul.f32 %v2653, %v2171
      %v2655 = vpack.c.bf16 %v2654, %v2654
      %v2656 = vld [vmem:[%s53] sm:$0xf]
      %v2657 = vld [vmem:[%s53 + $0x4] sm:$0xf]
      %v2658 = vld [vmem:[%s53 + $0x8] sm:$0xf]
      %v2659 = vld [vmem:[%s53 + $0xc] sm:$0xf]
      %v2660 = vld [vmem:[%s55] sm:$0x1]
      %v2662 = vperm.slane %v2660, 0
      %v2668 = vunpack.c.l.b16 %v2656
      %v2669 = vunpack.c.l.b16 %v2657
      %v2670 = vunpack.c.l.b16 %v2658
      %v2671 = vunpack.c.l.b16 %v2659
      %v2672 = vpack.c.b16 %v2669, %v2668
      %v2673 = vpack.c.b16 %v2671, %v2670
      %v2677 = vsel %vm1726, %v2655, 0
      %2679 = vmatpush.bf16.msra.mxu0 0
      %2680 = vmatpush.bf16.msra.mxu0 0
      %2681 = vmatpush.bf16.msra.mxu0 0
      %2682 = vmatpush.bf16.msra.mxu0 0
      %2683 = vmatpush.bf16.msra.mxu0 0
      %2684 = vmatpush.bf16.msra.mxu0 0
      %2685 = vmatpush.bf16.msra.mxu0 %v2673
      %2686 = vmatpush.bf16.msra.mxu0 %v2672
      %2687 = vmatmul.bf16.gmra.mxu0 %v2677
      %v2688 = vpop.f32.mrf.mxu0
      %v2689 = vadd.f32 %v2662, %v2688
      %v2690 = vpop.f32.mrf.mxu0
      %2691 = vdwg.mxu0
      %v2692 = vmax.f32 %v2689, 0.0
      %v2693 = vpack.c.bf16 %v2692, %v2692
      %v2694 = vld [vmem:[%s57] sm:$0xf]
      %v2695 = vld [vmem:[%s57 + $0x4] sm:$0xf]
      %v2696 = vld [vmem:[%s57 + $0x8] sm:$0xf]
      %v2697 = vld [vmem:[%s57 + $0xc] sm:$0xf]
      %v2698 = vld [vmem:[%s57 + $0x10] sm:$0xf]
      %v2699 = vld [vmem:[%s57 + $0x14] sm:$0xf]
      %v2700 = vld [vmem:[%s57 + $0x18] sm:$0xf]
      %v2701 = vld [vmem:[%s57 + $0x1c] sm:$0xf]
      %v2702 = vld [vmem:[%s59] sm:$0x1]
      %v2704 = vperm.slane %v2702, 0
      %v2714 = vunpack.c.l.b16 %v2694
      %v2715 = vunpack.c.l.b16 %v2695
      %v2716 = vunpack.c.l.b16 %v2696
      %v2717 = vunpack.c.l.b16 %v2697
      %v2718 = vunpack.c.l.b16 %v2698
      %v2719 = vunpack.c.l.b16 %v2699
      %v2720 = vunpack.c.l.b16 %v2700
      %v2721 = vunpack.c.l.b16 %v2701
      %v2722 = vpack.c.b16 %v2715, %v2714
      %v2723 = vpack.c.b16 %v2717, %v2716
      %v2724 = vpack.c.b16 %v2719, %v2718
      %v2725 = vpack.c.b16 %v2721, %v2720
      %vm2730 = vcmask 523264
      %v2732 = vsel %vm2730, %v2693, 0
      %2734 = vmatpush.bf16.msra.mxu0 0
      %2735 = vmatpush.bf16.msra.mxu0 0
      %2736 = vmatpush.bf16.msra.mxu0 0
      %2737 = vmatpush.bf16.msra.mxu0 0
      %2738 = vmatpush.bf16.msra.mxu0 %v2725
      %2739 = vmatpush.bf16.msra.mxu0 %v2724
      %2740 = vmatpush.bf16.msra.mxu0 %v2723
      %2741 = vmatpush.bf16.msra.mxu0 %v2722
      %2742 = vmatmul.bf16.gmra.mxu0 %v2732
      %v2743 = vpop.f32.mrf.mxu0
      %v2744 = vadd.f32 %v2704, %v2743
      %v2745 = vpop.f32.mrf.mxu0
      %2746 = vdwg.mxu0
      %v2747 = vadd.f32 %v2744, %v2654
      %v2748 = vsel %vm1726, %v2747, 0.0
      %2749 = vadd.xlane.f32.xlu0 %v2748
      %v2750 = vpop.xlane.xlu0 %2749
      %v2751 = vmul.f32 %v2750, %v2138
      %v2752 = vsub.f32 %v2747, %v2751
      %v2753 = vmul.f32 %v2752, %v2752
      %v2754 = vsel %vm1726, %v2753, 0.0
      %2755 = vadd.xlane.f32.xlu0 %v2754
      %v2756 = vpop.xlane.xlu0 %2755
      %v2757 = vmul.f32 %v2756, %v2138
      %v2758 = vadd.f32 %v2757, 1e-05
      %v2759 = vrsqrt.pop %v2758
      %v2760 = vmul.f32 %v2759, %v2758
      %v2761 = vmul.f32 %v2760, %v2759
      %v2762 = vmul.f32 0.5, %v2761
      %v2763 = vsub.f32 1.5, %v2762
      %v2764 = vmul.f32 %v2759, %v2763
      %vm2765 = vweird.f32 %v2758
      %vm2766 = vweird.f32 %v2759
      %vm2767 = vmor %vm2765, %vm2766
      %v2768 = vsel %vm2767, %v2759, %v2764
      %v2769 = vmul.f32 %v2752, %v2768
      %v2770 = vld [vmem:[%s61] sm:$0x1]
      %v2772 = vperm.slane %v2770, 0
      %v2774 = vmul.f32 %v2769, %v2772
      %v2775 = vld [vmem:[%s63] sm:$0x1]
      %v2777 = vperm.slane %v2775, 0
      %v2779 = vadd.f32 %v2774, %v2777
      %v2780 = vmul.f32 %v2779, %v2171
      %v2781 = vpack.c.bf16 %v2780, %v2780
      %vm2782 = vcmask 257024
      %2783 = vst.msk [vmem:[%s1091] sm:$0xf] %vm2782, %v2781
      %p2784 = scmp.lt.s32.totalorder %s80, 1
      %s2785 = scalar_select %p2784, %s80, 1
      %p2786 = scmp.lt.s32.totalorder %s81, 0
      %s2787 = scalar_select %p2786, %s81, 0
      %s2788 = sadd.s32 %s2787, %s2785
      %s2789 = smul.addr %s2788, 4
      %s2790 = scalar_lea.vmem %s65, %s2789
      // Predicated region
      $region153: #{decoder_forward.2} parent=147 // pred_check
        %p2791 = pneg %p812
      $region154: #{decoder_forward.2} parent=147 // pred_check_branch
        %2793 = sbr.rel (%p2791) target = $region156
      $region155: #{decoder_forward.2} parent=147 // pred_region
        _
      $region156: #{decoder_forward.2} parent=147 // pred_fallthru
        _
    $region148: #{decoder_forward.2} parent=5 // pred_fallthru
      _
    %p2794 = scmp.le.s32.totalorder 2, %s71
    // Predicated region
    $region157: #{decoder_forward.2} parent=5 // pred_check
      %p2795 = pneg %p2794
    $region158: #{decoder_forward.2} parent=5 // pred_check_branch
      %2797 = sbr.rel (%p2795) target = $region160
    $region159: #{decoder_forward.2} parent=5 // pred_region
      %s2798 = ssub.s32 %s71, 2
      // Predicated region
      $region161: #{decoder_forward.2} parent=159 // pred_check
        %p2799 = pneg %p818
      $region162: #{decoder_forward.2} parent=159 // pred_check_branch
        %2801 = sbr.rel (%p2799) target = $region164
      $region163: #{decoder_forward.2} parent=159 // pred_region
        %p2802 = scmp.lt.s32.totalorder %s82, 1
        %s2803 = scalar_select %p2802, %s82, 1
        %p2804 = scmp.lt.s32.totalorder %s83, 0
        %s2805 = scalar_select %p2804, %s83, 0
        %s2806 = sadd.s32 %s2805, %s2803
        %s2807 = smul.addr %s2806, 4
        %s2808 = scalar_lea.vmem %s65, %s2807
      $region164: #{decoder_forward.2} parent=159 // pred_fallthru
        _
    $region160: #{decoder_forward.2} parent=5 // pred_fallthru
      _
  $region6: #{decoder_forward.2} parent=0 // loop_footer
    %s75 = sadd.s32 1, %s71
  $region7: #{decoder_forward.2} parent=0 // loop_footer_branch
    %70 = sbr.rel target = $region3
  $region8: #{decoder_forward.2} parent=0 // loop_exit
    _

</llo_original>
